<compile_context>
chip_gen: v5e
topology: v5e:2x2
jax: 0.10.0
libtpu: 0.0.40
codegen_flags: <defaults>
</compile_context>

<pallas_src>
import numpy as np
import jax
import jax.numpy as jnp
from jax.experimental import pallas as pl
from jax.experimental.pallas import tpu as pltpu


# ----------------------------------------------------------------------------- helpers

def _round_up(x, m):
    return (x + m - 1) // m * m


_VMEM_LIMIT = None


def _get_vmem_limit():
    """Per-generation scoped-VMEM limit: 96 MiB on 128-MiB parts (v5e/v6e), 48 MiB otherwise
       (v7x has 64 MiB physical per TC).  Falls back to a universally safe 48 MiB."""
    global _VMEM_LIMIT
    if _VMEM_LIMIT is None:
        cap = None
        try:
            cap = pltpu.get_tpu_info().vmem_capacity_bytes
        except Exception:
            cap = None
        if cap is not None and cap >= 100 * 1024 * 1024:
            _VMEM_LIMIT = 96 * 1024 * 1024
        else:
            _VMEM_LIMIT = 48 * 1024 * 1024
    return _VMEM_LIMIT


# ----------------------------------------------------------------------------- Pallas kernel

def _make_mm_kernel(relu: bool, has_bias: bool, has_mask: bool, has_res: bool):
    def kernel(*refs):
        idx = 2
        a_ref, b_ref = refs[0], refs[1]
        bias_ref = mask_ref = res_ref = None
        if has_bias:
            bias_ref = refs[idx]; idx += 1
        if has_mask:
            mask_ref = refs[idx]; idx += 1
        if has_res:
            res_ref = refs[idx]; idx += 1
        o_ref = refs[idx]

        # bf16 x bf16 -> f32 accumulation on the MXU; whole K in one block (no K loop).
        out = jnp.dot(a_ref[...], b_ref[...], preferred_element_type=jnp.float32)
        if has_bias:
            out = out + bias_ref[...]            # fused BN bias (scale folded into weights)
        if has_mask:
            out = out * mask_ref[...]            # sub-manifold active-site mask
        if has_res:
            out = out + res_ref[...].astype(jnp.float32)   # SparseBasicBlock residual
        if relu:
            out = jnp.maximum(out, 0.0)
        o_ref[...] = out.astype(o_ref.dtype)

    return kernel


def _choose_tiles(M, K, N, has_res, out_itemsize,
                  budget=20 * 1024 * 1024, tm_cap=4096):
    """Pick (tm, Mp, tn, Np): M tile as large as a conservative per-step VMEM budget allows
       (double-buffered A/B/res/out streams), preferring exact divisors of M (no row padding)
       and >= 2 M tiles for megacore when M is large."""
    if N <= 1024:
        tn, Np = N, N                        # no N padding (lane-masked stores, net win)
    else:
        tn, Np = 256, _round_up(N, 256)      # generic fallback (never hit in this net)

    # per-step double-buffered working set = tm * row_bytes + const_bytes
    row_bytes = 4 * K + 2 * tn * out_itemsize + (4 * tn if has_res else 0) + 8
    const_bytes = 4 * K * tn + 8 * tn
    fit = max(256, min(tm_cap, max(budget - const_bytes, 0) // row_bytes // 8 * 8))

    M8 = _round_up(M, 8)
    if M8 <= 1024 and M8 <= fit:
        return M8, M8, tn, Np                # tiny layer: single M tile

    want = min(fit, _round_up(-(-M8 // 2), 8))   # keep >= 2 M tiles (2 TensorCores)
    if M % 8 == 0:
        tm = want
        while tm >= 256:                     # prefer a divisor of M -> no row-pad HBM copy
            if M % tm == 0:
                return tm, M, tn, Np
            tm -= 8
    tm = max(want, 8)
    return tm, _round_up(M8, tm), tn, Np


def pallas_matmul(a, b, bias=None, mask=None, res=None, relu=True, out_dtype=jnp.float32):
    """out = maybe_relu(((a @ b) [+ bias[col]]) [* mask[row]] [+ res]).

    a: [M, K] (bf16 expected), b: [K, N] (BN scale pre-folded), bias: [N] f32 or None,
    mask: [M, 1] or None, res: [M, N] or None.  Whole-K single-step matmul; f32 MXU
    accumulation + f32 epilogue; output cast to `out_dtype`.  N is never padded; M only
    padded when no suitable divisor tile exists."""
    M, K = a.shape
    N = b.shape[1]
    if a.dtype != jnp.bfloat16:
        a = a.astype(jnp.bfloat16)
    if b.dtype != jnp.bfloat16:
        b = b.astype(jnp.bfloat16)

    has_bias = bias is not None
    has_mask = mask is not None
    has_res = res is not None
    out_itemsize = int(np.dtype(out_dtype).itemsize)
    tm, Mp, tn, Np = _choose_tiles(M, K, N, has_res, out_itemsize)

    if Mp != M:
        a = jnp.pad(a, ((0, Mp - M), (0, 0)))
    if Np != N:
        b = jnp.pad(b, ((0, 0), (0, Np - N)))

    inputs = [a, b]
    in_specs = [
        pl.BlockSpec((tm, K), lambda i, j: (i, 0)),
        pl.BlockSpec((K, tn), lambda i, j: (0, j)),
    ]
    if has_bias:
        bias_p = bias.astype(jnp.float32).reshape(1, N)
        if Np != N:
            bias_p = jnp.pad(bias_p, ((0, 0), (0, Np - N)))
        inputs.append(bias_p)
        in_specs.append(pl.BlockSpec((1, tn), lambda i, j: (0, j)))
    if has_mask:
        mask_p = mask.astype(jnp.float32).reshape(M, 1)
        if Mp != M:
            mask_p = jnp.pad(mask_p, ((0, Mp - M), (0, 0)))
        inputs.append(mask_p)
        in_specs.append(pl.BlockSpec((tm, 1), lambda i, j: (i, 0)))
    if has_res:
        res_p = res if res.dtype == jnp.bfloat16 else res.astype(jnp.bfloat16)
        if Mp != M or Np != N:
            res_p = jnp.pad(res_p, ((0, Mp - M), (0, Np - N)))
        inputs.append(res_p)
        in_specs.append(pl.BlockSpec((tm, tn), lambda i, j: (i, j)))

    out = pl.pallas_call(
        _make_mm_kernel(relu, has_bias, has_mask, has_res),
        out_shape=jax.ShapeDtypeStruct((Mp, Np), out_dtype),
        grid_spec=pltpu.PrefetchScalarGridSpec(
            num_scalar_prefetch=0,
            grid=(Mp // tm, Np // tn),
            in_specs=in_specs,
            out_specs=pl.BlockSpec((tm, tn), lambda i, j: (i, j)),
        ),
        compiler_params=pltpu.CompilerParams(
            dimension_semantics=("parallel", "parallel"),
            vmem_limit_bytes=_get_vmem_limit()),
    )(*inputs)
    if Mp != M or Np != N:
        out = out[:M, :N]
    return out


# ----------------------------------------------------------------------------- conv helpers (glue + kernel call)

def conv3d(x, w, scale, bias, stride, padding, relu, mask=None, res=None,
           out_dtype=jnp.bfloat16):
    """Channels-last Conv3d (cross-correlation, bias=False) with fused BN/mask/residual/ReLU.
       x: [B,D,H,W,C]  w: [Cout,Cin,kd,kh,kw]  mask: [B,Do,Ho,Wo,1]  res: [B,Do,Ho,Wo,Cout].
       im2col is built directly in bf16 at the lane-padded K (zeros tail inside the single
       concatenate write), so the matmul reads it with no extra pad/cast HBM passes."""
    B, D, H, W, C = x.shape
    Cout, Cin, kd, kh, kw = w.shape
    sd, sh, sw = stride
    pd, ph, pw = padding
    if x.dtype != jnp.bfloat16:
        x = x.astype(jnp.bfloat16)
    xp = jnp.pad(x, ((0, 0), (pd, pd), (ph, ph), (pw, pw), (0, 0)))
    Do = (D + 2 * pd - kd) // sd + 1
    Ho = (H + 2 * ph - kh) // sh + 1
    Wo = (W + 2 * pw - kw) // sw + 1

    K = kd * kh * kw * C
    Kp = _round_up(K, 128)
    patches = []
    for a in range(kd):
        for b_ in range(kh):
            for c in range(kw):
                patches.append(
                    xp[:, a:a + sd * Do:sd, b_:b_ + sh * Ho:sh, c:c + sw * Wo:sw, :])
    if Kp > K:   # lane-pad K inside the im2col write itself (must stay exact zeros)
        patches.append(jnp.zeros((B, Do, Ho, Wo, Kp - K), jnp.bfloat16))
    col = jnp.concatenate(patches, axis=-1)                 # [B,Do,Ho,Wo,Kp] tap-major
    A = col.reshape(B * Do * Ho * Wo, Kp)

    # Fold BN scale (per Cout channel) into the weight matrix; rows ordered (kd,kh,kw,cin),
    # zero rows for the K padding.
    Bm = (w * scale[:, None, None, None, None]).transpose(2, 3, 4, 1, 0).reshape(K, Cout)
    Bm = jnp.pad(Bm.astype(jnp.bfloat16), ((0, Kp - K), (0, 0)))

    mask_flat = mask.reshape(-1, 1) if mask is not None else None
    res_flat = res.reshape(-1, Cout) if res is not None else None
    out = pallas_matmul(A, Bm, bias=bias, mask=mask_flat, res=res_flat, relu=relu,
                        out_dtype=out_dtype)
    return out.reshape(B, Do, Ho, Wo, Cout)


def deconv3d(x, wt, scale, bias, stride, padding, output_padding, relu,
             out_dtype=jnp.bfloat16):
    """PyTorch ConvTranspose3d (bias=False) + BN + ReLU in scatter (col2im) form.
       x: [B,D,H,W,Cin]  wt: [Cin,Cout,kd,kh,kw].  Matmul runs over *input* sites only
       (no dilated-zero rows); BN scale folded into the weights, bias/ReLU applied after
       the tap scatter-add (required since multiple taps sum into one output site)."""
    B, Din, Hin, Win, Cin = x.shape
    _, Cout, kd, kh, kw = wt.shape
    sd, sh, sw = stride
    pd, ph, pw = padding
    od, oh, ow = output_padding
    kk = kd * kh * kw

    W2 = (wt * scale[None, :, None, None, None]).transpose(0, 2, 3, 4, 1).reshape(Cin, kk * Cout)
    A = x.reshape(B * Din * Hin * Win, Cin)
    if A.dtype != jnp.bfloat16:
        A = A.astype(jnp.bfloat16)
    Y = pallas_matmul(A, W2, bias=None, mask=None, res=None, relu=False,
                      out_dtype=jnp.float32)
    Y = Y.reshape(B, Din, Hin, Win, kd, kh, kw, Cout)

    Df, Hf, Wf = (Din - 1) * sd + kd, (Hin - 1) * sh + kh, (Win - 1) * sw + kw
    full = jnp.zeros((B, Df, Hf, Wf, Cout), jnp.float32)
    for a in range(kd):
        for b_ in range(kh):
            for c in range(kw):
                full = full.at[:, a:a + sd * Din:sd, b_:b_ + sh * Hin:sh,
                               c:c + sw * Win:sw, :].add(Y[:, :, :, :, a, b_, c, :])

    Do = (Din - 1) * sd - 2 * pd + kd + od
    Ho = (Hin - 1) * sh - 2 * ph + kh + oh
    Wo = (Win - 1) * sw - 2 * pw + kw + ow
    full = jnp.pad(full, ((0, 0),
                          (0, max(0, pd + Do - Df)),
                          (0, max(0, ph + Ho - Hf)),
                          (0, max(0, pw + Wo - Wf)),
                          (0, 0)))
    out = full[:, pd:pd + Do, ph:ph + Ho, pw:pw + Wo, :]
    out = out + bias[None, None, None, None, :]
    if relu:
        out = jnp.maximum(out, 0.0)
    return out.astype(out_dtype)


def downsample_mask(mask, k, stride, padding):
    """Active-site propagation of a strided SparseConv3d (any active input in window).
       Implemented as a cheap max-pool (reduce_window) on the 1-channel mask."""
    kd, kh, kw = k
    sd, sh, sw = stride
    pd, ph, pw = padding
    m = jax.lax.reduce_window(
        mask, 0.0, jax.lax.max,
        window_dimensions=(1, kd, kh, kw, 1),
        window_strides=(1, sd, sh, sw, 1),
        padding=((0, 0), (pd, pd), (ph, ph), (pw, pw), (0, 0)))
    return (m > 0.5).astype(jnp.float32)


def bn_sb(bn, eps):
    s = bn["gamma"] / jnp.sqrt(bn["var"] + eps)
    return s, bn["beta"] - bn["mean"] * s


# ----------------------------------------------------------------------------- parameters

def init_params(key):
    keys = iter(jax.random.split(key, 64))

    def conv_w(cout, cin, k=(3, 3, 3)):
        return jax.random.normal(next(keys), (cout, cin) + k, jnp.float32) * 0.05

    def bn(c):
        k1, k2, k3, k4 = jax.random.split(next(keys), 4)
        return dict(gamma=jax.random.uniform(k1, (c,), jnp.float32, 0.5, 1.5),
                    beta=0.1 * jax.random.normal(k2, (c,), jnp.float32),
                    mean=0.1 * jax.random.normal(k3, (c,), jnp.float32),
                    var=jax.random.uniform(k4, (c,), jnp.float32, 0.5, 1.5))

    def basic_block(c):
        return dict(w1=conv_w(c, c), bn1=bn(c), w2=conv_w(c, c), bn2=bn(c))

    return dict(
        conv_input=dict(w=conv_w(16, 4), bn=bn(16)),
        conv1=[basic_block(16), basic_block(16)],
        conv2=dict(down=dict(w=conv_w(32, 16), bn=bn(32)),
                   blocks=[basic_block(32), basic_block(32)]),
        conv3=dict(down=dict(w=conv_w(64, 32), bn=bn(64)),
                   blocks=[basic_block(64), basic_block(64)]),
        conv4=dict(down=dict(w=conv_w(128, 64), bn=bn(128)),
                   blocks=[basic_block(128), basic_block(128)]),
        conv_out=dict(w=conv_w(128, 128, (3, 1, 1)), bn=bn(128)),
        deconv1=dict(w=jax.random.normal(next(keys), (128, 32, 3, 3, 3), jnp.float32) * 0.05, bn=bn(32)),
        deconv2=dict(w=jax.random.normal(next(keys), (32, 8, 3, 3, 3), jnp.float32) * 0.05, bn=bn(8)),
        deconv3=dict(w=jax.random.normal(next(keys), (8, 1, 3, 3, 3), jnp.float32) * 0.05),
    )


# ----------------------------------------------------------------------------- forward

def sparse_basic_block_fwd(x, p, mask):
    out = conv3d(x, p["w1"], *bn_sb(p["bn1"], 1e-3),
                 stride=(1, 1, 1), padding=(1, 1, 1), relu=True, mask=mask)
    out = conv3d(out, p["w2"], *bn_sb(p["bn2"], 1e-3),
                 stride=(1, 1, 1), padding=(1, 1, 1), relu=True, mask=mask, res=x)
    return out


def radial_mae_forward(params, dense_in, mask0):
    # conv_input (SubMConv3d 4->16 + BN + ReLU)
    x = conv3d(dense_in, params["conv_input"]["w"], *bn_sb(params["conv_input"]["bn"], 1e-3),
               stride=(1, 1, 1), padding=(1, 1, 1), relu=True, mask=mask0)
    # conv1 (2x SparseBasicBlock, 16)
    for bp in params["conv1"]:
        x = sparse_basic_block_fwd(x, bp, mask0)
    # conv2 (SparseConv3d s2 16->32 + 2 blocks)
    mask1 = downsample_mask(mask0, (3, 3, 3), (2, 2, 2), (1, 1, 1))
    x = conv3d(x, params["conv2"]["down"]["w"], *bn_sb(params["conv2"]["down"]["bn"], 1e-3),
               stride=(2, 2, 2), padding=(1, 1, 1), relu=True, mask=mask1)
    for bp in params["conv2"]["blocks"]:
        x = sparse_basic_block_fwd(x, bp, mask1)
    # conv3
    mask2 = downsample_mask(mask1, (3, 3, 3), (2, 2, 2), (1, 1, 1))
    x = conv3d(x, params["conv3"]["down"]["w"], *bn_sb(params["conv3"]["down"]["bn"], 1e-3),
               stride=(2, 2, 2), padding=(1, 1, 1), relu=True, mask=mask2)
    for bp in params["conv3"]["blocks"]:
        x = sparse_basic_block_fwd(x, bp, mask2)
    # conv4 (padding (0,1,1))
    mask3 = downsample_mask(mask2, (3, 3, 3), (2, 2, 2), (0, 1, 1))
    x = conv3d(x, params["conv4"]["down"]["w"], *bn_sb(params["conv4"]["down"]["bn"], 1e-3),
               stride=(2, 2, 2), padding=(0, 1, 1), relu=True, mask=mask3)
    for bp in params["conv4"]["blocks"]:
        x = sparse_basic_block_fwd(x, bp, mask3)
    # conv_out (SparseConv3d (3,1,1) stride (2,1,1))
    mask4 = downsample_mask(mask3, (3, 1, 1), (2, 1, 1), (0, 0, 0))
    out = conv3d(x, params["conv_out"]["w"], *bn_sb(params["conv_out"]["bn"], 1e-3),
                 stride=(2, 1, 1), padding=(0, 0, 0), relu=True, mask=mask4)
    # dense decoder (scatter-form ConvTranspose3d)
    x_up1 = deconv3d(out, params["deconv1"]["w"], *bn_sb(params["deconv1"]["bn"], 1e-5),
                     stride=(2, 2, 2), padding=(1, 1, 1), output_padding=(1, 1, 1), relu=True)
    x_up2 = deconv3d(x_up1, params["deconv2"]["w"], *bn_sb(params["deconv2"]["bn"], 1e-5),
                     stride=(4, 2, 2), padding=(1, 1, 1), output_padding=(1, 1, 1), relu=True)
    pred = deconv3d(x_up2, params["deconv3"]["w"],
                    jnp.ones((1,), jnp.float32), jnp.zeros((1,), jnp.float32),
                    stride=(3, 2, 2), padding=(1, 1, 1), output_padding=(1, 1, 1),
                    relu=False, out_dtype=jnp.float32)
    return pred.transpose(0, 4, 1, 2, 3)   # -> [B, 1, D, H, W] to match the torch module


# ----------------------------------------------------------------------------- main

if __name__ == "__main__":
    key = jax.random.PRNGKey(0)
    B = 2
    NV = 120                      # voxels per batch sample
    D, H, W = 41, 16, 16          # sparse_shape = grid_size[::-1] + [1,0,0], grid_size=[16,16,40]
    C_in = 4
    masked_ratio = 0.8
    angular_range = 5

    k_params, k_feat, k_coord = jax.random.split(key, 3)
    params = init_params(k_params)

    # deterministic unique voxel coords per batch element
    coords = []
    for b in range(B):
        kb = jax.random.fold_in(k_coord, b)
        flat = jax.random.choice(kb, D * H * W, shape=(NV,), replace=False)
        z = (flat // (H * W)).astype(jnp.int32)
        y = ((flat // W) % H).astype(jnp.int32)
        x = (flat % W).astype(jnp.int32)
        coords.append(jnp.stack([jnp.full((NV,), b, jnp.int32), z, y, x], axis=1))
    voxel_coords = jnp.concatenate(coords, axis=0).astype(jnp.float32)       # [N, 4]
    voxel_features = jax.random.normal(k_feat, (B * NV, C_in), jnp.float32)  # [N, C]

    # --- radial group masking (host-side glue, mirrors the torch grouping loop) ---
    coords_np = np.asarray(voxel_coords)
    angles_deg = np.degrees(np.arctan2(coords_np[:, 3], coords_np[:, 2])) % 360.0
    bins = (angles_deg // angular_range).astype(np.int64)
    nonempty_bins = np.unique(bins)
    select_ratio = 1.0 - masked_ratio
    n_sel = min(int(select_ratio * len(nonempty_bins)), len(nonempty_bins))
    rng = np.random.RandomState(0)   # deterministic stand-in for random.sample
    sel_bins = rng.choice(nonempty_bins, size=n_sel, replace=False)
    selected = np.where(np.isin(bins, sel_bins))[0]

    feats_sel = voxel_features[selected]
    coords_sel = voxel_coords[selected]

    def densify(feats, cds, channels):
        dense = jnp.zeros((B, D, H, W, channels), jnp.float32)   # channels-last
        bi = cds[:, 0].astype(jnp.int32)
        zi = cds[:, 1].astype(jnp.int32)
        yi = cds[:, 2].astype(jnp.int32)
        xi = cds[:, 3].astype(jnp.int32)
        return dense.at[bi, zi, yi, xi, :].set(feats)

    dense_in = densify(feats_sel, coords_sel, C_in).astype(jnp.bfloat16)       # input_sp_tensor.dense()
    mask0 = densify(jnp.ones((len(selected), 1), jnp.float32), coords_sel, 1)  # active-site mask
    target = densify(jnp.ones((voxel_coords.shape[0], 1), jnp.float32),
                     voxel_coords, 1).transpose(0, 4, 1, 2, 3)                 # input_sp_tensor_ones.dense()

    pred = radial_mae_forward(params, dense_in, mask0)
    pred = jax.block_until_ready(pred)
    target = jax.block_until_ready(target)

    assert pred.shape == target.shape == (B, 1, D, H, W), (pred.shape, target.shape)
    assert bool(jnp.all(jnp.isfinite(pred)))
    print("KERNEL_OK")
</pallas_src>

<mosaic_0001>
module attributes {stable_mosaic.version = 11 : i64} {
  func.func @kernel(%arg0: i32, %arg1: i32, %arg2: memref<2624x128xbf16, #tpu.memory_space<vmem>>, %arg3: memref<128x16xbf16, #tpu.memory_space<vmem>>, %arg4: memref<1x16xf32, #tpu.memory_space<vmem>>, %arg5: memref<2624x1xf32, #tpu.memory_space<vmem>>, %arg6: memref<2624x16xbf16, #tpu.memory_space<vmem>>) attributes {dimension_semantics = [#tpu.dimension_semantics<parallel>, #tpu.dimension_semantics<parallel>], iteration_bounds = array<i64: 8, 1>, scalar_prefetch = 0 : i64, scratch_operands = 0 : i64, tpu.core_type = #tpu.core_type<tc>, window_params = [{transform_indices = @transform_0, window_bounds = array<i64: 2624, 128>}, {transform_indices = @transform_1, window_bounds = array<i64: 128, 16>}, {transform_indices = @transform_2, window_bounds = array<i64: 1, 16>}, {transform_indices = @transform_3, window_bounds = array<i64: 2624, 1>}, {transform_indices = @transform_4, window_bounds = array<i64: 2624, 16>}]} {
    %c0 = arith.constant 0 : index
    %c0_0 = arith.constant 0 : index
    %0 = vector.load %arg2[%c0, %c0_0] : memref<2624x128xbf16, #tpu.memory_space<vmem>>, vector<2624x128xbf16>
    %c0_1 = arith.constant 0 : index
    %c0_2 = arith.constant 0 : index
    %1 = vector.load %arg3[%c0_1, %c0_2] : memref<128x16xbf16, #tpu.memory_space<vmem>>, vector<128x16xbf16>
    %cst = arith.constant dense<0.000000e+00> : vector<2624x16xf32>
    %2 = tpu.matmul %0, %1, %cst {dimension_numbers = #tpu.dot_dimension_numbers<[1], [0], [0], [1], [0, 0, 1, 1], [], []>} : vector<2624x128xbf16>, vector<128x16xbf16>, vector<2624x16xf32> -> vector<2624x16xf32>
    %c0_3 = arith.constant 0 : index
    %c0_4 = arith.constant 0 : index
    %3 = vector.load %arg4[%c0_3, %c0_4] : memref<1x16xf32, #tpu.memory_space<vmem>>, vector<1x16xf32>
    %4 = vector.broadcast %3 : vector<1x16xf32> to vector<2624x16xf32>
    %5 = arith.addf %2, %4 : vector<2624x16xf32>
    %c0_5 = arith.constant 0 : index
    %c0_6 = arith.constant 0 : index
    %6 = vector.load %arg5[%c0_5, %c0_6] : memref<2624x1xf32, #tpu.memory_space<vmem>>, vector<2624x1xf32>
    %7 = vector.broadcast %6 : vector<2624x1xf32> to vector<2624x16xf32>
    %8 = arith.mulf %5, %7 : vector<2624x16xf32>
    %cst_7 = arith.constant 0.000000e+00 : f32
    %9 = vector.broadcast %cst_7 : f32 to vector<2624x16xf32>
    %10 = arith.maximumf %8, %9 : vector<2624x16xf32>
    %11 = arith.truncf %10 : vector<2624x16xf32> to vector<2624x16xbf16>
    %c0_8 = arith.constant 0 : index
    %c0_9 = arith.constant 0 : index
    %12 = vector.load %arg6[%c0_8, %c0_9] : memref<2624x16xbf16, #tpu.memory_space<vmem>>, vector<2624x16xbf16>
    tpu.vector_store %arg6[%c0_8, %c0_9], %11 {strides = array<i32>} : memref<2624x16xbf16, #tpu.memory_space<vmem>>, vector<2624x16xbf16>,
    return
  }
  func.func @transform_0(%arg0: i32, %arg1: i32) -> (i32, i32) {
    %c0_i32 = arith.constant 0 : i32
    %c0_i32_0 = arith.constant 0 : i32
    return %arg0, %c0_i32 : i32, i32
  }
  func.func @transform_1(%arg0: i32, %arg1: i32) -> (i32, i32) {
    %c0_i32 = arith.constant 0 : i32
    %c0_i32_0 = arith.constant 0 : i32
    return %c0_i32, %arg1 : i32, i32
  }
  func.func @transform_2(%arg0: i32, %arg1: i32) -> (i32, i32) {
    %c0_i32 = arith.constant 0 : i32
    %c0_i32_0 = arith.constant 0 : i32
    return %c0_i32, %arg1 : i32, i32
  }
  func.func @transform_3(%arg0: i32, %arg1: i32) -> (i32, i32) {
    %c0_i32 = arith.constant 0 : i32
    %c0_i32_0 = arith.constant 0 : i32
    return %arg0, %c0_i32 : i32, i32
  }
  func.func @transform_4(%arg0: i32, %arg1: i32) -> (i32, i32) {
    %c0_i32 = arith.constant 0 : i32
    return %arg0, %arg1 : i32, i32
  }
}

</mosaic_0001>

<llo_original>
// kernel: tpu_custom_call.1
$region0: #{tpu_custom_call.1}
  #allocation0 [shape = 'u32[]', space=smem, size = 0x4, offset = 0x4, fixed_abs, tag = 'smem constant byte address 0x4 - core index']
  #allocation1 [shape = 'u32[72,128]{1,0:T(1,128)}', space=vmem, size = 0x9000, scoped, tag = 'internal scratch']
  %s0 = inlined_call_operand.vmem [shape: bf16[20992,128], index: 0, kind: input, shape index: {}]
  %s1 = inlined_call_operand.vmem [shape: bf16[128,16], index: 1, kind: input, shape index: {}]
  %s2 = inlined_call_operand.vmem [shape: f32[1,16], index: 2, kind: input, shape index: {}]
  %s3 = inlined_call_operand.vmem [shape: f32[20992,1], index: 3, kind: input, shape index: {}]
  %s4 = inlined_call_operand.vmem [shape: bf16[20992,16], index: 4, kind: output, shape index: {}]
  %s5 = sld [smem:[#allocation0]]
  $region49: #{tpu_custom_call.1} parent=0
    _
  %s7 = ssub.s32 1, %s5
  %s8 = scalar_select 0, %s7, %s5
  loop: start=0, step=1, limit=10
  $region2: #{tpu_custom_call.1} parent=0 // loop_pre_header
    _
  $region3: #{tpu_custom_call.1} parent=0 // loop_header
    %s10 = sphi 0, %s14
    %p11 = scmp.ge.s32.totalorder %s10, 10
    %s17 = sphi 0, %s29
    %s18 = sphi 0, %s25
    %s19 = sphi 0, %s17
    %s20 = sphi 0, %s18
    %s21 = sphi 0, %s19
    %s22 = sphi 0, %s20
    %s32 = sphi 0, %s34
    %s35 = sphi 0, %s32
    %s36 = sphi 0, %s35
    %s52 = sphi 0, %s36
    %s58 = sphi 0, %s60
    %s61 = sphi 0, %s58
    %s62 = sphi 0, %s61
    %s78 = sphi 0, %s62
    %s84 = sphi 0, %s86
    %s87 = sphi 0, %s84
    %s88 = sphi 0, %s87
    %s104 = sphi 0, %s88
    %s110 = sphi 0, %s112
    %s113 = sphi 0, %s110
    %s114 = sphi 0, %s113
    %s130 = sphi 0, %s114
    %s138 = sphi 0, %s140
    %s141 = sphi 0, %s138
    %s142 = sphi 0, %s141
    %s158 = sphi 0, %s142
  $region4: #{tpu_custom_call.1} parent=0 // loop_header_branch
    %13 = sbr.rel (%p11) target = $region8
  $region5: #{tpu_custom_call.1} parent=0 // loop_body
    %s15 = ssub.s32 %s10, 1
    %s16 = ssub.s32 %s10, 2
    %s23 = sadd.s32 1, %s18
    %p24 = scmp.ge.s32.totalorder %s23, 1
    %s25 = scalar_select %p24, 0, %s23
    %s26 = sadd.s32 1, %s17
    %s27 = scalar_select %p24, %s26, %s17
    %p28 = scmp.ge.s32.totalorder %s27, 8
    %s29 = scalar_select %p28, 0, %s27
    %s30 = ssub.s32 %s17, %s29
    %p31 = scmp.eq.s32.totalorder %s30, 0
    %s33 = sadd.s32 %s32, 1
    %s34 = scalar_select %p31, %s32, %s33
    %p37 = pneg %p31
    %p38 = scmp.eq.s32.totalorder %s10, 7
    %p39 = por %p37, %p38
    %p40 = scmp.ne.s32.totalorder %s32, %s35
    %p41 = scmp.eq.s32.totalorder %s10, 0
    %p42 = por %p40, %p41
    %p43 = scmp.ne.s32.totalorder %s32, %s35
    %p44 = scmp.eq.s32.totalorder %s15, 7
    %p45 = por %p43, %p44
    %p46 = scmp.ne.s32.totalorder %s35, %s36
    %p47 = scmp.eq.s32.totalorder %s15, 0
    %p48 = por %p46, %p47
    %p49 = scmp.ne.s32.totalorder %s35, %s36
    %p50 = scmp.eq.s32.totalorder %s16, 7
    %p51 = por %p49, %p50
    %p53 = scmp.ne.s32.totalorder %s36, %s52
    %p54 = scmp.eq.s32.totalorder %s16, 0
    %p55 = por %p53, %p54
    %s56 = ssub.s32 %s18, %s25
    %p57 = scmp.eq.s32.totalorder %s56, 0
    %s59 = sadd.s32 %s58, 1
    %s60 = scalar_select %p57, %s58, %s59
    %p63 = pneg %p57
    %p64 = scmp.eq.s32.totalorder %s10, 7
    %p65 = por %p63, %p64
    %p66 = scmp.ne.s32.totalorder %s58, %s61
    %p67 = scmp.eq.s32.totalorder %s10, 0
    %p68 = por %p66, %p67
    %p69 = scmp.ne.s32.totalorder %s58, %s61
    %p70 = scmp.eq.s32.totalorder %s15, 7
    %p71 = por %p69, %p70
    %p72 = scmp.ne.s32.totalorder %s61, %s62
    %p73 = scmp.eq.s32.totalorder %s15, 0
    %p74 = por %p72, %p73
    %p75 = scmp.ne.s32.totalorder %s61, %s62
    %p76 = scmp.eq.s32.totalorder %s16, 7
    %p77 = por %p75, %p76
    %p79 = scmp.ne.s32.totalorder %s62, %s78
    %p80 = scmp.eq.s32.totalorder %s16, 0
    %p81 = por %p79, %p80
    %s82 = ssub.s32 %s18, %s25
    %p83 = scmp.eq.s32.totalorder %s82, 0
    %s85 = sadd.s32 %s84, 1
    %s86 = scalar_select %p83, %s84, %s85
    %p89 = pneg %p83
    %p90 = scmp.eq.s32.totalorder %s10, 7
    %p91 = por %p89, %p90
    %p92 = scmp.ne.s32.totalorder %s84, %s87
    %p93 = scmp.eq.s32.totalorder %s10, 0
    %p94 = por %p92, %p93
    %p95 = scmp.ne.s32.totalorder %s84, %s87
    %p96 = scmp.eq.s32.totalorder %s15, 7
    %p97 = por %p95, %p96
    %p98 = scmp.ne.s32.totalorder %s87, %s88
    %p99 = scmp.eq.s32.totalorder %s15, 0
    %p100 = por %p98, %p99
    %p101 = scmp.ne.s32.totalorder %s87, %s88
    %p102 = scmp.eq.s32.totalorder %s16, 7
    %p103 = por %p101, %p102
    %p105 = scmp.ne.s32.totalorder %s88, %s104
    %p106 = scmp.eq.s32.totalorder %s16, 0
    %p107 = por %p105, %p106
    %s108 = ssub.s32 %s17, %s29
    %p109 = scmp.eq.s32.totalorder %s108, 0
    %s111 = sadd.s32 %s110, 1
    %s112 = scalar_select %p109, %s110, %s111
    %p115 = pneg %p109
    %p116 = scmp.eq.s32.totalorder %s10, 7
    %p117 = por %p115, %p116
    %p118 = scmp.ne.s32.totalorder %s110, %s113
    %p119 = scmp.eq.s32.totalorder %s10, 0
    %p120 = por %p118, %p119
    %p121 = scmp.ne.s32.totalorder %s110, %s113
    %p122 = scmp.eq.s32.totalorder %s15, 7
    %p123 = por %p121, %p122
    %p124 = scmp.ne.s32.totalorder %s113, %s114
    %p125 = scmp.eq.s32.totalorder %s15, 0
    %p126 = por %p124, %p125
    %p127 = scmp.ne.s32.totalorder %s113, %s114
    %p128 = scmp.eq.s32.totalorder %s16, 7
    %p129 = por %p127, %p128
    %p131 = scmp.ne.s32.totalorder %s114, %s130
    %p132 = scmp.eq.s32.totalorder %s16, 0
    %p133 = por %p131, %p132
    %s134 = ssub.s32 %s17, %s29
    %s135 = ssub.s32 %s18, %s25
    %s136 = sor.u32 %s134, %s135
    %p137 = scmp.eq.s32.totalorder %s136, 0
    %s139 = sadd.s32 %s138, 1
    %s140 = scalar_select %p137, %s138, %s139
    %p143 = pneg %p137
    %p144 = scmp.eq.s32.totalorder %s10, 7
    %p145 = por %p143, %p144
    %p146 = scmp.ne.s32.totalorder %s138, %s141
    %p147 = scmp.eq.s32.totalorder %s10, 0
    %p148 = por %p146, %p147
    %p149 = scmp.ne.s32.totalorder %s138, %s141
    %p150 = scmp.eq.s32.totalorder %s15, 7
    %p151 = por %p149, %p150
    %p152 = scmp.ne.s32.totalorder %s141, %s142
    %p153 = scmp.eq.s32.totalorder %s15, 0
    %p154 = por %p152, %p153
    %p155 = scmp.ne.s32.totalorder %s141, %s142
    %p156 = scmp.eq.s32.totalorder %s16, 7
    %p157 = por %p155, %p156
    %p159 = scmp.ne.s32.totalorder %s142, %s158
    %p160 = scmp.eq.s32.totalorder %s16, 0
    %p161 = por %p159, %p160
    %p162 = scmp.le.s32.totalorder 1, %s10
    %p163 = scmp.lt.s32.totalorder %s10, 9
    %p164 = pnand %p162, %p163
    %p165 = pneg %p164
    // Predicated region
    $region9: #{tpu_custom_call.1} parent=5 // pred_check
      _
    $region10: #{tpu_custom_call.1} parent=5 // pred_check_branch
      %167 = sbr.rel (%p164) target = $region12
    $region11: #{tpu_custom_call.1} parent=5 // pred_region
      %s168 = ssub.s32 %s10, 1
      // Predicated region
      $region13: #{tpu_custom_call.1} parent=11 // pred_check
        %p169 = pneg %p74
      $region14: #{tpu_custom_call.1} parent=11 // pred_check_branch
        %171 = sbr.rel (%p169) target = $region16
      $region15: #{tpu_custom_call.1} parent=11 // pred_region
        %p172 = scmp.lt.s32.totalorder %s20, 0
        %s173 = scalar_select %p172, %s20, 0
        %s174 = smul.addr %s173, 4
        %s175 = scalar_lea.vmem %s1, %s174
      $region16: #{tpu_custom_call.1} parent=11 // pred_fallthru
        _
      // Predicated region
      $region17: #{tpu_custom_call.1} parent=11 // pred_check
        %p176 = pneg %p100
      $region18: #{tpu_custom_call.1} parent=11 // pred_check_branch
        %178 = sbr.rel (%p176) target = $region20
      $region19: #{tpu_custom_call.1} parent=11 // pred_region
        %p179 = scmp.lt.s32.totalorder %s20, 0
        %s180 = scalar_select %p179, %s20, 0
        %s181 = scalar_lea.vmem %s2, %s180
      $region20: #{tpu_custom_call.1} parent=11 // pred_fallthru
        _
    $region12: #{tpu_custom_call.1} parent=5 // pred_fallthru
      _
    %p182 = scmp.lt.s32.totalorder %s10, 8
    // Predicated region
    $region21: #{tpu_custom_call.1} parent=5 // pred_check
      %p183 = pneg %p182
    $region22: #{tpu_custom_call.1} parent=5 // pred_check_branch
      %185 = sbr.rel (%p183) target = $region24
    $region23: #{tpu_custom_call.1} parent=5 // pred_region
      // Predicated region
      $region25: #{tpu_custom_call.1} parent=23 // pred_check
        %p186 = pneg %p42
      $region26: #{tpu_custom_call.1} parent=23 // pred_check_branch
        %188 = sbr.rel (%p186) target = $region28
      $region27: #{tpu_custom_call.1} parent=23 // pred_region
        %s189 = smul.u32 328, %s17
        %p190 = scmp.lt.s32.totalorder %s189, 2623
        %s191 = scalar_select %p190, %s189, 2623
        %s192 = smul.addr %s191, 4
        %s193 = scalar_lea.vmem %s0, %s192
        %s194 = smul.u32 328, %s17
      $region28: #{tpu_custom_call.1} parent=23 // pred_fallthru
        _
      // Predicated region
      $region29: #{tpu_custom_call.1} parent=23 // pred_check
        %p195 = pneg %p120
      $region30: #{tpu_custom_call.1} parent=23 // pred_check_branch
        %197 = sbr.rel (%p195) target = $region32
      $region31: #{tpu_custom_call.1} parent=23 // pred_region
        %s198 = smul.u32 328, %s17
        %p199 = scmp.lt.s32.totalorder %s198, 2623
        %s200 = scalar_select %p199, %s198, 2623
        %s201 = smul.addr %s200, 8
        %s202 = scalar_lea.vmem %s3, %s201
        %s203 = smul.u32 328, %s17
      $region32: #{tpu_custom_call.1} parent=23 // pred_fallthru
        _
    $region24: #{tpu_custom_call.1} parent=5 // pred_fallthru
      _
    %p204 = scmp.le.s32.totalorder 1, %s10
    %p205 = scmp.lt.s32.totalorder %s10, 9
    %p206 = pnand %p204, %p205
    %p207 = pneg %p206
    // Predicated region
    $region33: #{tpu_custom_call.1} parent=5 // pred_check
      _
    $region34: #{tpu_custom_call.1} parent=5 // pred_check_branch
      %209 = sbr.rel (%p206) target = $region36
    $region35: #{tpu_custom_call.1} parent=5 // pred_region
      %s210 = ssub.s32 %s10, 1
      %s211 = smul.u32 328, %s19
      %p212 = scmp.lt.s32.totalorder %s211, 2623
      %s213 = scalar_select %p212, %s211, 2623
      %s214 = smul.addr %s213, 4
      %s215 = scalar_lea.vmem %s0, %s214
      %p216 = pneg %p48
      %p217 = pneg %p45
      %p218 = scmp.lt.s32.totalorder %s20, 0
      %s219 = scalar_select %p218, %s20, 0
      %s220 = smul.addr %s219, 4
      %s221 = scalar_lea.vmem %s1, %s220
      %p222 = pneg %p74
      %p223 = pneg %p71
      %p224 = scmp.lt.s32.totalorder %s20, 0
      %s225 = scalar_select %p224, %s20, 0
      %s226 = scalar_lea.vmem %s2, %s225
      %p227 = pneg %p100
      %p228 = pneg %p97
      %s229 = smul.u32 328, %s19
      %p230 = scmp.lt.s32.totalorder %s229, 2623
      %s231 = scalar_select %p230, %s229, 2623
      %s232 = smul.addr %s231, 8
      %s233 = scalar_lea.vmem %s3, %s232
      %p234 = pneg %p126
      %p235 = pneg %p123
      %p236 = pneg %p154
      %p237 = pneg %p151
      %s238 = smul.u32 328, %s19
      %p239 = scmp.lt.s32.totalorder %s238, 2623
      %s240 = scalar_select %p239, %s238, 2623
      %p241 = scmp.lt.s32.totalorder %s20, 0
      %s242 = scalar_select %p241, %s20, 0
      %s243 = sadd.s32 %s242, %s240
      %s244 = smul.addr %s243, 4
      %s245 = scalar_lea.vmem %s4, %s244
      %s246 = smul.u32 328, %s19
      %p247 = scmp.lt.s32.totalorder %s246, 2623
      %s248 = scalar_select %p247, %s246, 2623
      %s249 = smul.addr %s248, 4
      %s250 = scalar_lea.vmem %s0, %s249
      %s251 = smul.u32 328, %s19
      %p252 = scmp.lt.s32.totalorder %s20, 0
      %s253 = scalar_select %p252, %s20, 0
      %s254 = smul.addr %s253, 4
      %s255 = scalar_lea.vmem %s1, %s254
      %p256 = scmp.lt.s32.totalorder %s20, 0
      %s257 = scalar_select %p256, %s20, 0
      %s258 = scalar_lea.vmem %s2, %s257
      %s259 = smul.u32 328, %s19
      %p260 = scmp.lt.s32.totalorder %s259, 2623
      %s261 = scalar_select %p260, %s259, 2623
      %s262 = smul.addr %s261, 8
      %s263 = scalar_lea.vmem %s3, %s262
      %s264 = smul.u32 328, %s19
      %s265 = smul.u32 328, %s19
      %p266 = scmp.lt.s32.totalorder %s265, 2623
      %s267 = scalar_select %p266, %s265, 2623
      %p268 = scmp.lt.s32.totalorder %s20, 0
      %s269 = scalar_select %p268, %s20, 0
      %s270 = sadd.s32 %s269, %s267
      %s271 = smul.addr %s270, 4
      %s272 = scalar_lea.vmem %s4, %s271
      %s273 = smul.u32 328, %s19
      %v274 = vld [vmem:[%s250] sm:$0xf]
      %v275 = vld [vmem:[%s250 + $0x4] sm:$0xf]
      %v276 = vld [vmem:[%s250 + $0x8] sm:$0xf]
      %v277 = vld [vmem:[%s250 + $0xc] sm:$0xf]
      %v278 = vld [vmem:[%s250 + $0x10] sm:$0xf]
      %v279 = vld [vmem:[%s250 + $0x14] sm:$0xf]
      %v280 = vld [vmem:[%s250 + $0x18] sm:$0xf]
      %v281 = vld [vmem:[%s250 + $0x1c] sm:$0xf]
      %v282 = vld [vmem:[%s250 + $0x20] sm:$0xf]
      %v283 = vld [vmem:[%s250 + $0x24] sm:$0xf]
      %v284 = vld [vmem:[%s250 + $0x28] sm:$0xf]
      %v285 = vld [vmem:[%s250 + $0x2c] sm:$0xf]
      %v286 = vld [vmem:[%s250 + $0x30] sm:$0xf]
      %v287 = vld [vmem:[%s250 + $0x34] sm:$0xf]
      %v288 = vld [vmem:[%s250 + $0x38] sm:$0xf]
      %v289 = vld [vmem:[%s250 + $0x3c] sm:$0xf]
      %v290 = vld [vmem:[%s250 + $0x40] sm:$0xf]
      %v291 = vld [vmem:[%s250 + $0x44] sm:$0xf]
      %v292 = vld [vmem:[%s250 + $0x48] sm:$0xf]
      %v293 = vld [vmem:[%s250 + $0x4c] sm:$0xf]
      %v294 = vld [vmem:[%s250 + $0x50] sm:$0xf]
      %v295 = vld [vmem:[%s250 + $0x54] sm:$0xf]
      %v296 = vld [vmem:[%s250 + $0x58] sm:$0xf]
      %v297 = vld [vmem:[%s250 + $0x5c] sm:$0xf]
      %v298 = vld [vmem:[%s250 + $0x60] sm:$0xf]
      %v299 = vld [vmem:[%s250 + $0x64] sm:$0xf]
      %v300 = vld [vmem:[%s250 + $0x68] sm:$0xf]
      %v301 = vld [vmem:[%s250 + $0x6c] sm:$0xf]
      %v302 = vld [vmem:[%s250 + $0x70] sm:$0xf]
      %v303 = vld [vmem:[%s250 + $0x74] sm:$0xf]
      %v304 = vld [vmem:[%s250 + $0x78] sm:$0xf]
      %v305 = vld [vmem:[%s250 + $0x7c] sm:$0xf]
      %v306 = vld [vmem:[%s250 + $0x80] sm:$0xf]
      %v307 = vld [vmem:[%s250 + $0x84] sm:$0xf]
      %v308 = vld [vmem:[%s250 + $0x88] sm:$0xf]
      %v309 = vld [vmem:[%s250 + $0x8c] sm:$0xf]
      %v310 = vld [vmem:[%s250 + $0x90] sm:$0xf]
      %v311 = vld [vmem:[%s250 + $0x94] sm:$0xf]
      %v312 = vld [vmem:[%s250 + $0x98] sm:$0xf]
      %v313 = vld [vmem:[%s250 + $0x9c] sm:$0xf]
      %v314 = vld [vmem:[%s250 + $0xa0] sm:$0xf]
      %v315 = vld [vmem:[%s250 + $0xa4] sm:$0xf]
      %v316 = vld [vmem:[%s250 + $0xa8] sm:$0xf]
      %v317 = vld [vmem:[%s250 + $0xac] sm:$0xf]
      %v318 = vld [vmem:[%s250 + $0xb0] sm:$0xf]
      %v319 = vld [vmem:[%s250 + $0xb4] sm:$0xf]
      %v320 = vld [vmem:[%s250 + $0xb8] sm:$0xf]
      %v321 = vld [vmem:[%s250 + $0xbc] sm:$0xf]
      %v322 = vld [vmem:[%s250 + $0xc0] sm:$0xf]
      %v323 = vld [vmem:[%s250 + $0xc4] sm:$0xf]
      %v324 = vld [vmem:[%s250 + $0xc8] sm:$0xf]
      %v325 = vld [vmem:[%s250 + $0xcc] sm:$0xf]
      %v326 = vld [vmem:[%s250 + $0xd0] sm:$0xf]
      %v327 = vld [vmem:[%s250 + $0xd4] sm:$0xf]
      %v328 = vld [vmem:[%s250 + $0xd8] sm:$0xf]
      %v329 = vld [vmem:[%s250 + $0xdc] sm:$0xf]
      %v330 = vld [vmem:[%s250 + $0xe0] sm:$0xf]
      %v331 = vld [vmem:[%s250 + $0xe4] sm:$0xf]
      %v332 = vld [vmem:[%s250 + $0xe8] sm:$0xf]
      %v333 = vld [vmem:[%s250 + $0xec] sm:$0xf]
      %v334 = vld [vmem:[%s250 + $0xf0] sm:$0xf]
      %v335 = vld [vmem:[%s250 + $0xf4] sm:$0xf]
      %v336 = vld [vmem:[%s250 + $0xf8] sm:$0xf]
      %v337 = vld [vmem:[%s250 + $0xfc] sm:$0xf]
      %v338 = vld [vmem:[%s250 + $0x100] sm:$0xf]
      %v339 = vld [vmem:[%s250 + $0x104] sm:$0xf]
      %v340 = vld [vmem:[%s250 + $0x108] sm:$0xf]
      %v341 = vld [vmem:[%s250 + $0x10c] sm:$0xf]
      %v342 = vld [vmem:[%s250 + $0x110] sm:$0xf]
      %v343 = vld [vmem:[%s250 + $0x114] sm:$0xf]
      %v344 = vld [vmem:[%s250 + $0x118] sm:$0xf]
      %v345 = vld [vmem:[%s250 + $0x11c] sm:$0xf]
      %v346 = vld [vmem:[%s250 + $0x120] sm:$0xf]
      %v347 = vld [vmem:[%s250 + $0x124] sm:$0xf]
      %v348 = vld [vmem:[%s250 + $0x128] sm:$0xf]
      %v349 = vld [vmem:[%s250 + $0x12c] sm:$0xf]
      %v350 = vld [vmem:[%s250 + $0x130] sm:$0xf]
      %v351 = vld [vmem:[%s250 + $0x134] sm:$0xf]
      %v352 = vld [vmem:[%s250 + $0x138] sm:$0xf]
      %v353 = vld [vmem:[%s250 + $0x13c] sm:$0xf]
      %v354 = vld [vmem:[%s250 + $0x140] sm:$0xf]
      %v355 = vld [vmem:[%s250 + $0x144] sm:$0xf]
      %v356 = vld [vmem:[%s250 + $0x148] sm:$0xf]
      %v357 = vld [vmem:[%s250 + $0x14c] sm:$0xf]
      %v358 = vld [vmem:[%s250 + $0x150] sm:$0xf]
      %v359 = vld [vmem:[%s250 + $0x154] sm:$0xf]
      %v360 = vld [vmem:[%s250 + $0x158] sm:$0xf]
      %v361 = vld [vmem:[%s250 + $0x15c] sm:$0xf]
      %v362 = vld [vmem:[%s250 + $0x160] sm:$0xf]
      %v363 = vld [vmem:[%s250 + $0x164] sm:$0xf]
      %v364 = vld [vmem:[%s250 + $0x168] sm:$0xf]
      %v365 = vld [vmem:[%s250 + $0x16c] sm:$0xf]
      %v366 = vld [vmem:[%s250 + $0x170] sm:$0xf]
      %v367 = vld [vmem:[%s250 + $0x174] sm:$0xf]
      %v368 = vld [vmem:[%s250 + $0x178] sm:$0xf]
      %v369 = vld [vmem:[%s250 + $0x17c] sm:$0xf]
      %v370 = vld [vmem:[%s250 + $0x180] sm:$0xf]
      %v371 = vld [vmem:[%s250 + $0x184] sm:$0xf]
      %v372 = vld [vmem:[%s250 + $0x188] sm:$0xf]
      %v373 = vld [vmem:[%s250 + $0x18c] sm:$0xf]
      %v374 = vld [vmem:[%s250 + $0x190] sm:$0xf]
      %v375 = vld [vmem:[%s250 + $0x194] sm:$0xf]
      %v376 = vld [vmem:[%s250 + $0x198] sm:$0xf]
      %v377 = vld [vmem:[%s250 + $0x19c] sm:$0xf]
      %v378 = vld [vmem:[%s250 + $0x1a0] sm:$0xf]
      %v379 = vld [vmem:[%s250 + $0x1a4] sm:$0xf]
      %v380 = vld [vmem:[%s250 + $0x1a8] sm:$0xf]
      %v381 = vld [vmem:[%s250 + $0x1ac] sm:$0xf]
      %v382 = vld [vmem:[%s250 + $0x1b0] sm:$0xf]
      %v383 = vld [vmem:[%s250 + $0x1b4] sm:$0xf]
      %v384 = vld [vmem:[%s250 + $0x1b8] sm:$0xf]
      %v385 = vld [vmem:[%s250 + $0x1bc] sm:$0xf]
      %v386 = vld [vmem:[%s250 + $0x1c0] sm:$0xf]
      %v387 = vld [vmem:[%s250 + $0x1c4] sm:$0xf]
      %v388 = vld [vmem:[%s250 + $0x1c8] sm:$0xf]
      %v389 = vld [vmem:[%s250 + $0x1cc] sm:$0xf]
      %v390 = vld [vmem:[%s250 + $0x1d0] sm:$0xf]
      %v391 = vld [vmem:[%s250 + $0x1d4] sm:$0xf]
      %v392 = vld [vmem:[%s250 + $0x1d8] sm:$0xf]
      %v393 = vld [vmem:[%s250 + $0x1dc] sm:$0xf]
      %v394 = vld [vmem:[%s250 + $0x1e0] sm:$0xf]
      %v395 = vld [vmem:[%s250 + $0x1e4] sm:$0xf]
      %v396 = vld [vmem:[%s250 + $0x1e8] sm:$0xf]
      %v397 = vld [vmem:[%s250 + $0x1ec] sm:$0xf]
      %v398 = vld [vmem:[%s250 + $0x1f0] sm:$0xf]
      %v399 = vld [vmem:[%s250 + $0x1f4] sm:$0xf]
      %v400 = vld [vmem:[%s250 + $0x1f8] sm:$0xf]
      %v401 = vld [vmem:[%s250 + $0x1fc] sm:$0xf]
      %v402 = vld [vmem:[%s250 + $0x200] sm:$0xf]
      %v403 = vld [vmem:[%s250 + $0x204] sm:$0xf]
      %v404 = vld [vmem:[%s250 + $0x208] sm:$0xf]
      %v405 = vld [vmem:[%s250 + $0x20c] sm:$0xf]
      %v406 = vld [vmem:[%s250 + $0x210] sm:$0xf]
      %v407 = vld [vmem:[%s250 + $0x214] sm:$0xf]
      %v408 = vld [vmem:[%s250 + $0x218] sm:$0xf]
      %v409 = vld [vmem:[%s250 + $0x21c] sm:$0xf]
      %v410 = vld [vmem:[%s250 + $0x220] sm:$0xf]
      %v411 = vld [vmem:[%s250 + $0x224] sm:$0xf]
      %v412 = vld [vmem:[%s250 + $0x228] sm:$0xf]
      %v413 = vld [vmem:[%s250 + $0x22c] sm:$0xf]
      %v414 = vld [vmem:[%s250 + $0x230] sm:$0xf]
      %v415 = vld [vmem:[%s250 + $0x234] sm:$0xf]
      %v416 = vld [vmem:[%s250 + $0x238] sm:$0xf]
      %v417 = vld [vmem:[%s250 + $0x23c] sm:$0xf]
      %v418 = vld [vmem:[%s250 + $0x240] sm:$0xf]
      %v419 = vld [vmem:[%s250 + $0x244] sm:$0xf]
      %v420 = vld [vmem:[%s250 + $0x248] sm:$0xf]
      %v421 = vld [vmem:[%s250 + $0x24c] sm:$0xf]
      %v422 = vld [vmem:[%s250 + $0x250] sm:$0xf]
      %v423 = vld [vmem:[%s250 + $0x254] sm:$0xf]
      %v424 = vld [vmem:[%s250 + $0x258] sm:$0xf]
      %v425 = vld [vmem:[%s250 + $0x25c] sm:$0xf]
      %v426 = vld [vmem:[%s250 + $0x260] sm:$0xf]
      %v427 = vld [vmem:[%s250 + $0x264] sm:$0xf]
      %v428 = vld [vmem:[%s250 + $0x268] sm:$0xf]
      %v429 = vld [vmem:[%s250 + $0x26c] sm:$0xf]
      %v430 = vld [vmem:[%s250 + $0x270] sm:$0xf]
      %v431 = vld [vmem:[%s250 + $0x274] sm:$0xf]
      %v432 = vld [vmem:[%s250 + $0x278] sm:$0xf]
      %v433 = vld [vmem:[%s250 + $0x27c] sm:$0xf]
      %v434 = vld [vmem:[%s250 + $0x280] sm:$0xf]
      %v435 = vld [vmem:[%s250 + $0x284] sm:$0xf]
      %v436 = vld [vmem:[%s250 + $0x288] sm:$0xf]
      %v437 = vld [vmem:[%s250 + $0x28c] sm:$0xf]
      %v438 = vld [vmem:[%s250 + $0x290] sm:$0xf]
      %v439 = vld [vmem:[%s250 + $0x294] sm:$0xf]
      %v440 = vld [vmem:[%s250 + $0x298] sm:$0xf]
      %v441 = vld [vmem:[%s250 + $0x29c] sm:$0xf]
      %v442 = vld [vmem:[%s250 + $0x2a0] sm:$0xf]
      %v443 = vld [vmem:[%s250 + $0x2a4] sm:$0xf]
      %v444 = vld [vmem:[%s250 + $0x2a8] sm:$0xf]
      %v445 = vld [vmem:[%s250 + $0x2ac] sm:$0xf]
      %v446 = vld [vmem:[%s250 + $0x2b0] sm:$0xf]
      %v447 = vld [vmem:[%s250 + $0x2b4] sm:$0xf]
      %v448 = vld [vmem:[%s250 + $0x2b8] sm:$0xf]
      %v449 = vld [vmem:[%s250 + $0x2bc] sm:$0xf]
      %v450 = vld [vmem:[%s250 + $0x2c0] sm:$0xf]
      %v451 = vld [vmem:[%s250 + $0x2c4] sm:$0xf]
      %v452 = vld [vmem:[%s250 + $0x2c8] sm:$0xf]
      %v453 = vld [vmem:[%s250 + $0x2cc] sm:$0xf]
      %v454 = vld [vmem:[%s250 + $0x2d0] sm:$0xf]
      %v455 = vld [vmem:[%s250 + $0x2d4] sm:$0xf]
      %v456 = vld [vmem:[%s250 + $0x2d8] sm:$0xf]
      %v457 = vld [vmem:[%s250 + $0x2dc] sm:$0xf]
      %v458 = vld [vmem:[%s250 + $0x2e0] sm:$0xf]
      %v459 = vld [vmem:[%s250 + $0x2e4] sm:$0xf]
      %v460 = vld [vmem:[%s250 + $0x2e8] sm:$0xf]
      %v461 = vld [vmem:[%s250 + $0x2ec] sm:$0xf]
      %v462 = vld [vmem:[%s250 + $0x2f0] sm:$0xf]
      %v463 = vld [vmem:[%s250 + $0x2f4] sm:$0xf]
      %v464 = vld [vmem:[%s250 + $0x2f8] sm:$0xf]
      %v465 = vld [vmem:[%s250 + $0x2fc] sm:$0xf]
      %v466 = vld [vmem:[%s250 + $0x300] sm:$0xf]
      %v467 = vld [vmem:[%s250 + $0x304] sm:$0xf]
      %v468 = vld [vmem:[%s250 + $0x308] sm:$0xf]
      %v469 = vld [vmem:[%s250 + $0x30c] sm:$0xf]
      %v470 = vld [vmem:[%s250 + $0x310] sm:$0xf]
      %v471 = vld [vmem:[%s250 + $0x314] sm:$0xf]
      %v472 = vld [vmem:[%s250 + $0x318] sm:$0xf]
      %v473 = vld [vmem:[%s250 + $0x31c] sm:$0xf]
      %v474 = vld [vmem:[%s250 + $0x320] sm:$0xf]
      %v475 = vld [vmem:[%s250 + $0x324] sm:$0xf]
      %v476 = vld [vmem:[%s250 + $0x328] sm:$0xf]
      %v477 = vld [vmem:[%s250 + $0x32c] sm:$0xf]
      %v478 = vld [vmem:[%s250 + $0x330] sm:$0xf]
      %v479 = vld [vmem:[%s250 + $0x334] sm:$0xf]
      %v480 = vld [vmem:[%s250 + $0x338] sm:$0xf]
      %v481 = vld [vmem:[%s250 + $0x33c] sm:$0xf]
      %v482 = vld [vmem:[%s250 + $0x340] sm:$0xf]
      %v483 = vld [vmem:[%s250 + $0x344] sm:$0xf]
      %v484 = vld [vmem:[%s250 + $0x348] sm:$0xf]
      %v485 = vld [vmem:[%s250 + $0x34c] sm:$0xf]
      %v486 = vld [vmem:[%s250 + $0x350] sm:$0xf]
      %v487 = vld [vmem:[%s250 + $0x354] sm:$0xf]
      %v488 = vld [vmem:[%s250 + $0x358] sm:$0xf]
      %v489 = vld [vmem:[%s250 + $0x35c] sm:$0xf]
      %v490 = vld [vmem:[%s250 + $0x360] sm:$0xf]
      %v491 = vld [vmem:[%s250 + $0x364] sm:$0xf]
      %v492 = vld [vmem:[%s250 + $0x368] sm:$0xf]
      %v493 = vld [vmem:[%s250 + $0x36c] sm:$0xf]
      %v494 = vld [vmem:[%s250 + $0x370] sm:$0xf]
      %v495 = vld [vmem:[%s250 + $0x374] sm:$0xf]
      %v496 = vld [vmem:[%s250 + $0x378] sm:$0xf]
      %v497 = vld [vmem:[%s250 + $0x37c] sm:$0xf]
      %v498 = vld [vmem:[%s250 + $0x380] sm:$0xf]
      %v499 = vld [vmem:[%s250 + $0x384] sm:$0xf]
      %v500 = vld [vmem:[%s250 + $0x388] sm:$0xf]
      %v501 = vld [vmem:[%s250 + $0x38c] sm:$0xf]
      %v502 = vld [vmem:[%s250 + $0x390] sm:$0xf]
      %v503 = vld [vmem:[%s250 + $0x394] sm:$0xf]
      %v504 = vld [vmem:[%s250 + $0x398] sm:$0xf]
      %v505 = vld [vmem:[%s250 + $0x39c] sm:$0xf]
      %v506 = vld [vmem:[%s250 + $0x3a0] sm:$0xf]
      %v507 = vld [vmem:[%s250 + $0x3a4] sm:$0xf]
      %v508 = vld [vmem:[%s250 + $0x3a8] sm:$0xf]
      %v509 = vld [vmem:[%s250 + $0x3ac] sm:$0xf]
      %v510 = vld [vmem:[%s250 + $0x3b0] sm:$0xf]
      %v511 = vld [vmem:[%s250 + $0x3b4] sm:$0xf]
      %v512 = vld [vmem:[%s250 + $0x3b8] sm:$0xf]
      %v513 = vld [vmem:[%s250 + $0x3bc] sm:$0xf]
      %v514 = vld [vmem:[%s250 + $0x3c0] sm:$0xf]
      %v515 = vld [vmem:[%s250 + $0x3c4] sm:$0xf]
      %v516 = vld [vmem:[%s250 + $0x3c8] sm:$0xf]
      %v517 = vld [vmem:[%s250 + $0x3cc] sm:$0xf]
      %v518 = vld [vmem:[%s250 + $0x3d0] sm:$0xf]
      %v519 = vld [vmem:[%s250 + $0x3d4] sm:$0xf]
      %v520 = vld [vmem:[%s250 + $0x3d8] sm:$0xf]
      %v521 = vld [vmem:[%s250 + $0x3dc] sm:$0xf]
      %v522 = vld [vmem:[%s250 + $0x3e0] sm:$0xf]
      %v523 = vld [vmem:[%s250 + $0x3e4] sm:$0xf]
      %v524 = vld [vmem:[%s250 + $0x3e8] sm:$0xf]
      %v525 = vld [vmem:[%s250 + $0x3ec] sm:$0xf]
      %v526 = vld [vmem:[%s250 + $0x3f0] sm:$0xf]
      %v527 = vld [vmem:[%s250 + $0x3f4] sm:$0xf]
      %v528 = vld [vmem:[%s250 + $0x3f8] sm:$0xf]
      %v529 = vld [vmem:[%s250 + $0x3fc] sm:$0xf]
      %v530 = vld [vmem:[%s250 + $0x400] sm:$0xf]
      %v531 = vld [vmem:[%s250 + $0x404] sm:$0xf]
      %v532 = vld [vmem:[%s250 + $0x408] sm:$0xf]
      %v533 = vld [vmem:[%s250 + $0x40c] sm:$0xf]
      %v534 = vld [vmem:[%s250 + $0x410] sm:$0xf]
      %v535 = vld [vmem:[%s250 + $0x414] sm:$0xf]
      %v536 = vld [vmem:[%s250 + $0x418] sm:$0xf]
      %v537 = vld [vmem:[%s250 + $0x41c] sm:$0xf]
      %v538 = vld [vmem:[%s250 + $0x420] sm:$0xf]
      %v539 = vld [vmem:[%s250 + $0x424] sm:$0xf]
      %v540 = vld [vmem:[%s250 + $0x428] sm:$0xf]
      %v541 = vld [vmem:[%s250 + $0x42c] sm:$0xf]
      %v542 = vld [vmem:[%s250 + $0x430] sm:$0xf]
      %v543 = vld [vmem:[%s250 + $0x434] sm:$0xf]
      %v544 = vld [vmem:[%s250 + $0x438] sm:$0xf]
      %v545 = vld [vmem:[%s250 + $0x43c] sm:$0xf]
      %v546 = vld [vmem:[%s250 + $0x440] sm:$0xf]
      %v547 = vld [vmem:[%s250 + $0x444] sm:$0xf]
      %v548 = vld [vmem:[%s250 + $0x448] sm:$0xf]
      %v549 = vld [vmem:[%s250 + $0x44c] sm:$0xf]
      %v550 = vld [vmem:[%s250 + $0x450] sm:$0xf]
      %v551 = vld [vmem:[%s250 + $0x454] sm:$0xf]
      %v552 = vld [vmem:[%s250 + $0x458] sm:$0xf]
      %v553 = vld [vmem:[%s250 + $0x45c] sm:$0xf]
      %v554 = vld [vmem:[%s250 + $0x460] sm:$0xf]
      %v555 = vld [vmem:[%s250 + $0x464] sm:$0xf]
      %v556 = vld [vmem:[%s250 + $0x468] sm:$0xf]
      %v557 = vld [vmem:[%s250 + $0x46c] sm:$0xf]
      %v558 = vld [vmem:[%s250 + $0x470] sm:$0xf]
      %v559 = vld [vmem:[%s250 + $0x474] sm:$0xf]
      %v560 = vld [vmem:[%s250 + $0x478] sm:$0xf]
      %v561 = vld [vmem:[%s250 + $0x47c] sm:$0xf]
      %v562 = vld [vmem:[%s250 + $0x480] sm:$0xf]
      %v563 = vld [vmem:[%s250 + $0x484] sm:$0xf]
      %v564 = vld [vmem:[%s250 + $0x488] sm:$0xf]
      %v565 = vld [vmem:[%s250 + $0x48c] sm:$0xf]
      %v566 = vld [vmem:[%s250 + $0x490] sm:$0xf]
      %v567 = vld [vmem:[%s250 + $0x494] sm:$0xf]
      %v568 = vld [vmem:[%s250 + $0x498] sm:$0xf]
      %v569 = vld [vmem:[%s250 + $0x49c] sm:$0xf]
      %v570 = vld [vmem:[%s250 + $0x4a0] sm:$0xf]
      %v571 = vld [vmem:[%s250 + $0x4a4] sm:$0xf]
      %v572 = vld [vmem:[%s250 + $0x4a8] sm:$0xf]
      %v573 = vld [vmem:[%s250 + $0x4ac] sm:$0xf]
      %v574 = vld [vmem:[%s250 + $0x4b0] sm:$0xf]
      %v575 = vld [vmem:[%s250 + $0x4b4] sm:$0xf]
      %v576 = vld [vmem:[%s250 + $0x4b8] sm:$0xf]
      %v577 = vld [vmem:[%s250 + $0x4bc] sm:$0xf]
      %v578 = vld [vmem:[%s250 + $0x4c0] sm:$0xf]
      %v579 = vld [vmem:[%s250 + $0x4c4] sm:$0xf]
      %v580 = vld [vmem:[%s250 + $0x4c8] sm:$0xf]
      %v581 = vld [vmem:[%s250 + $0x4cc] sm:$0xf]
      %v582 = vld [vmem:[%s250 + $0x4d0] sm:$0xf]
      %v583 = vld [vmem:[%s250 + $0x4d4] sm:$0xf]
      %v584 = vld [vmem:[%s250 + $0x4d8] sm:$0xf]
      %v585 = vld [vmem:[%s250 + $0x4dc] sm:$0xf]
      %v586 = vld [vmem:[%s250 + $0x4e0] sm:$0xf]
      %v587 = vld [vmem:[%s250 + $0x4e4] sm:$0xf]
      %v588 = vld [vmem:[%s250 + $0x4e8] sm:$0xf]
      %v589 = vld [vmem:[%s250 + $0x4ec] sm:$0xf]
      %v590 = vld [vmem:[%s250 + $0x4f0] sm:$0xf]
      %v591 = vld [vmem:[%s250 + $0x4f4] sm:$0xf]
      %v592 = vld [vmem:[%s250 + $0x4f8] sm:$0xf]
      %v593 = vld [vmem:[%s250 + $0x4fc] sm:$0xf]
      %v594 = vld [vmem:[%s250 + $0x500] sm:$0xf]
      %v595 = vld [vmem:[%s250 + $0x504] sm:$0xf]
      %v596 = vld [vmem:[%s250 + $0x508] sm:$0xf]
      %v597 = vld [vmem:[%s250 + $0x50c] sm:$0xf]
      %v598 = vld [vmem:[%s250 + $0x510] sm:$0xf]
      %v599 = vld [vmem:[%s250 + $0x514] sm:$0xf]
      %v600 = vld [vmem:[%s250 + $0x518] sm:$0xf]
      %v601 = vld [vmem:[%s250 + $0x51c] sm:$0xf]
      %v602 = vld [vmem:[%s255] sm:$0xf]
      %v603 = vld [vmem:[%s255 + $0x4] sm:$0xf]
      %v604 = vld [vmem:[%s255 + $0x8] sm:$0xf]
      %v605 = vld [vmem:[%s255 + $0xc] sm:$0xf]
      %v606 = vld [vmem:[%s255 + $0x10] sm:$0xf]
      %v607 = vld [vmem:[%s255 + $0x14] sm:$0xf]
      %v608 = vld [vmem:[%s255 + $0x18] sm:$0xf]
      %v609 = vld [vmem:[%s255 + $0x1c] sm:$0xf]
      %v610 = vld [vmem:[%s255 + $0x20] sm:$0xf]
      %v611 = vld [vmem:[%s255 + $0x24] sm:$0xf]
      %v612 = vld [vmem:[%s255 + $0x28] sm:$0xf]
      %v613 = vld [vmem:[%s255 + $0x2c] sm:$0xf]
      %v614 = vld [vmem:[%s255 + $0x30] sm:$0xf]
      %v615 = vld [vmem:[%s255 + $0x34] sm:$0xf]
      %v616 = vld [vmem:[%s255 + $0x38] sm:$0xf]
      %v617 = vld [vmem:[%s255 + $0x3c] sm:$0xf]
      %v618 = vld [vmem:[%s258] sm:$0x1]
      %v620 = vperm.slane %v618, 0
      %v950 = vunpack.c.l.b16 %v274
      %v951 = vunpack.c.l.b16 %v275
      %v952 = vunpack.c.l.b16 %v276
      %v953 = vunpack.c.l.b16 %v277
      %v954 = vunpack.c.l.b16 %v278
      %v955 = vunpack.c.l.b16 %v279
      %v956 = vunpack.c.l.b16 %v280
      %v957 = vunpack.c.l.b16 %v281
      %v958 = vunpack.c.l.b16 %v282
      %v959 = vunpack.c.l.b16 %v283
      %v960 = vunpack.c.l.b16 %v284
      %v961 = vunpack.c.l.b16 %v285
      %v962 = vunpack.c.l.b16 %v286
      %v963 = vunpack.c.l.b16 %v287
      %v964 = vunpack.c.l.b16 %v288
      %v965 = vunpack.c.l.b16 %v289
      %v966 = vunpack.c.l.b16 %v290
      %v967 = vunpack.c.l.b16 %v291
      %v968 = vunpack.c.l.b16 %v292
      %v969 = vunpack.c.l.b16 %v293
      %v970 = vunpack.c.l.b16 %v294
      %v971 = vunpack.c.l.b16 %v295
      %v972 = vunpack.c.l.b16 %v296
      %v973 = vunpack.c.l.b16 %v297
      %v974 = vunpack.c.l.b16 %v298
      %v975 = vunpack.c.l.b16 %v299
      %v976 = vunpack.c.l.b16 %v300
      %v977 = vunpack.c.l.b16 %v301
      %v978 = vunpack.c.l.b16 %v302
      %v979 = vunpack.c.l.b16 %v303
      %v980 = vunpack.c.l.b16 %v304
      %v981 = vunpack.c.l.b16 %v305
      %v982 = vunpack.c.l.b16 %v306
      %v983 = vunpack.c.l.b16 %v307
      %v984 = vunpack.c.l.b16 %v308
      %v985 = vunpack.c.l.b16 %v309
      %v986 = vunpack.c.l.b16 %v310
      %v987 = vunpack.c.l.b16 %v311
      %v988 = vunpack.c.l.b16 %v312
      %v989 = vunpack.c.l.b16 %v313
      %v990 = vunpack.c.l.b16 %v314
      %v991 = vunpack.c.l.b16 %v315
      %v992 = vunpack.c.l.b16 %v316
      %v993 = vunpack.c.l.b16 %v317
      %v994 = vunpack.c.l.b16 %v318
      %v995 = vunpack.c.l.b16 %v319
      %v996 = vunpack.c.l.b16 %v320
      %v997 = vunpack.c.l.b16 %v321
      %v998 = vunpack.c.l.b16 %v322
      %v999 = vunpack.c.l.b16 %v323
      %v1000 = vunpack.c.l.b16 %v324
      %v1001 = vunpack.c.l.b16 %v325
      %v1002 = vunpack.c.l.b16 %v326
      %v1003 = vunpack.c.l.b16 %v327
      %v1004 = vunpack.c.l.b16 %v328
      %v1005 = vunpack.c.l.b16 %v329
      %v1006 = vunpack.c.l.b16 %v330
      %v1007 = vunpack.c.l.b16 %v331
      %v1008 = vunpack.c.l.b16 %v332
      %v1009 = vunpack.c.l.b16 %v333
      %v1010 = vunpack.c.l.b16 %v334
      %v1011 = vunpack.c.l.b16 %v335
      %v1012 = vunpack.c.l.b16 %v336
      %v1013 = vunpack.c.l.b16 %v337
      %v1014 = vunpack.c.l.b16 %v338
      %v1015 = vunpack.c.l.b16 %v339
      %v1016 = vunpack.c.l.b16 %v340
      %v1017 = vunpack.c.l.b16 %v341
      %v1018 = vunpack.c.l.b16 %v342
      %v1019 = vunpack.c.l.b16 %v343
      %v1020 = vunpack.c.l.b16 %v344
      %v1021 = vunpack.c.l.b16 %v345
      %v1022 = vunpack.c.l.b16 %v346
      %v1023 = vunpack.c.l.b16 %v347
      %v1024 = vunpack.c.l.b16 %v348
      %v1025 = vunpack.c.l.b16 %v349
      %v1026 = vunpack.c.l.b16 %v350
      %v1027 = vunpack.c.l.b16 %v351
      %v1028 = vunpack.c.l.b16 %v352
      %v1029 = vunpack.c.l.b16 %v353
      %v1030 = vunpack.c.l.b16 %v354
      %v1031 = vunpack.c.l.b16 %v355
      %v1032 = vunpack.c.l.b16 %v356
      %v1033 = vunpack.c.l.b16 %v357
      %v1034 = vunpack.c.l.b16 %v358
      %v1035 = vunpack.c.l.b16 %v359
      %v1036 = vunpack.c.l.b16 %v360
      %v1037 = vunpack.c.l.b16 %v361
      %v1038 = vunpack.c.l.b16 %v362
      %v1039 = vunpack.c.l.b16 %v363
      %v1040 = vunpack.c.l.b16 %v364
      %v1041 = vunpack.c.l.b16 %v365
      %v1042 = vunpack.c.l.b16 %v366
      %v1043 = vunpack.c.l.b16 %v367
      %v1044 = vunpack.c.l.b16 %v368
      %v1045 = vunpack.c.l.b16 %v369
      %v1046 = vunpack.c.l.b16 %v370
      %v1047 = vunpack.c.l.b16 %v371
      %v1048 = vunpack.c.l.b16 %v372
      %v1049 = vunpack.c.l.b16 %v373
      %v1050 = vunpack.c.l.b16 %v374
      %v1051 = vunpack.c.l.b16 %v375
      %v1052 = vunpack.c.l.b16 %v376
      %v1053 = vunpack.c.l.b16 %v377
      %v1054 = vunpack.c.l.b16 %v378
      %v1055 = vunpack.c.l.b16 %v379
      %v1056 = vunpack.c.l.b16 %v380
      %v1057 = vunpack.c.l.b16 %v381
      %v1058 = vunpack.c.l.b16 %v382
      %v1059 = vunpack.c.l.b16 %v383
      %v1060 = vunpack.c.l.b16 %v384
      %v1061 = vunpack.c.l.b16 %v385
      %v1062 = vunpack.c.l.b16 %v386
      %v1063 = vunpack.c.l.b16 %v387
      %v1064 = vunpack.c.l.b16 %v388
      %v1065 = vunpack.c.l.b16 %v389
      %v1066 = vunpack.c.l.b16 %v390
      %v1067 = vunpack.c.l.b16 %v391
      %v1068 = vunpack.c.l.b16 %v392
      %v1069 = vunpack.c.l.b16 %v393
      %v1070 = vunpack.c.l.b16 %v394
      %v1071 = vunpack.c.l.b16 %v395
      %v1072 = vunpack.c.l.b16 %v396
      %v1073 = vunpack.c.l.b16 %v397
      %v1074 = vunpack.c.l.b16 %v398
      %v1075 = vunpack.c.l.b16 %v399
      %v1076 = vunpack.c.l.b16 %v400
      %v1077 = vunpack.c.l.b16 %v401
      %v1078 = vunpack.c.l.b16 %v402
      %v1079 = vunpack.c.l.b16 %v403
      %v1080 = vunpack.c.l.b16 %v404
      %v1081 = vunpack.c.l.b16 %v405
      %v1082 = vunpack.c.l.b16 %v406
      %v1083 = vunpack.c.l.b16 %v407
      %v1084 = vunpack.c.l.b16 %v408
      %v1085 = vunpack.c.l.b16 %v409
      %v1086 = vunpack.c.l.b16 %v410
      %v1087 = vunpack.c.l.b16 %v411
      %v1088 = vunpack.c.l.b16 %v412
      %v1089 = vunpack.c.l.b16 %v413
      %v1090 = vunpack.c.l.b16 %v414
      %v1091 = vunpack.c.l.b16 %v415
      %v1092 = vunpack.c.l.b16 %v416
      %v1093 = vunpack.c.l.b16 %v417
      %v1094 = vunpack.c.l.b16 %v418
      %v1095 = vunpack.c.l.b16 %v419
      %v1096 = vunpack.c.l.b16 %v420
      %v1097 = vunpack.c.l.b16 %v421
      %v1098 = vunpack.c.l.b16 %v422
      %v1099 = vunpack.c.l.b16 %v423
      %v1100 = vunpack.c.l.b16 %v424
      %v1101 = vunpack.c.l.b16 %v425
      %v1102 = vunpack.c.l.b16 %v426
      %v1103 = vunpack.c.l.b16 %v427
      %v1104 = vunpack.c.l.b16 %v428
      %v1105 = vunpack.c.l.b16 %v429
      %v1106 = vunpack.c.l.b16 %v430
      %v1107 = vunpack.c.l.b16 %v431
      %v1108 = vunpack.c.l.b16 %v432
      %v1109 = vunpack.c.l.b16 %v433
      %v1110 = vunpack.c.l.b16 %v434
      %v1111 = vunpack.c.l.b16 %v435
      %v1112 = vunpack.c.l.b16 %v436
      %v1113 = vunpack.c.l.b16 %v437
      %v1114 = vunpack.c.l.b16 %v438
      %v1115 = vunpack.c.l.b16 %v439
      %v1116 = vunpack.c.l.b16 %v440
      %v1117 = vunpack.c.l.b16 %v441
      %v1118 = vunpack.c.l.b16 %v442
      %v1119 = vunpack.c.l.b16 %v443
      %v1120 = vunpack.c.l.b16 %v444
      %v1121 = vunpack.c.l.b16 %v445
      %v1122 = vunpack.c.l.b16 %v446
      %v1123 = vunpack.c.l.b16 %v447
      %v1124 = vunpack.c.l.b16 %v448
      %v1125 = vunpack.c.l.b16 %v449
      %v1126 = vunpack.c.l.b16 %v450
      %v1127 = vunpack.c.l.b16 %v451
      %v1128 = vunpack.c.l.b16 %v452
      %v1129 = vunpack.c.l.b16 %v453
      %v1130 = vunpack.c.l.b16 %v454
      %v1131 = vunpack.c.l.b16 %v455
      %v1132 = vunpack.c.l.b16 %v456
      %v1133 = vunpack.c.l.b16 %v457
      %v1134 = vunpack.c.l.b16 %v458
      %v1135 = vunpack.c.l.b16 %v459
      %v1136 = vunpack.c.l.b16 %v460
      %v1137 = vunpack.c.l.b16 %v461
      %v1138 = vunpack.c.l.b16 %v462
      %v1139 = vunpack.c.l.b16 %v463
      %v1140 = vunpack.c.l.b16 %v464
      %v1141 = vunpack.c.l.b16 %v465
      %v1142 = vunpack.c.l.b16 %v466
      %v1143 = vunpack.c.l.b16 %v467
      %v1144 = vunpack.c.l.b16 %v468
      %v1145 = vunpack.c.l.b16 %v469
      %v1146 = vunpack.c.l.b16 %v470
      %v1147 = vunpack.c.l.b16 %v471
      %v1148 = vunpack.c.l.b16 %v472
      %v1149 = vunpack.c.l.b16 %v473
      %v1150 = vunpack.c.l.b16 %v474
      %v1151 = vunpack.c.l.b16 %v475
      %v1152 = vunpack.c.l.b16 %v476
      %v1153 = vunpack.c.l.b16 %v477
      %v1154 = vunpack.c.l.b16 %v478
      %v1155 = vunpack.c.l.b16 %v479
      %v1156 = vunpack.c.l.b16 %v480
      %v1157 = vunpack.c.l.b16 %v481
      %v1158 = vunpack.c.l.b16 %v482
      %v1159 = vunpack.c.l.b16 %v483
      %v1160 = vunpack.c.l.b16 %v484
      %v1161 = vunpack.c.l.b16 %v485
      %v1162 = vunpack.c.l.b16 %v486
      %v1163 = vunpack.c.l.b16 %v487
      %v1164 = vunpack.c.l.b16 %v488
      %v1165 = vunpack.c.l.b16 %v489
      %v1166 = vunpack.c.l.b16 %v490
      %v1167 = vunpack.c.l.b16 %v491
      %v1168 = vunpack.c.l.b16 %v492
      %v1169 = vunpack.c.l.b16 %v493
      %v1170 = vunpack.c.l.b16 %v494
      %v1171 = vunpack.c.l.b16 %v495
      %v1172 = vunpack.c.l.b16 %v496
      %v1173 = vunpack.c.l.b16 %v497
      %v1174 = vunpack.c.l.b16 %v498
      %v1175 = vunpack.c.l.b16 %v499
      %v1176 = vunpack.c.l.b16 %v500
      %v1177 = vunpack.c.l.b16 %v501
      %v1178 = vunpack.c.l.b16 %v502
      %v1179 = vunpack.c.l.b16 %v503
      %v1180 = vunpack.c.l.b16 %v504
      %v1181 = vunpack.c.l.b16 %v505
      %v1182 = vunpack.c.l.b16 %v506
      %v1183 = vunpack.c.l.b16 %v507
      %v1184 = vunpack.c.l.b16 %v508
      %v1185 = vunpack.c.l.b16 %v509
      %v1186 = vunpack.c.l.b16 %v510
      %v1187 = vunpack.c.l.b16 %v511
      %v1188 = vunpack.c.l.b16 %v512
      %v1189 = vunpack.c.l.b16 %v513
      %v1190 = vunpack.c.l.b16 %v514
      %v1191 = vunpack.c.l.b16 %v515
      %v1192 = vunpack.c.l.b16 %v516
      %v1193 = vunpack.c.l.b16 %v517
      %v1194 = vunpack.c.l.b16 %v518
      %v1195 = vunpack.c.l.b16 %v519
      %v1196 = vunpack.c.l.b16 %v520
      %v1197 = vunpack.c.l.b16 %v521
      %v1198 = vunpack.c.l.b16 %v522
      %v1199 = vunpack.c.l.b16 %v523
      %v1200 = vunpack.c.l.b16 %v524
      %v1201 = vunpack.c.l.b16 %v525
      %v1202 = vunpack.c.l.b16 %v526
      %v1203 = vunpack.c.l.b16 %v527
      %v1204 = vunpack.c.l.b16 %v528
      %v1205 = vunpack.c.l.b16 %v529
      %v1206 = vunpack.c.l.b16 %v530
      %v1207 = vunpack.c.l.b16 %v531
      %v1208 = vunpack.c.l.b16 %v532
      %v1209 = vunpack.c.l.b16 %v533
      %v1210 = vunpack.c.l.b16 %v534
      %v1211 = vunpack.c.l.b16 %v535
      %v1212 = vunpack.c.l.b16 %v536
      %v1213 = vunpack.c.l.b16 %v537
      %v1214 = vunpack.c.l.b16 %v538
      %v1215 = vunpack.c.l.b16 %v539
      %v1216 = vunpack.c.l.b16 %v540
      %v1217 = vunpack.c.l.b16 %v541
      %v1218 = vunpack.c.l.b16 %v542
      %v1219 = vunpack.c.l.b16 %v543
      %v1220 = vunpack.c.l.b16 %v544
      %v1221 = vunpack.c.l.b16 %v545
      %v1222 = vunpack.c.l.b16 %v546
      %v1223 = vunpack.c.l.b16 %v547
      %v1224 = vunpack.c.l.b16 %v548
      %v1225 = vunpack.c.l.b16 %v549
      %v1226 = vunpack.c.l.b16 %v550
      %v1227 = vunpack.c.l.b16 %v551
      %v1228 = vunpack.c.l.b16 %v552
      %v1229 = vunpack.c.l.b16 %v553
      %v1230 = vunpack.c.l.b16 %v554
      %v1231 = vunpack.c.l.b16 %v555
      %v1232 = vunpack.c.l.b16 %v556
      %v1233 = vunpack.c.l.b16 %v557
      %v1234 = vunpack.c.l.b16 %v558
      %v1235 = vunpack.c.l.b16 %v559
      %v1236 = vunpack.c.l.b16 %v560
      %v1237 = vunpack.c.l.b16 %v561
      %v1238 = vunpack.c.l.b16 %v562
      %v1239 = vunpack.c.l.b16 %v563
      %v1240 = vunpack.c.l.b16 %v564
      %v1241 = vunpack.c.l.b16 %v565
      %v1242 = vunpack.c.l.b16 %v566
      %v1243 = vunpack.c.l.b16 %v567
      %v1244 = vunpack.c.l.b16 %v568
      %v1245 = vunpack.c.l.b16 %v569
      %v1246 = vunpack.c.l.b16 %v570
      %v1247 = vunpack.c.l.b16 %v571
      %v1248 = vunpack.c.l.b16 %v572
      %v1249 = vunpack.c.l.b16 %v573
      %v1250 = vunpack.c.l.b16 %v574
      %v1251 = vunpack.c.l.b16 %v575
      %v1252 = vunpack.c.l.b16 %v576
      %v1253 = vunpack.c.l.b16 %v577
      %v1254 = vunpack.c.l.b16 %v578
      %v1255 = vunpack.c.l.b16 %v579
      %v1256 = vunpack.c.l.b16 %v580
      %v1257 = vunpack.c.l.b16 %v581
      %v1258 = vunpack.c.l.b16 %v582
      %v1259 = vunpack.c.l.b16 %v583
      %v1260 = vunpack.c.l.b16 %v584
      %v1261 = vunpack.c.l.b16 %v585
      %v1262 = vunpack.c.l.b16 %v586
      %v1263 = vunpack.c.l.b16 %v587
      %v1264 = vunpack.c.l.b16 %v588
      %v1265 = vunpack.c.l.b16 %v589
      %v1266 = vunpack.c.l.b16 %v590
      %v1267 = vunpack.c.l.b16 %v591
      %v1268 = vunpack.c.l.b16 %v592
      %v1269 = vunpack.c.l.b16 %v593
      %v1270 = vunpack.c.l.b16 %v594
      %v1271 = vunpack.c.l.b16 %v595
      %v1272 = vunpack.c.l.b16 %v596
      %v1273 = vunpack.c.l.b16 %v597
      %v1274 = vunpack.c.l.b16 %v598
      %v1275 = vunpack.c.l.b16 %v599
      %v1276 = vunpack.c.l.b16 %v600
      %v1277 = vunpack.c.l.b16 %v601
      %v1278 = vpack.c.b16 %v951, %v950
      %v1279 = vpack.c.b16 %v953, %v952
      %v1280 = vpack.c.b16 %v955, %v954
      %v1281 = vpack.c.b16 %v957, %v956
      %v1282 = vpack.c.b16 %v959, %v958
      %v1283 = vpack.c.b16 %v961, %v960
      %v1284 = vpack.c.b16 %v963, %v962
      %v1285 = vpack.c.b16 %v965, %v964
      %v1286 = vpack.c.b16 %v967, %v966
      %v1287 = vpack.c.b16 %v969, %v968
      %v1288 = vpack.c.b16 %v971, %v970
      %v1289 = vpack.c.b16 %v973, %v972
      %v1290 = vpack.c.b16 %v975, %v974
      %v1291 = vpack.c.b16 %v977, %v976
      %v1292 = vpack.c.b16 %v979, %v978
      %v1293 = vpack.c.b16 %v981, %v980
      %v1294 = vpack.c.b16 %v983, %v982
      %v1295 = vpack.c.b16 %v985, %v984
      %v1296 = vpack.c.b16 %v987, %v986
      %v1297 = vpack.c.b16 %v989, %v988
      %v1298 = vpack.c.b16 %v991, %v990
      %v1299 = vpack.c.b16 %v993, %v992
      %v1300 = vpack.c.b16 %v995, %v994
      %v1301 = vpack.c.b16 %v997, %v996
      %v1302 = vpack.c.b16 %v999, %v998
      %v1303 = vpack.c.b16 %v1001, %v1000
      %v1304 = vpack.c.b16 %v1003, %v1002
      %v1305 = vpack.c.b16 %v1005, %v1004
      %v1306 = vpack.c.b16 %v1007, %v1006
      %v1307 = vpack.c.b16 %v1009, %v1008
      %v1308 = vpack.c.b16 %v1011, %v1010
      %v1309 = vpack.c.b16 %v1013, %v1012
      %v1310 = vpack.c.b16 %v1015, %v1014
      %v1311 = vpack.c.b16 %v1017, %v1016
      %v1312 = vpack.c.b16 %v1019, %v1018
      %v1313 = vpack.c.b16 %v1021, %v1020
      %v1314 = vpack.c.b16 %v1023, %v1022
      %v1315 = vpack.c.b16 %v1025, %v1024
      %v1316 = vpack.c.b16 %v1027, %v1026
      %v1317 = vpack.c.b16 %v1029, %v1028
      %v1318 = vpack.c.b16 %v1031, %v1030
      %v1319 = vpack.c.b16 %v1033, %v1032
      %v1320 = vpack.c.b16 %v1035, %v1034
      %v1321 = vpack.c.b16 %v1037, %v1036
      %v1322 = vpack.c.b16 %v1039, %v1038
      %v1323 = vpack.c.b16 %v1041, %v1040
      %v1324 = vpack.c.b16 %v1043, %v1042
      %v1325 = vpack.c.b16 %v1045, %v1044
      %v1326 = vpack.c.b16 %v1047, %v1046
      %v1327 = vpack.c.b16 %v1049, %v1048
      %v1328 = vpack.c.b16 %v1051, %v1050
      %v1329 = vpack.c.b16 %v1053, %v1052
      %v1330 = vpack.c.b16 %v1055, %v1054
      %v1331 = vpack.c.b16 %v1057, %v1056
      %v1332 = vpack.c.b16 %v1059, %v1058
      %v1333 = vpack.c.b16 %v1061, %v1060
      %v1334 = vpack.c.b16 %v1063, %v1062
      %v1335 = vpack.c.b16 %v1065, %v1064
      %v1336 = vpack.c.b16 %v1067, %v1066
      %v1337 = vpack.c.b16 %v1069, %v1068
      %v1338 = vpack.c.b16 %v1071, %v1070
      %v1339 = vpack.c.b16 %v1073, %v1072
      %v1340 = vpack.c.b16 %v1075, %v1074
      %v1341 = vpack.c.b16 %v1077, %v1076
      %v1342 = vpack.c.b16 %v1079, %v1078
      %v1343 = vpack.c.b16 %v1081, %v1080
      %v1344 = vpack.c.b16 %v1083, %v1082
      %v1345 = vpack.c.b16 %v1085, %v1084
      %v1346 = vpack.c.b16 %v1087, %v1086
      %v1347 = vpack.c.b16 %v1089, %v1088
      %v1348 = vpack.c.b16 %v1091, %v1090
      %v1349 = vpack.c.b16 %v1093, %v1092
      %v1350 = vpack.c.b16 %v1095, %v1094
      %v1351 = vpack.c.b16 %v1097, %v1096
      %v1352 = vpack.c.b16 %v1099, %v1098
      %v1353 = vpack.c.b16 %v1101, %v1100
      %v1354 = vpack.c.b16 %v1103, %v1102
      %v1355 = vpack.c.b16 %v1105, %v1104
      %v1356 = vpack.c.b16 %v1107, %v1106
      %v1357 = vpack.c.b16 %v1109, %v1108
      %v1358 = vpack.c.b16 %v1111, %v1110
      %v1359 = vpack.c.b16 %v1113, %v1112
      %v1360 = vpack.c.b16 %v1115, %v1114
      %v1361 = vpack.c.b16 %v1117, %v1116
      %v1362 = vpack.c.b16 %v1119, %v1118
      %v1363 = vpack.c.b16 %v1121, %v1120
      %v1364 = vpack.c.b16 %v1123, %v1122
      %v1365 = vpack.c.b16 %v1125, %v1124
      %v1366 = vpack.c.b16 %v1127, %v1126
      %v1367 = vpack.c.b16 %v1129, %v1128
      %v1368 = vpack.c.b16 %v1131, %v1130
      %v1369 = vpack.c.b16 %v1133, %v1132
      %v1370 = vpack.c.b16 %v1135, %v1134
      %v1371 = vpack.c.b16 %v1137, %v1136
      %v1372 = vpack.c.b16 %v1139, %v1138
      %v1373 = vpack.c.b16 %v1141, %v1140
      %v1374 = vpack.c.b16 %v1143, %v1142
      %v1375 = vpack.c.b16 %v1145, %v1144
      %v1376 = vpack.c.b16 %v1147, %v1146
      %v1377 = vpack.c.b16 %v1149, %v1148
      %v1378 = vpack.c.b16 %v1151, %v1150
      %v1379 = vpack.c.b16 %v1153, %v1152
      %v1380 = vpack.c.b16 %v1155, %v1154
      %v1381 = vpack.c.b16 %v1157, %v1156
      %v1382 = vpack.c.b16 %v1159, %v1158
      %v1383 = vpack.c.b16 %v1161, %v1160
      %v1384 = vpack.c.b16 %v1163, %v1162
      %v1385 = vpack.c.b16 %v1165, %v1164
      %v1386 = vpack.c.b16 %v1167, %v1166
      %v1387 = vpack.c.b16 %v1169, %v1168
      %v1388 = vpack.c.b16 %v1171, %v1170
      %v1389 = vpack.c.b16 %v1173, %v1172
      %v1390 = vpack.c.b16 %v1175, %v1174
      %v1391 = vpack.c.b16 %v1177, %v1176
      %v1392 = vpack.c.b16 %v1179, %v1178
      %v1393 = vpack.c.b16 %v1181, %v1180
      %v1394 = vpack.c.b16 %v1183, %v1182
      %v1395 = vpack.c.b16 %v1185, %v1184
      %v1396 = vpack.c.b16 %v1187, %v1186
      %v1397 = vpack.c.b16 %v1189, %v1188
      %v1398 = vpack.c.b16 %v1191, %v1190
      %v1399 = vpack.c.b16 %v1193, %v1192
      %v1400 = vpack.c.b16 %v1195, %v1194
      %v1401 = vpack.c.b16 %v1197, %v1196
      %v1402 = vpack.c.b16 %v1199, %v1198
      %v1403 = vpack.c.b16 %v1201, %v1200
      %v1404 = vpack.c.b16 %v1203, %v1202
      %v1405 = vpack.c.b16 %v1205, %v1204
      %v1406 = vpack.c.b16 %v1207, %v1206
      %v1407 = vpack.c.b16 %v1209, %v1208
      %v1408 = vpack.c.b16 %v1211, %v1210
      %v1409 = vpack.c.b16 %v1213, %v1212
      %v1410 = vpack.c.b16 %v1215, %v1214
      %v1411 = vpack.c.b16 %v1217, %v1216
      %v1412 = vpack.c.b16 %v1219, %v1218
      %v1413 = vpack.c.b16 %v1221, %v1220
      %v1414 = vpack.c.b16 %v1223, %v1222
      %v1415 = vpack.c.b16 %v1225, %v1224
      %v1416 = vpack.c.b16 %v1227, %v1226
      %v1417 = vpack.c.b16 %v1229, %v1228
      %v1418 = vpack.c.b16 %v1231, %v1230
      %v1419 = vpack.c.b16 %v1233, %v1232
      %v1420 = vpack.c.b16 %v1235, %v1234
      %v1421 = vpack.c.b16 %v1237, %v1236
      %v1422 = vpack.c.b16 %v1239, %v1238
      %v1423 = vpack.c.b16 %v1241, %v1240
      %v1424 = vpack.c.b16 %v1243, %v1242
      %v1425 = vpack.c.b16 %v1245, %v1244
      %v1426 = vpack.c.b16 %v1247, %v1246
      %v1427 = vpack.c.b16 %v1249, %v1248
      %v1428 = vpack.c.b16 %v1251, %v1250
      %v1429 = vpack.c.b16 %v1253, %v1252
      %v1430 = vpack.c.b16 %v1255, %v1254
      %v1431 = vpack.c.b16 %v1257, %v1256
      %v1432 = vpack.c.b16 %v1259, %v1258
      %v1433 = vpack.c.b16 %v1261, %v1260
      %v1434 = vpack.c.b16 %v1263, %v1262
      %v1435 = vpack.c.b16 %v1265, %v1264
      %v1436 = vpack.c.b16 %v1267, %v1266
      %v1437 = vpack.c.b16 %v1269, %v1268
      %v1438 = vpack.c.b16 %v1271, %v1270
      %v1439 = vpack.c.b16 %v1273, %v1272
      %v1440 = vpack.c.b16 %v1275, %v1274
      %v1441 = vpack.c.b16 %v1277, %v1276
      %v1622 = vunpack.c.l.b16 %v602
      %v1623 = vunpack.c.l.b16 %v603
      %v1624 = vunpack.c.l.b16 %v604
      %v1625 = vunpack.c.l.b16 %v605
      %v1626 = vunpack.c.l.b16 %v606
      %v1627 = vunpack.c.l.b16 %v607
      %v1628 = vunpack.c.l.b16 %v608
      %v1629 = vunpack.c.l.b16 %v609
      %v1630 = vunpack.c.l.b16 %v610
      %v1631 = vunpack.c.l.b16 %v611
      %v1632 = vunpack.c.l.b16 %v612
      %v1633 = vunpack.c.l.b16 %v613
      %v1634 = vunpack.c.l.b16 %v614
      %v1635 = vunpack.c.l.b16 %v615
      %v1636 = vunpack.c.l.b16 %v616
      %v1637 = vunpack.c.l.b16 %v617
      %v1638 = vpack.c.b16 %v1623, %v1622
      %v1639 = vpack.c.b16 %v1625, %v1624
      %v1640 = vpack.c.b16 %v1627, %v1626
      %v1641 = vpack.c.b16 %v1629, %v1628
      %v1642 = vpack.c.b16 %v1631, %v1630
      %v1643 = vpack.c.b16 %v1633, %v1632
      %v1644 = vpack.c.b16 %v1635, %v1634
      %v1645 = vpack.c.b16 %v1637, %v1636
      %1654 = vmatpush.bf16.msra.mxu0 %v1645
      %1655 = vmatpush.bf16.msra.mxu0 %v1644
      %1656 = vmatpush.bf16.msra.mxu0 %v1643
      %1657 = vmatpush.bf16.msra.mxu0 %v1642
      %1658 = vmatpush.bf16.msra.mxu0 %v1641
      %1659 = vmatpush.bf16.msra.mxu0 %v1640
      %1660 = vmatpush.bf16.msra.mxu0 %v1639
      %1661 = vmatpush.bf16.msra.mxu0 %v1638
      %1662 = vmatmul.bf16.gmra.mxu0 %v1278
      %v1663 = vpop.f32.mrf.mxu0
      %v1664 = vadd.f32 %v620, %v1663
      %v1665 = vpop.f32.mrf.mxu0
      %v1666 = vadd.f32 %v620, %v1665
      %1667 = vmatmul.bf16.gmra.mxu0 %v1279
      %v1668 = vpop.f32.mrf.mxu0
      %v1669 = vadd.f32 %v620, %v1668
      %v1670 = vpop.f32.mrf.mxu0
      %v1671 = vadd.f32 %v620, %v1670
      %1672 = vmatmul.bf16.gmra.mxu0 %v1280
      %v1673 = vpop.f32.mrf.mxu0
      %v1674 = vadd.f32 %v620, %v1673
      %v1675 = vpop.f32.mrf.mxu0
      %v1676 = vadd.f32 %v620, %v1675
      %1677 = vmatmul.bf16.gmra.mxu0 %v1281
      %v1678 = vpop.f32.mrf.mxu0
      %v1679 = vadd.f32 %v620, %v1678
      %v1680 = vpop.f32.mrf.mxu0
      %v1681 = vadd.f32 %v620, %v1680
      %1682 = vmatmul.bf16.gmra.mxu0 %v1282
      %v1683 = vpop.f32.mrf.mxu0
      %v1684 = vadd.f32 %v620, %v1683
      %v1685 = vpop.f32.mrf.mxu0
      %v1686 = vadd.f32 %v620, %v1685
      %1687 = vmatmul.bf16.gmra.mxu0 %v1283
      %v1688 = vpop.f32.mrf.mxu0
      %v1689 = vadd.f32 %v620, %v1688
      %v1690 = vpop.f32.mrf.mxu0
      %v1691 = vadd.f32 %v620, %v1690
      %1692 = vmatmul.bf16.gmra.mxu0 %v1284
      %v1693 = vpop.f32.mrf.mxu0
      %v1694 = vadd.f32 %v620, %v1693
      %v1695 = vpop.f32.mrf.mxu0
      %v1696 = vadd.f32 %v620, %v1695
      %1697 = vmatmul.bf16.gmra.mxu0 %v1285
      %v1698 = vpop.f32.mrf.mxu0
      %v1699 = vadd.f32 %v620, %v1698
      %v1700 = vpop.f32.mrf.mxu0
      %v1701 = vadd.f32 %v620, %v1700
      %1702 = vmatmul.bf16.gmra.mxu0 %v1286
      %v1703 = vpop.f32.mrf.mxu0
      %v1704 = vadd.f32 %v620, %v1703
      %v1705 = vpop.f32.mrf.mxu0
      %v1706 = vadd.f32 %v620, %v1705
      %1707 = vmatmul.bf16.gmra.mxu0 %v1287
      %v1708 = vpop.f32.mrf.mxu0
      %v1709 = vadd.f32 %v620, %v1708
      %v1710 = vpop.f32.mrf.mxu0
      %v1711 = vadd.f32 %v620, %v1710
      %1712 = vmatmul.bf16.gmra.mxu0 %v1288
      %v1713 = vpop.f32.mrf.mxu0
      %v1714 = vadd.f32 %v620, %v1713
      %v1715 = vpop.f32.mrf.mxu0
      %v1716 = vadd.f32 %v620, %v1715
      %1717 = vmatmul.bf16.gmra.mxu0 %v1289
      %v1718 = vpop.f32.mrf.mxu0
      %v1719 = vadd.f32 %v620, %v1718
      %v1720 = vpop.f32.mrf.mxu0
      %v1721 = vadd.f32 %v620, %v1720
      %1722 = vmatmul.bf16.gmra.mxu0 %v1290
      %v1723 = vpop.f32.mrf.mxu0
      %v1724 = vadd.f32 %v620, %v1723
      %v1725 = vpop.f32.mrf.mxu0
      %v1726 = vadd.f32 %v620, %v1725
      %1727 = vmatmul.bf16.gmra.mxu0 %v1291
      %v1728 = vpop.f32.mrf.mxu0
      %v1729 = vadd.f32 %v620, %v1728
      %v1730 = vpop.f32.mrf.mxu0
      %v1731 = vadd.f32 %v620, %v1730
      %1732 = vmatmul.bf16.gmra.mxu0 %v1292
      %v1733 = vpop.f32.mrf.mxu0
      %v1734 = vadd.f32 %v620, %v1733
      %v1735 = vpop.f32.mrf.mxu0
      %v1736 = vadd.f32 %v620, %v1735
      %1737 = vmatmul.bf16.gmra.mxu0 %v1293
      %v1738 = vpop.f32.mrf.mxu0
      %v1739 = vadd.f32 %v620, %v1738
      %v1740 = vpop.f32.mrf.mxu0
      %v1741 = vadd.f32 %v620, %v1740
      %1742 = vmatmul.bf16.gmra.mxu0 %v1294
      %v1743 = vpop.f32.mrf.mxu0
      %v1744 = vadd.f32 %v620, %v1743
      %v1745 = vpop.f32.mrf.mxu0
      %v1746 = vadd.f32 %v620, %v1745
      %1747 = vmatmul.bf16.gmra.mxu0 %v1295
      %v1748 = vpop.f32.mrf.mxu0
      %v1749 = vadd.f32 %v620, %v1748
      %v1750 = vpop.f32.mrf.mxu0
      %v1751 = vadd.f32 %v620, %v1750
      %1752 = vmatmul.bf16.gmra.mxu0 %v1296
      %v1753 = vpop.f32.mrf.mxu0
      %v1754 = vadd.f32 %v620, %v1753
      %v1755 = vpop.f32.mrf.mxu0
      %v1756 = vadd.f32 %v620, %v1755
      %1757 = vmatmul.bf16.gmra.mxu0 %v1297
      %v1758 = vpop.f32.mrf.mxu0
      %v1759 = vadd.f32 %v620, %v1758
      %v1760 = vpop.f32.mrf.mxu0
      %v1761 = vadd.f32 %v620, %v1760
      %1762 = vmatmul.bf16.gmra.mxu0 %v1298
      %v1763 = vpop.f32.mrf.mxu0
      %v1764 = vadd.f32 %v620, %v1763
      %v1765 = vpop.f32.mrf.mxu0
      %v1766 = vadd.f32 %v620, %v1765
      %1767 = vmatmul.bf16.gmra.mxu0 %v1299
      %v1768 = vpop.f32.mrf.mxu0
      %v1769 = vadd.f32 %v620, %v1768
      %v1770 = vpop.f32.mrf.mxu0
      %v1771 = vadd.f32 %v620, %v1770
      %1772 = vmatmul.bf16.gmra.mxu0 %v1300
      %v1773 = vpop.f32.mrf.mxu0
      %v1774 = vadd.f32 %v620, %v1773
      %v1775 = vpop.f32.mrf.mxu0
      %v1776 = vadd.f32 %v620, %v1775
      %1777 = vmatmul.bf16.gmra.mxu0 %v1301
      %v1778 = vpop.f32.mrf.mxu0
      %v1779 = vadd.f32 %v620, %v1778
      %v1780 = vpop.f32.mrf.mxu0
      %v1781 = vadd.f32 %v620, %v1780
      %1782 = vmatmul.bf16.gmra.mxu0 %v1302
      %v1783 = vpop.f32.mrf.mxu0
      %v1784 = vadd.f32 %v620, %v1783
      %v1785 = vpop.f32.mrf.mxu0
      %v1786 = vadd.f32 %v620, %v1785
      %1787 = vmatmul.bf16.gmra.mxu0 %v1303
      %v1788 = vpop.f32.mrf.mxu0
      %v1789 = vadd.f32 %v620, %v1788
      %v1790 = vpop.f32.mrf.mxu0
      %v1791 = vadd.f32 %v620, %v1790
      %1792 = vmatmul.bf16.gmra.mxu0 %v1304
      %v1793 = vpop.f32.mrf.mxu0
      %v1794 = vadd.f32 %v620, %v1793
      %v1795 = vpop.f32.mrf.mxu0
      %v1796 = vadd.f32 %v620, %v1795
      %1797 = vmatmul.bf16.gmra.mxu0 %v1305
      %v1798 = vpop.f32.mrf.mxu0
      %v1799 = vadd.f32 %v620, %v1798
      %v1800 = vpop.f32.mrf.mxu0
      %v1801 = vadd.f32 %v620, %v1800
      %1802 = vmatmul.bf16.gmra.mxu0 %v1306
      %v1803 = vpop.f32.mrf.mxu0
      %v1804 = vadd.f32 %v620, %v1803
      %v1805 = vpop.f32.mrf.mxu0
      %v1806 = vadd.f32 %v620, %v1805
      %1807 = vmatmul.bf16.gmra.mxu0 %v1307
      %v1808 = vpop.f32.mrf.mxu0
      %v1809 = vadd.f32 %v620, %v1808
      %v1810 = vpop.f32.mrf.mxu0
      %v1811 = vadd.f32 %v620, %v1810
      %1812 = vmatmul.bf16.gmra.mxu0 %v1308
      %v1813 = vpop.f32.mrf.mxu0
      %v1814 = vadd.f32 %v620, %v1813
      %v1815 = vpop.f32.mrf.mxu0
      %v1816 = vadd.f32 %v620, %v1815
      %1817 = vmatmul.bf16.gmra.mxu0 %v1309
      %v1818 = vpop.f32.mrf.mxu0
      %v1819 = vadd.f32 %v620, %v1818
      %v1820 = vpop.f32.mrf.mxu0
      %v1821 = vadd.f32 %v620, %v1820
      %1822 = vmatmul.bf16.gmra.mxu0 %v1310
      %v1823 = vpop.f32.mrf.mxu0
      %v1824 = vadd.f32 %v620, %v1823
      %v1825 = vpop.f32.mrf.mxu0
      %v1826 = vadd.f32 %v620, %v1825
      %1827 = vmatmul.bf16.gmra.mxu0 %v1311
      %v1828 = vpop.f32.mrf.mxu0
      %v1829 = vadd.f32 %v620, %v1828
      %v1830 = vpop.f32.mrf.mxu0
      %v1831 = vadd.f32 %v620, %v1830
      %1832 = vmatmul.bf16.gmra.mxu0 %v1312
      %v1833 = vpop.f32.mrf.mxu0
      %v1834 = vadd.f32 %v620, %v1833
      %v1835 = vpop.f32.mrf.mxu0
      %v1836 = vadd.f32 %v620, %v1835
      %1837 = vmatmul.bf16.gmra.mxu0 %v1313
      %v1838 = vpop.f32.mrf.mxu0
      %v1839 = vadd.f32 %v620, %v1838
      %v1840 = vpop.f32.mrf.mxu0
      %v1841 = vadd.f32 %v620, %v1840
      %1842 = vmatmul.bf16.gmra.mxu0 %v1314
      %v1843 = vpop.f32.mrf.mxu0
      %v1844 = vadd.f32 %v620, %v1843
      %v1845 = vpop.f32.mrf.mxu0
      %v1846 = vadd.f32 %v620, %v1845
      %1847 = vmatmul.bf16.gmra.mxu0 %v1315
      %v1848 = vpop.f32.mrf.mxu0
      %v1849 = vadd.f32 %v620, %v1848
      %v1850 = vpop.f32.mrf.mxu0
      %v1851 = vadd.f32 %v620, %v1850
      %1852 = vmatmul.bf16.gmra.mxu0 %v1316
      %v1853 = vpop.f32.mrf.mxu0
      %v1854 = vadd.f32 %v620, %v1853
      %v1855 = vpop.f32.mrf.mxu0
      %v1856 = vadd.f32 %v620, %v1855
      %1857 = vmatmul.bf16.gmra.mxu0 %v1317
      %v1858 = vpop.f32.mrf.mxu0
      %v1859 = vadd.f32 %v620, %v1858
      %v1860 = vpop.f32.mrf.mxu0
      %v1861 = vadd.f32 %v620, %v1860
      %1862 = vmatmul.bf16.gmra.mxu0 %v1318
      %v1863 = vpop.f32.mrf.mxu0
      %v1864 = vadd.f32 %v620, %v1863
      %v1865 = vpop.f32.mrf.mxu0
      %v1866 = vadd.f32 %v620, %v1865
      %1867 = vmatmul.bf16.gmra.mxu0 %v1319
      %v1868 = vpop.f32.mrf.mxu0
      %v1869 = vadd.f32 %v620, %v1868
      %v1870 = vpop.f32.mrf.mxu0
      %v1871 = vadd.f32 %v620, %v1870
      %1872 = vmatmul.bf16.gmra.mxu0 %v1320
      %v1873 = vpop.f32.mrf.mxu0
      %v1874 = vadd.f32 %v620, %v1873
      %v1875 = vpop.f32.mrf.mxu0
      %v1876 = vadd.f32 %v620, %v1875
      %1877 = vmatmul.bf16.gmra.mxu0 %v1321
      %v1878 = vpop.f32.mrf.mxu0
      %v1879 = vadd.f32 %v620, %v1878
      %v1880 = vpop.f32.mrf.mxu0
      %v1881 = vadd.f32 %v620, %v1880
      %1882 = vmatmul.bf16.gmra.mxu0 %v1322
      %v1883 = vpop.f32.mrf.mxu0
      %v1884 = vadd.f32 %v620, %v1883
      %v1885 = vpop.f32.mrf.mxu0
      %v1886 = vadd.f32 %v620, %v1885
      %1887 = vmatmul.bf16.gmra.mxu0 %v1323
      %v1888 = vpop.f32.mrf.mxu0
      %v1889 = vadd.f32 %v620, %v1888
      %v1890 = vpop.f32.mrf.mxu0
      %v1891 = vadd.f32 %v620, %v1890
      %1892 = vmatmul.bf16.gmra.mxu0 %v1324
      %v1893 = vpop.f32.mrf.mxu0
      %v1894 = vadd.f32 %v620, %v1893
      %v1895 = vpop.f32.mrf.mxu0
      %v1896 = vadd.f32 %v620, %v1895
      %1897 = vmatmul.bf16.gmra.mxu0 %v1325
      %v1898 = vpop.f32.mrf.mxu0
      %v1899 = vadd.f32 %v620, %v1898
      %v1900 = vpop.f32.mrf.mxu0
      %v1901 = vadd.f32 %v620, %v1900
      %1902 = vmatmul.bf16.gmra.mxu0 %v1326
      %v1903 = vpop.f32.mrf.mxu0
      %v1904 = vadd.f32 %v620, %v1903
      %v1905 = vpop.f32.mrf.mxu0
      %v1906 = vadd.f32 %v620, %v1905
      %1907 = vmatmul.bf16.gmra.mxu0 %v1327
      %v1908 = vpop.f32.mrf.mxu0
      %v1909 = vadd.f32 %v620, %v1908
      %v1910 = vpop.f32.mrf.mxu0
      %v1911 = vadd.f32 %v620, %v1910
      %1912 = vmatmul.bf16.gmra.mxu0 %v1328
      %v1913 = vpop.f32.mrf.mxu0
      %v1914 = vadd.f32 %v620, %v1913
      %v1915 = vpop.f32.mrf.mxu0
      %v1916 = vadd.f32 %v620, %v1915
      %1917 = vmatmul.bf16.gmra.mxu0 %v1329
      %v1918 = vpop.f32.mrf.mxu0
      %v1919 = vadd.f32 %v620, %v1918
      %v1920 = vpop.f32.mrf.mxu0
      %v1921 = vadd.f32 %v620, %v1920
      %1922 = vmatmul.bf16.gmra.mxu0 %v1330
      %v1923 = vpop.f32.mrf.mxu0
      %v1924 = vadd.f32 %v620, %v1923
      %v1925 = vpop.f32.mrf.mxu0
      %v1926 = vadd.f32 %v620, %v1925
      %1927 = vmatmul.bf16.gmra.mxu0 %v1331
      %v1928 = vpop.f32.mrf.mxu0
      %v1929 = vadd.f32 %v620, %v1928
      %v1930 = vpop.f32.mrf.mxu0
      %v1931 = vadd.f32 %v620, %v1930
      %1932 = vmatmul.bf16.gmra.mxu0 %v1332
      %v1933 = vpop.f32.mrf.mxu0
      %v1934 = vadd.f32 %v620, %v1933
      %v1935 = vpop.f32.mrf.mxu0
      %v1936 = vadd.f32 %v620, %v1935
      %1937 = vmatmul.bf16.gmra.mxu0 %v1333
      %v1938 = vpop.f32.mrf.mxu0
      %v1939 = vadd.f32 %v620, %v1938
      %v1940 = vpop.f32.mrf.mxu0
      %v1941 = vadd.f32 %v620, %v1940
      %1942 = vmatmul.bf16.gmra.mxu0 %v1334
      %v1943 = vpop.f32.mrf.mxu0
      %v1944 = vadd.f32 %v620, %v1943
      %v1945 = vpop.f32.mrf.mxu0
      %v1946 = vadd.f32 %v620, %v1945
      %1947 = vmatmul.bf16.gmra.mxu0 %v1335
      %v1948 = vpop.f32.mrf.mxu0
      %v1949 = vadd.f32 %v620, %v1948
      %v1950 = vpop.f32.mrf.mxu0
      %v1951 = vadd.f32 %v620, %v1950
      %1952 = vmatmul.bf16.gmra.mxu0 %v1336
      %v1953 = vpop.f32.mrf.mxu0
      %v1954 = vadd.f32 %v620, %v1953
      %v1955 = vpop.f32.mrf.mxu0
      %v1956 = vadd.f32 %v620, %v1955
      %1957 = vmatmul.bf16.gmra.mxu0 %v1337
      %v1958 = vpop.f32.mrf.mxu0
      %v1959 = vadd.f32 %v620, %v1958
      %v1960 = vpop.f32.mrf.mxu0
      %v1961 = vadd.f32 %v620, %v1960
      %1962 = vmatmul.bf16.gmra.mxu0 %v1338
      %v1963 = vpop.f32.mrf.mxu0
      %v1964 = vadd.f32 %v620, %v1963
      %v1965 = vpop.f32.mrf.mxu0
      %v1966 = vadd.f32 %v620, %v1965
      %1967 = vmatmul.bf16.gmra.mxu0 %v1339
      %v1968 = vpop.f32.mrf.mxu0
      %v1969 = vadd.f32 %v620, %v1968
      %v1970 = vpop.f32.mrf.mxu0
      %v1971 = vadd.f32 %v620, %v1970
      %1972 = vmatmul.bf16.gmra.mxu0 %v1340
      %v1973 = vpop.f32.mrf.mxu0
      %v1974 = vadd.f32 %v620, %v1973
      %v1975 = vpop.f32.mrf.mxu0
      %v1976 = vadd.f32 %v620, %v1975
      %1977 = vmatmul.bf16.gmra.mxu0 %v1341
      %v1978 = vpop.f32.mrf.mxu0
      %v1979 = vadd.f32 %v620, %v1978
      %v1980 = vpop.f32.mrf.mxu0
      %v1981 = vadd.f32 %v620, %v1980
      %1982 = vmatmul.bf16.gmra.mxu0 %v1342
      %v1983 = vpop.f32.mrf.mxu0
      %v1984 = vadd.f32 %v620, %v1983
      %v1985 = vpop.f32.mrf.mxu0
      %v1986 = vadd.f32 %v620, %v1985
      %1987 = vmatmul.bf16.gmra.mxu0 %v1343
      %v1988 = vpop.f32.mrf.mxu0
      %v1989 = vadd.f32 %v620, %v1988
      %v1990 = vpop.f32.mrf.mxu0
      %v1991 = vadd.f32 %v620, %v1990
      %1992 = vmatmul.bf16.gmra.mxu0 %v1344
      %v1993 = vpop.f32.mrf.mxu0
      %v1994 = vadd.f32 %v620, %v1993
      %v1995 = vpop.f32.mrf.mxu0
      %v1996 = vadd.f32 %v620, %v1995
      %1997 = vmatmul.bf16.gmra.mxu0 %v1345
      %v1998 = vpop.f32.mrf.mxu0
      %v1999 = vadd.f32 %v620, %v1998
      %v2000 = vpop.f32.mrf.mxu0
      %v2001 = vadd.f32 %v620, %v2000
      %2002 = vmatmul.bf16.gmra.mxu0 %v1346
      %v2003 = vpop.f32.mrf.mxu0
      %v2004 = vadd.f32 %v620, %v2003
      %v2005 = vpop.f32.mrf.mxu0
      %v2006 = vadd.f32 %v620, %v2005
      %2007 = vmatmul.bf16.gmra.mxu0 %v1347
      %v2008 = vpop.f32.mrf.mxu0
      %v2009 = vadd.f32 %v620, %v2008
      %v2010 = vpop.f32.mrf.mxu0
      %v2011 = vadd.f32 %v620, %v2010
      %2012 = vmatmul.bf16.gmra.mxu0 %v1348
      %v2013 = vpop.f32.mrf.mxu0
      %v2014 = vadd.f32 %v620, %v2013
      %v2015 = vpop.f32.mrf.mxu0
      %v2016 = vadd.f32 %v620, %v2015
      %2017 = vmatmul.bf16.gmra.mxu0 %v1349
      %v2018 = vpop.f32.mrf.mxu0
      %v2019 = vadd.f32 %v620, %v2018
      %v2020 = vpop.f32.mrf.mxu0
      %v2021 = vadd.f32 %v620, %v2020
      %2022 = vmatmul.bf16.gmra.mxu0 %v1350
      %v2023 = vpop.f32.mrf.mxu0
      %v2024 = vadd.f32 %v620, %v2023
      %v2025 = vpop.f32.mrf.mxu0
      %v2026 = vadd.f32 %v620, %v2025
      %2027 = vmatmul.bf16.gmra.mxu0 %v1351
      %v2028 = vpop.f32.mrf.mxu0
      %v2029 = vadd.f32 %v620, %v2028
      %v2030 = vpop.f32.mrf.mxu0
      %v2031 = vadd.f32 %v620, %v2030
      %2032 = vmatmul.bf16.gmra.mxu0 %v1352
      %v2033 = vpop.f32.mrf.mxu0
      %v2034 = vadd.f32 %v620, %v2033
      %v2035 = vpop.f32.mrf.mxu0
      %v2036 = vadd.f32 %v620, %v2035
      %2037 = vmatmul.bf16.gmra.mxu0 %v1353
      %v2038 = vpop.f32.mrf.mxu0
      %v2039 = vadd.f32 %v620, %v2038
      %v2040 = vpop.f32.mrf.mxu0
      %v2041 = vadd.f32 %v620, %v2040
      %2042 = vmatmul.bf16.gmra.mxu0 %v1354
      %v2043 = vpop.f32.mrf.mxu0
      %v2044 = vadd.f32 %v620, %v2043
      %v2045 = vpop.f32.mrf.mxu0
      %v2046 = vadd.f32 %v620, %v2045
      %2047 = vmatmul.bf16.gmra.mxu0 %v1355
      %v2048 = vpop.f32.mrf.mxu0
      %v2049 = vadd.f32 %v620, %v2048
      %v2050 = vpop.f32.mrf.mxu0
      %v2051 = vadd.f32 %v620, %v2050
      %2052 = vmatmul.bf16.gmra.mxu0 %v1356
      %v2053 = vpop.f32.mrf.mxu0
      %v2054 = vadd.f32 %v620, %v2053
      %v2055 = vpop.f32.mrf.mxu0
      %v2056 = vadd.f32 %v620, %v2055
      %2057 = vmatmul.bf16.gmra.mxu0 %v1357
      %v2058 = vpop.f32.mrf.mxu0
      %v2059 = vadd.f32 %v620, %v2058
      %v2060 = vpop.f32.mrf.mxu0
      %v2061 = vadd.f32 %v620, %v2060
      %2062 = vmatmul.bf16.gmra.mxu0 %v1358
      %v2063 = vpop.f32.mrf.mxu0
      %v2064 = vadd.f32 %v620, %v2063
      %v2065 = vpop.f32.mrf.mxu0
      %v2066 = vadd.f32 %v620, %v2065
      %2067 = vmatmul.bf16.gmra.mxu0 %v1359
      %v2068 = vpop.f32.mrf.mxu0
      %v2069 = vadd.f32 %v620, %v2068
      %v2070 = vpop.f32.mrf.mxu0
      %v2071 = vadd.f32 %v620, %v2070
      %2072 = vmatmul.bf16.gmra.mxu0 %v1360
      %v2073 = vpop.f32.mrf.mxu0
      %v2074 = vadd.f32 %v620, %v2073
      %v2075 = vpop.f32.mrf.mxu0
      %v2076 = vadd.f32 %v620, %v2075
      %2077 = vmatmul.bf16.gmra.mxu0 %v1361
      %v2078 = vpop.f32.mrf.mxu0
      %v2079 = vadd.f32 %v620, %v2078
      %v2080 = vpop.f32.mrf.mxu0
      %v2081 = vadd.f32 %v620, %v2080
      %2082 = vmatmul.bf16.gmra.mxu0 %v1362
      %v2083 = vpop.f32.mrf.mxu0
      %v2084 = vadd.f32 %v620, %v2083
      %v2085 = vpop.f32.mrf.mxu0
      %v2086 = vadd.f32 %v620, %v2085
      %2087 = vmatmul.bf16.gmra.mxu0 %v1363
      %v2088 = vpop.f32.mrf.mxu0
      %v2089 = vadd.f32 %v620, %v2088
      %v2090 = vpop.f32.mrf.mxu0
      %v2091 = vadd.f32 %v620, %v2090
      %2092 = vmatmul.bf16.gmra.mxu0 %v1364
      %v2093 = vpop.f32.mrf.mxu0
      %v2094 = vadd.f32 %v620, %v2093
      %v2095 = vpop.f32.mrf.mxu0
      %v2096 = vadd.f32 %v620, %v2095
      %2097 = vmatmul.bf16.gmra.mxu0 %v1365
      %v2098 = vpop.f32.mrf.mxu0
      %v2099 = vadd.f32 %v620, %v2098
      %v2100 = vpop.f32.mrf.mxu0
      %v2101 = vadd.f32 %v620, %v2100
      %2102 = vmatmul.bf16.gmra.mxu0 %v1366
      %v2103 = vpop.f32.mrf.mxu0
      %v2104 = vadd.f32 %v620, %v2103
      %v2105 = vpop.f32.mrf.mxu0
      %v2106 = vadd.f32 %v620, %v2105
      %2107 = vmatmul.bf16.gmra.mxu0 %v1367
      %v2108 = vpop.f32.mrf.mxu0
      %v2109 = vadd.f32 %v620, %v2108
      %v2110 = vpop.f32.mrf.mxu0
      %v2111 = vadd.f32 %v620, %v2110
      %2112 = vmatmul.bf16.gmra.mxu0 %v1368
      %v2113 = vpop.f32.mrf.mxu0
      %v2114 = vadd.f32 %v620, %v2113
      %v2115 = vpop.f32.mrf.mxu0
      %v2116 = vadd.f32 %v620, %v2115
      %2117 = vmatmul.bf16.gmra.mxu0 %v1369
      %v2118 = vpop.f32.mrf.mxu0
      %v2119 = vadd.f32 %v620, %v2118
      %v2120 = vpop.f32.mrf.mxu0
      %v2121 = vadd.f32 %v620, %v2120
      %2122 = vmatmul.bf16.gmra.mxu0 %v1370
      %v2123 = vpop.f32.mrf.mxu0
      %v2124 = vadd.f32 %v620, %v2123
      %v2125 = vpop.f32.mrf.mxu0
      %v2126 = vadd.f32 %v620, %v2125
      %2127 = vmatmul.bf16.gmra.mxu0 %v1371
      %v2128 = vpop.f32.mrf.mxu0
      %v2129 = vadd.f32 %v620, %v2128
      %v2130 = vpop.f32.mrf.mxu0
      %v2131 = vadd.f32 %v620, %v2130
      %2132 = vmatmul.bf16.gmra.mxu0 %v1372
      %v2133 = vpop.f32.mrf.mxu0
      %v2134 = vadd.f32 %v620, %v2133
      %v2135 = vpop.f32.mrf.mxu0
      %v2136 = vadd.f32 %v620, %v2135
      %2137 = vmatmul.bf16.gmra.mxu0 %v1373
      %v2138 = vpop.f32.mrf.mxu0
      %v2139 = vadd.f32 %v620, %v2138
      %v2140 = vpop.f32.mrf.mxu0
      %v2141 = vadd.f32 %v620, %v2140
      %2142 = vmatmul.bf16.gmra.mxu0 %v1374
      %v2143 = vpop.f32.mrf.mxu0
      %v2144 = vadd.f32 %v620, %v2143
      %v2145 = vpop.f32.mrf.mxu0
      %v2146 = vadd.f32 %v620, %v2145
      %2147 = vmatmul.bf16.gmra.mxu0 %v1375
      %v2148 = vpop.f32.mrf.mxu0
      %v2149 = vadd.f32 %v620, %v2148
      %v2150 = vpop.f32.mrf.mxu0
      %v2151 = vadd.f32 %v620, %v2150
      %2152 = vmatmul.bf16.gmra.mxu0 %v1376
      %v2153 = vpop.f32.mrf.mxu0
      %v2154 = vadd.f32 %v620, %v2153
      %v2155 = vpop.f32.mrf.mxu0
      %v2156 = vadd.f32 %v620, %v2155
      %2157 = vmatmul.bf16.gmra.mxu0 %v1377
      %v2158 = vpop.f32.mrf.mxu0
      %v2159 = vadd.f32 %v620, %v2158
      %v2160 = vpop.f32.mrf.mxu0
      %v2161 = vadd.f32 %v620, %v2160
      %2162 = vmatmul.bf16.gmra.mxu0 %v1378
      %v2163 = vpop.f32.mrf.mxu0
      %v2164 = vadd.f32 %v620, %v2163
      %v2165 = vpop.f32.mrf.mxu0
      %v2166 = vadd.f32 %v620, %v2165
      %2167 = vmatmul.bf16.gmra.mxu0 %v1379
      %v2168 = vpop.f32.mrf.mxu0
      %v2169 = vadd.f32 %v620, %v2168
      %v2170 = vpop.f32.mrf.mxu0
      %v2171 = vadd.f32 %v620, %v2170
      %2172 = vmatmul.bf16.gmra.mxu0 %v1380
      %v2173 = vpop.f32.mrf.mxu0
      %v2174 = vadd.f32 %v620, %v2173
      %v2175 = vpop.f32.mrf.mxu0
      %v2176 = vadd.f32 %v620, %v2175
      %2177 = vmatmul.bf16.gmra.mxu0 %v1381
      %v2178 = vpop.f32.mrf.mxu0
      %v2179 = vadd.f32 %v620, %v2178
      %v2180 = vpop.f32.mrf.mxu0
      %v2181 = vadd.f32 %v620, %v2180
      %2182 = vmatmul.bf16.gmra.mxu0 %v1382
      %v2183 = vpop.f32.mrf.mxu0
      %v2184 = vadd.f32 %v620, %v2183
      %v2185 = vpop.f32.mrf.mxu0
      %v2186 = vadd.f32 %v620, %v2185
      %2187 = vmatmul.bf16.gmra.mxu0 %v1383
      %v2188 = vpop.f32.mrf.mxu0
      %v2189 = vadd.f32 %v620, %v2188
      %v2190 = vpop.f32.mrf.mxu0
      %v2191 = vadd.f32 %v620, %v2190
      %2192 = vmatmul.bf16.gmra.mxu0 %v1384
      %v2193 = vpop.f32.mrf.mxu0
      %v2194 = vadd.f32 %v620, %v2193
      %v2195 = vpop.f32.mrf.mxu0
      %v2196 = vadd.f32 %v620, %v2195
      %2197 = vmatmul.bf16.gmra.mxu0 %v1385
      %v2198 = vpop.f32.mrf.mxu0
      %v2199 = vadd.f32 %v620, %v2198
      %v2200 = vpop.f32.mrf.mxu0
      %v2201 = vadd.f32 %v620, %v2200
      %2202 = vmatmul.bf16.gmra.mxu0 %v1386
      %v2203 = vpop.f32.mrf.mxu0
      %v2204 = vadd.f32 %v620, %v2203
      %v2205 = vpop.f32.mrf.mxu0
      %v2206 = vadd.f32 %v620, %v2205
      %2207 = vmatmul.bf16.gmra.mxu0 %v1387
      %v2208 = vpop.f32.mrf.mxu0
      %v2209 = vadd.f32 %v620, %v2208
      %v2210 = vpop.f32.mrf.mxu0
      %v2211 = vadd.f32 %v620, %v2210
      %2212 = vmatmul.bf16.gmra.mxu0 %v1388
      %v2213 = vpop.f32.mrf.mxu0
      %v2214 = vadd.f32 %v620, %v2213
      %v2215 = vpop.f32.mrf.mxu0
      %v2216 = vadd.f32 %v620, %v2215
      %2217 = vmatmul.bf16.gmra.mxu0 %v1389
      %v2218 = vpop.f32.mrf.mxu0
      %v2219 = vadd.f32 %v620, %v2218
      %v2220 = vpop.f32.mrf.mxu0
      %v2221 = vadd.f32 %v620, %v2220
      %2222 = vmatmul.bf16.gmra.mxu0 %v1390
      %v2223 = vpop.f32.mrf.mxu0
      %v2224 = vadd.f32 %v620, %v2223
      %v2225 = vpop.f32.mrf.mxu0
      %v2226 = vadd.f32 %v620, %v2225
      %2227 = vmatmul.bf16.gmra.mxu0 %v1391
      %v2228 = vpop.f32.mrf.mxu0
      %v2229 = vadd.f32 %v620, %v2228
      %v2230 = vpop.f32.mrf.mxu0
      %v2231 = vadd.f32 %v620, %v2230
      %2232 = vmatmul.bf16.gmra.mxu0 %v1392
      %v2233 = vpop.f32.mrf.mxu0
      %v2234 = vadd.f32 %v620, %v2233
      %v2235 = vpop.f32.mrf.mxu0
      %v2236 = vadd.f32 %v620, %v2235
      %2237 = vmatmul.bf16.gmra.mxu0 %v1393
      %v2238 = vpop.f32.mrf.mxu0
      %v2239 = vadd.f32 %v620, %v2238
      %v2240 = vpop.f32.mrf.mxu0
      %v2241 = vadd.f32 %v620, %v2240
      %2242 = vmatmul.bf16.gmra.mxu0 %v1394
      %v2243 = vpop.f32.mrf.mxu0
      %v2244 = vadd.f32 %v620, %v2243
      %v2245 = vpop.f32.mrf.mxu0
      %v2246 = vadd.f32 %v620, %v2245
      %2247 = vmatmul.bf16.gmra.mxu0 %v1395
      %v2248 = vpop.f32.mrf.mxu0
      %v2249 = vadd.f32 %v620, %v2248
      %v2250 = vpop.f32.mrf.mxu0
      %v2251 = vadd.f32 %v620, %v2250
      %2252 = vmatmul.bf16.gmra.mxu0 %v1396
      %v2253 = vpop.f32.mrf.mxu0
      %v2254 = vadd.f32 %v620, %v2253
      %v2255 = vpop.f32.mrf.mxu0
      %v2256 = vadd.f32 %v620, %v2255
      %2257 = vmatmul.bf16.gmra.mxu0 %v1397
      %v2258 = vpop.f32.mrf.mxu0
      %v2259 = vadd.f32 %v620, %v2258
      %v2260 = vpop.f32.mrf.mxu0
      %v2261 = vadd.f32 %v620, %v2260
      %2262 = vmatmul.bf16.gmra.mxu0 %v1398
      %v2263 = vpop.f32.mrf.mxu0
      %v2264 = vadd.f32 %v620, %v2263
      %v2265 = vpop.f32.mrf.mxu0
      %v2266 = vadd.f32 %v620, %v2265
      %2267 = vmatmul.bf16.gmra.mxu0 %v1399
      %v2268 = vpop.f32.mrf.mxu0
      %v2269 = vadd.f32 %v620, %v2268
      %v2270 = vpop.f32.mrf.mxu0
      %v2271 = vadd.f32 %v620, %v2270
      %2272 = vmatmul.bf16.gmra.mxu0 %v1400
      %v2273 = vpop.f32.mrf.mxu0
      %v2274 = vadd.f32 %v620, %v2273
      %v2275 = vpop.f32.mrf.mxu0
      %v2276 = vadd.f32 %v620, %v2275
      %2277 = vmatmul.bf16.gmra.mxu0 %v1401
      %v2278 = vpop.f32.mrf.mxu0
      %v2279 = vadd.f32 %v620, %v2278
      %v2280 = vpop.f32.mrf.mxu0
      %v2281 = vadd.f32 %v620, %v2280
      %2282 = vmatmul.bf16.gmra.mxu0 %v1402
      %v2283 = vpop.f32.mrf.mxu0
      %v2284 = vadd.f32 %v620, %v2283
      %v2285 = vpop.f32.mrf.mxu0
      %v2286 = vadd.f32 %v620, %v2285
      %2287 = vmatmul.bf16.gmra.mxu0 %v1403
      %v2288 = vpop.f32.mrf.mxu0
      %v2289 = vadd.f32 %v620, %v2288
      %v2290 = vpop.f32.mrf.mxu0
      %v2291 = vadd.f32 %v620, %v2290
      %2292 = vmatmul.bf16.gmra.mxu0 %v1404
      %v2293 = vpop.f32.mrf.mxu0
      %v2294 = vadd.f32 %v620, %v2293
      %v2295 = vpop.f32.mrf.mxu0
      %v2296 = vadd.f32 %v620, %v2295
      %2297 = vmatmul.bf16.gmra.mxu0 %v1405
      %v2298 = vpop.f32.mrf.mxu0
      %v2299 = vadd.f32 %v620, %v2298
      %v2300 = vpop.f32.mrf.mxu0
      %v2301 = vadd.f32 %v620, %v2300
      %2302 = vmatmul.bf16.gmra.mxu0 %v1406
      %v2303 = vpop.f32.mrf.mxu0
      %v2304 = vadd.f32 %v620, %v2303
      %v2305 = vpop.f32.mrf.mxu0
      %v2306 = vadd.f32 %v620, %v2305
      %2307 = vmatmul.bf16.gmra.mxu0 %v1407
      %v2308 = vpop.f32.mrf.mxu0
      %v2309 = vadd.f32 %v620, %v2308
      %v2310 = vpop.f32.mrf.mxu0
      %v2311 = vadd.f32 %v620, %v2310
      %2312 = vmatmul.bf16.gmra.mxu0 %v1408
      %v2313 = vpop.f32.mrf.mxu0
      %v2314 = vadd.f32 %v620, %v2313
      %v2315 = vpop.f32.mrf.mxu0
      %v2316 = vadd.f32 %v620, %v2315
      %2317 = vmatmul.bf16.gmra.mxu0 %v1409
      %v2318 = vpop.f32.mrf.mxu0
      %v2319 = vadd.f32 %v620, %v2318
      %v2320 = vpop.f32.mrf.mxu0
      %v2321 = vadd.f32 %v620, %v2320
      %2322 = vmatmul.bf16.gmra.mxu0 %v1410
      %v2323 = vpop.f32.mrf.mxu0
      %v2324 = vadd.f32 %v620, %v2323
      %v2325 = vpop.f32.mrf.mxu0
      %v2326 = vadd.f32 %v620, %v2325
      %2327 = vmatmul.bf16.gmra.mxu0 %v1411
      %v2328 = vpop.f32.mrf.mxu0
      %v2329 = vadd.f32 %v620, %v2328
      %v2330 = vpop.f32.mrf.mxu0
      %v2331 = vadd.f32 %v620, %v2330
      %2332 = vmatmul.bf16.gmra.mxu0 %v1412
      %v2333 = vpop.f32.mrf.mxu0
      %v2334 = vadd.f32 %v620, %v2333
      %v2335 = vpop.f32.mrf.mxu0
      %v2336 = vadd.f32 %v620, %v2335
      %2337 = vmatmul.bf16.gmra.mxu0 %v1413
      %v2338 = vpop.f32.mrf.mxu0
      %v2339 = vadd.f32 %v620, %v2338
      %v2340 = vpop.f32.mrf.mxu0
      %v2341 = vadd.f32 %v620, %v2340
      %2342 = vmatmul.bf16.gmra.mxu0 %v1414
      %v2343 = vpop.f32.mrf.mxu0
      %v2344 = vadd.f32 %v620, %v2343
      %v2345 = vpop.f32.mrf.mxu0
      %v2346 = vadd.f32 %v620, %v2345
      %2347 = vmatmul.bf16.gmra.mxu0 %v1415
      %v2348 = vpop.f32.mrf.mxu0
      %v2349 = vadd.f32 %v620, %v2348
      %v2350 = vpop.f32.mrf.mxu0
      %v2351 = vadd.f32 %v620, %v2350
      %2352 = vmatmul.bf16.gmra.mxu0 %v1416
      %v2353 = vpop.f32.mrf.mxu0
      %v2354 = vadd.f32 %v620, %v2353
      %v2355 = vpop.f32.mrf.mxu0
      %v2356 = vadd.f32 %v620, %v2355
      %2357 = vmatmul.bf16.gmra.mxu0 %v1417
      %v2358 = vpop.f32.mrf.mxu0
      %v2359 = vadd.f32 %v620, %v2358
      %v2360 = vpop.f32.mrf.mxu0
      %v2361 = vadd.f32 %v620, %v2360
      %2362 = vmatmul.bf16.gmra.mxu0 %v1418
      %v2363 = vpop.f32.mrf.mxu0
      %v2364 = vadd.f32 %v620, %v2363
      %v2365 = vpop.f32.mrf.mxu0
      %v2366 = vadd.f32 %v620, %v2365
      %2367 = vmatmul.bf16.gmra.mxu0 %v1419
      %v2368 = vpop.f32.mrf.mxu0
      %v2369 = vadd.f32 %v620, %v2368
      %v2370 = vpop.f32.mrf.mxu0
      %v2371 = vadd.f32 %v620, %v2370
      %2372 = vmatmul.bf16.gmra.mxu0 %v1420
      %v2373 = vpop.f32.mrf.mxu0
      %v2374 = vadd.f32 %v620, %v2373
      %v2375 = vpop.f32.mrf.mxu0
      %v2376 = vadd.f32 %v620, %v2375
      %2377 = vmatmul.bf16.gmra.mxu0 %v1421
      %v2378 = vpop.f32.mrf.mxu0
      %v2379 = vadd.f32 %v620, %v2378
      %v2380 = vpop.f32.mrf.mxu0
      %v2381 = vadd.f32 %v620, %v2380
      %2382 = vmatmul.bf16.gmra.mxu0 %v1422
      %v2383 = vpop.f32.mrf.mxu0
      %v2384 = vadd.f32 %v620, %v2383
      %v2385 = vpop.f32.mrf.mxu0
      %v2386 = vadd.f32 %v620, %v2385
      %2387 = vmatmul.bf16.gmra.mxu0 %v1423
      %v2388 = vpop.f32.mrf.mxu0
      %v2389 = vadd.f32 %v620, %v2388
      %v2390 = vpop.f32.mrf.mxu0
      %v2391 = vadd.f32 %v620, %v2390
      %2392 = vmatmul.bf16.gmra.mxu0 %v1424
      %v2393 = vpop.f32.mrf.mxu0
      %v2394 = vadd.f32 %v620, %v2393
      %v2395 = vpop.f32.mrf.mxu0
      %v2396 = vadd.f32 %v620, %v2395
      %2397 = vmatmul.bf16.gmra.mxu0 %v1425
      %v2398 = vpop.f32.mrf.mxu0
      %v2399 = vadd.f32 %v620, %v2398
      %v2400 = vpop.f32.mrf.mxu0
      %v2401 = vadd.f32 %v620, %v2400
      %2402 = vmatmul.bf16.gmra.mxu0 %v1426
      %v2403 = vpop.f32.mrf.mxu0
      %v2404 = vadd.f32 %v620, %v2403
      %v2405 = vpop.f32.mrf.mxu0
      %v2406 = vadd.f32 %v620, %v2405
      %2407 = vmatmul.bf16.gmra.mxu0 %v1427
      %v2408 = vpop.f32.mrf.mxu0
      %v2409 = vadd.f32 %v620, %v2408
      %v2410 = vpop.f32.mrf.mxu0
      %v2411 = vadd.f32 %v620, %v2410
      %2412 = vmatmul.bf16.gmra.mxu0 %v1428
      %v2413 = vpop.f32.mrf.mxu0
      %v2414 = vadd.f32 %v620, %v2413
      %v2415 = vpop.f32.mrf.mxu0
      %v2416 = vadd.f32 %v620, %v2415
      %2417 = vmatmul.bf16.gmra.mxu0 %v1429
      %v2418 = vpop.f32.mrf.mxu0
      %v2419 = vadd.f32 %v620, %v2418
      %v2420 = vpop.f32.mrf.mxu0
      %v2421 = vadd.f32 %v620, %v2420
      %2422 = vmatmul.bf16.gmra.mxu0 %v1430
      %v2423 = vpop.f32.mrf.mxu0
      %v2424 = vadd.f32 %v620, %v2423
      %v2425 = vpop.f32.mrf.mxu0
      %v2426 = vadd.f32 %v620, %v2425
      %2427 = vmatmul.bf16.gmra.mxu0 %v1431
      %v2428 = vpop.f32.mrf.mxu0
      %v2429 = vadd.f32 %v620, %v2428
      %v2430 = vpop.f32.mrf.mxu0
      %v2431 = vadd.f32 %v620, %v2430
      %2432 = vmatmul.bf16.gmra.mxu0 %v1432
      %v2433 = vpop.f32.mrf.mxu0
      %v2434 = vadd.f32 %v620, %v2433
      %v2435 = vpop.f32.mrf.mxu0
      %v2436 = vadd.f32 %v620, %v2435
      %2437 = vmatmul.bf16.gmra.mxu0 %v1433
      %v2438 = vpop.f32.mrf.mxu0
      %v2439 = vadd.f32 %v620, %v2438
      %v2440 = vpop.f32.mrf.mxu0
      %v2441 = vadd.f32 %v620, %v2440
      %2442 = vmatmul.bf16.gmra.mxu0 %v1434
      %v2443 = vpop.f32.mrf.mxu0
      %v2444 = vadd.f32 %v620, %v2443
      %v2445 = vpop.f32.mrf.mxu0
      %v2446 = vadd.f32 %v620, %v2445
      %2447 = vmatmul.bf16.gmra.mxu0 %v1435
      %v2448 = vpop.f32.mrf.mxu0
      %v2449 = vadd.f32 %v620, %v2448
      %v2450 = vpop.f32.mrf.mxu0
      %v2451 = vadd.f32 %v620, %v2450
      %2452 = vmatmul.bf16.gmra.mxu0 %v1436
      %v2453 = vpop.f32.mrf.mxu0
      %v2454 = vadd.f32 %v620, %v2453
      %v2455 = vpop.f32.mrf.mxu0
      %v2456 = vadd.f32 %v620, %v2455
      %2457 = vmatmul.bf16.gmra.mxu0 %v1437
      %v2458 = vpop.f32.mrf.mxu0
      %v2459 = vadd.f32 %v620, %v2458
      %v2460 = vpop.f32.mrf.mxu0
      %v2461 = vadd.f32 %v620, %v2460
      %2462 = vmatmul.bf16.gmra.mxu0 %v1438
      %v2463 = vpop.f32.mrf.mxu0
      %v2464 = vadd.f32 %v620, %v2463
      %v2465 = vpop.f32.mrf.mxu0
      %v2466 = vadd.f32 %v620, %v2465
      %2467 = vmatmul.bf16.gmra.mxu0 %v1439
      %v2468 = vpop.f32.mrf.mxu0
      %v2469 = vadd.f32 %v620, %v2468
      %v2470 = vpop.f32.mrf.mxu0
      %v2471 = vadd.f32 %v620, %v2470
      %2472 = vmatmul.bf16.gmra.mxu0 %v1440
      %v2473 = vpop.f32.mrf.mxu0
      %v2474 = vadd.f32 %v620, %v2473
      %v2475 = vpop.f32.mrf.mxu0
      %v2476 = vadd.f32 %v620, %v2475
      %2477 = vmatmul.bf16.gmra.mxu0 %v1441
      %v2478 = vpop.f32.mrf.mxu0
      %v2479 = vadd.f32 %v620, %v2478
      %v2480 = vpop.f32.mrf.mxu0
      %v2481 = vadd.f32 %v620, %v2480
      %2482 = vdwg.mxu0
      %v2483 = vld [vmem:[%s263] sm:$0xff]
      %v2484 = vld [vmem:[%s263 + $0x8] sm:$0xff]
      %v2485 = vld [vmem:[%s263 + $0x10] sm:$0xff]
      %v2486 = vld [vmem:[%s263 + $0x18] sm:$0xff]
      %v2487 = vld [vmem:[%s263 + $0x20] sm:$0xff]
      %v2488 = vld [vmem:[%s263 + $0x28] sm:$0xff]
      %v2489 = vld [vmem:[%s263 + $0x30] sm:$0xff]
      %v2490 = vld [vmem:[%s263 + $0x38] sm:$0xff]
      %v2491 = vld [vmem:[%s263 + $0x40] sm:$0xff]
      %v2492 = vld [vmem:[%s263 + $0x48] sm:$0xff]
      %v2493 = vld [vmem:[%s263 + $0x50] sm:$0xff]
      %v2494 = vld [vmem:[%s263 + $0x58] sm:$0xff]
      %v2495 = vld [vmem:[%s263 + $0x60] sm:$0xff]
      %v2496 = vld [vmem:[%s263 + $0x68] sm:$0xff]
      %v2497 = vld [vmem:[%s263 + $0x70] sm:$0xff]
      %v2498 = vld [vmem:[%s263 + $0x78] sm:$0xff]
      %v2499 = vld [vmem:[%s263 + $0x80] sm:$0xff]
      %v2500 = vld [vmem:[%s263 + $0x88] sm:$0xff]
      %v2501 = vld [vmem:[%s263 + $0x90] sm:$0xff]
      %v2502 = vld [vmem:[%s263 + $0x98] sm:$0xff]
      %v2503 = vld [vmem:[%s263 + $0xa0] sm:$0xff]
      %v2504 = vld [vmem:[%s263 + $0xa8] sm:$0xff]
      %v2505 = vld [vmem:[%s263 + $0xb0] sm:$0xff]
      %v2506 = vld [vmem:[%s263 + $0xb8] sm:$0xff]
      %v2507 = vld [vmem:[%s263 + $0xc0] sm:$0xff]
      %v2508 = vld [vmem:[%s263 + $0xc8] sm:$0xff]
      %v2509 = vld [vmem:[%s263 + $0xd0] sm:$0xff]
      %v2510 = vld [vmem:[%s263 + $0xd8] sm:$0xff]
      %v2511 = vld [vmem:[%s263 + $0xe0] sm:$0xff]
      %v2512 = vld [vmem:[%s263 + $0xe8] sm:$0xff]
      %v2513 = vld [vmem:[%s263 + $0xf0] sm:$0xff]
      %v2514 = vld [vmem:[%s263 + $0xf8] sm:$0xff]
      %v2515 = vld [vmem:[%s263 + $0x100] sm:$0xff]
      %v2516 = vld [vmem:[%s263 + $0x108] sm:$0xff]
      %v2517 = vld [vmem:[%s263 + $0x110] sm:$0xff]
      %v2518 = vld [vmem:[%s263 + $0x118] sm:$0xff]
      %v2519 = vld [vmem:[%s263 + $0x120] sm:$0xff]
      %v2520 = vld [vmem:[%s263 + $0x128] sm:$0xff]
      %v2521 = vld [vmem:[%s263 + $0x130] sm:$0xff]
      %v2522 = vld [vmem:[%s263 + $0x138] sm:$0xff]
      %v2523 = vld [vmem:[%s263 + $0x140] sm:$0xff]
      %v2524 = vld [vmem:[%s263 + $0x148] sm:$0xff]
      %v2525 = vld [vmem:[%s263 + $0x150] sm:$0xff]
      %v2526 = vld [vmem:[%s263 + $0x158] sm:$0xff]
      %v2527 = vld [vmem:[%s263 + $0x160] sm:$0xff]
      %v2528 = vld [vmem:[%s263 + $0x168] sm:$0xff]
      %v2529 = vld [vmem:[%s263 + $0x170] sm:$0xff]
      %v2530 = vld [vmem:[%s263 + $0x178] sm:$0xff]
      %v2531 = vld [vmem:[%s263 + $0x180] sm:$0xff]
      %v2532 = vld [vmem:[%s263 + $0x188] sm:$0xff]
      %v2533 = vld [vmem:[%s263 + $0x190] sm:$0xff]
      %v2534 = vld [vmem:[%s263 + $0x198] sm:$0xff]
      %v2535 = vld [vmem:[%s263 + $0x1a0] sm:$0xff]
      %v2536 = vld [vmem:[%s263 + $0x1a8] sm:$0xff]
      %v2537 = vld [vmem:[%s263 + $0x1b0] sm:$0xff]
      %v2538 = vld [vmem:[%s263 + $0x1b8] sm:$0xff]
      %v2539 = vld [vmem:[%s263 + $0x1c0] sm:$0xff]
      %v2540 = vld [vmem:[%s263 + $0x1c8] sm:$0xff]
      %v2541 = vld [vmem:[%s263 + $0x1d0] sm:$0xff]
      %v2542 = vld [vmem:[%s263 + $0x1d8] sm:$0xff]
      %v2543 = vld [vmem:[%s263 + $0x1e0] sm:$0xff]
      %v2544 = vld [vmem:[%s263 + $0x1e8] sm:$0xff]
      %v2545 = vld [vmem:[%s263 + $0x1f0] sm:$0xff]
      %v2546 = vld [vmem:[%s263 + $0x1f8] sm:$0xff]
      %v2547 = vld [vmem:[%s263 + $0x200] sm:$0xff]
      %v2548 = vld [vmem:[%s263 + $0x208] sm:$0xff]
      %v2549 = vld [vmem:[%s263 + $0x210] sm:$0xff]
      %v2550 = vld [vmem:[%s263 + $0x218] sm:$0xff]
      %v2551 = vld [vmem:[%s263 + $0x220] sm:$0xff]
      %v2552 = vld [vmem:[%s263 + $0x228] sm:$0xff]
      %v2553 = vld [vmem:[%s263 + $0x230] sm:$0xff]
      %v2554 = vld [vmem:[%s263 + $0x238] sm:$0xff]
      %v2555 = vld [vmem:[%s263 + $0x240] sm:$0xff]
      %v2556 = vld [vmem:[%s263 + $0x248] sm:$0xff]
      %v2557 = vld [vmem:[%s263 + $0x250] sm:$0xff]
      %v2558 = vld [vmem:[%s263 + $0x258] sm:$0xff]
      %v2559 = vld [vmem:[%s263 + $0x260] sm:$0xff]
      %v2560 = vld [vmem:[%s263 + $0x268] sm:$0xff]
      %v2561 = vld [vmem:[%s263 + $0x270] sm:$0xff]
      %v2562 = vld [vmem:[%s263 + $0x278] sm:$0xff]
      %v2563 = vld [vmem:[%s263 + $0x280] sm:$0xff]
      %v2564 = vld [vmem:[%s263 + $0x288] sm:$0xff]
      %v2565 = vld [vmem:[%s263 + $0x290] sm:$0xff]
      %v2566 = vld [vmem:[%s263 + $0x298] sm:$0xff]
      %v2567 = vld [vmem:[%s263 + $0x2a0] sm:$0xff]
      %v2568 = vld [vmem:[%s263 + $0x2a8] sm:$0xff]
      %v2569 = vld [vmem:[%s263 + $0x2b0] sm:$0xff]
      %v2570 = vld [vmem:[%s263 + $0x2b8] sm:$0xff]
      %v2571 = vld [vmem:[%s263 + $0x2c0] sm:$0xff]
      %v2572 = vld [vmem:[%s263 + $0x2c8] sm:$0xff]
      %v2573 = vld [vmem:[%s263 + $0x2d0] sm:$0xff]
      %v2574 = vld [vmem:[%s263 + $0x2d8] sm:$0xff]
      %v2575 = vld [vmem:[%s263 + $0x2e0] sm:$0xff]
      %v2576 = vld [vmem:[%s263 + $0x2e8] sm:$0xff]
      %v2577 = vld [vmem:[%s263 + $0x2f0] sm:$0xff]
      %v2578 = vld [vmem:[%s263 + $0x2f8] sm:$0xff]
      %v2579 = vld [vmem:[%s263 + $0x300] sm:$0xff]
      %v2580 = vld [vmem:[%s263 + $0x308] sm:$0xff]
      %v2581 = vld [vmem:[%s263 + $0x310] sm:$0xff]
      %v2582 = vld [vmem:[%s263 + $0x318] sm:$0xff]
      %v2583 = vld [vmem:[%s263 + $0x320] sm:$0xff]
      %v2584 = vld [vmem:[%s263 + $0x328] sm:$0xff]
      %v2585 = vld [vmem:[%s263 + $0x330] sm:$0xff]
      %v2586 = vld [vmem:[%s263 + $0x338] sm:$0xff]
      %v2587 = vld [vmem:[%s263 + $0x340] sm:$0xff]
      %v2588 = vld [vmem:[%s263 + $0x348] sm:$0xff]
      %v2589 = vld [vmem:[%s263 + $0x350] sm:$0xff]
      %v2590 = vld [vmem:[%s263 + $0x358] sm:$0xff]
      %v2591 = vld [vmem:[%s263 + $0x360] sm:$0xff]
      %v2592 = vld [vmem:[%s263 + $0x368] sm:$0xff]
      %v2593 = vld [vmem:[%s263 + $0x370] sm:$0xff]
      %v2594 = vld [vmem:[%s263 + $0x378] sm:$0xff]
      %v2595 = vld [vmem:[%s263 + $0x380] sm:$0xff]
      %v2596 = vld [vmem:[%s263 + $0x388] sm:$0xff]
      %v2597 = vld [vmem:[%s263 + $0x390] sm:$0xff]
      %v2598 = vld [vmem:[%s263 + $0x398] sm:$0xff]
      %v2599 = vld [vmem:[%s263 + $0x3a0] sm:$0xff]
      %v2600 = vld [vmem:[%s263 + $0x3a8] sm:$0xff]
      %v2601 = vld [vmem:[%s263 + $0x3b0] sm:$0xff]
      %v2602 = vld [vmem:[%s263 + $0x3b8] sm:$0xff]
      %v2603 = vld [vmem:[%s263 + $0x3c0] sm:$0xff]
      %v2604 = vld [vmem:[%s263 + $0x3c8] sm:$0xff]
      %v2605 = vld [vmem:[%s263 + $0x3d0] sm:$0xff]
      %v2606 = vld [vmem:[%s263 + $0x3d8] sm:$0xff]
      %v2607 = vld [vmem:[%s263 + $0x3e0] sm:$0xff]
      %v2608 = vld [vmem:[%s263 + $0x3e8] sm:$0xff]
      %v2609 = vld [vmem:[%s263 + $0x3f0] sm:$0xff]
      %v2610 = vld [vmem:[%s263 + $0x3f8] sm:$0xff]
      %v2611 = vld [vmem:[%s263 + $0x400] sm:$0xff]
      %v2612 = vld [vmem:[%s263 + $0x408] sm:$0xff]
      %v2613 = vld [vmem:[%s263 + $0x410] sm:$0xff]
      %v2614 = vld [vmem:[%s263 + $0x418] sm:$0xff]
      %v2615 = vld [vmem:[%s263 + $0x420] sm:$0xff]
      %v2616 = vld [vmem:[%s263 + $0x428] sm:$0xff]
      %v2617 = vld [vmem:[%s263 + $0x430] sm:$0xff]
      %v2618 = vld [vmem:[%s263 + $0x438] sm:$0xff]
      %v2619 = vld [vmem:[%s263 + $0x440] sm:$0xff]
      %v2620 = vld [vmem:[%s263 + $0x448] sm:$0xff]
      %v2621 = vld [vmem:[%s263 + $0x450] sm:$0xff]
      %v2622 = vld [vmem:[%s263 + $0x458] sm:$0xff]
      %v2623 = vld [vmem:[%s263 + $0x460] sm:$0xff]
      %v2624 = vld [vmem:[%s263 + $0x468] sm:$0xff]
      %v2625 = vld [vmem:[%s263 + $0x470] sm:$0xff]
      %v2626 = vld [vmem:[%s263 + $0x478] sm:$0xff]
      %v2627 = vld [vmem:[%s263 + $0x480] sm:$0xff]
      %v2628 = vld [vmem:[%s263 + $0x488] sm:$0xff]
      %v2629 = vld [vmem:[%s263 + $0x490] sm:$0xff]
      %v2630 = vld [vmem:[%s263 + $0x498] sm:$0xff]
      %v2631 = vld [vmem:[%s263 + $0x4a0] sm:$0xff]
      %v2632 = vld [vmem:[%s263 + $0x4a8] sm:$0xff]
      %v2633 = vld [vmem:[%s263 + $0x4b0] sm:$0xff]
      %v2634 = vld [vmem:[%s263 + $0x4b8] sm:$0xff]
      %v2635 = vld [vmem:[%s263 + $0x4c0] sm:$0xff]
      %v2636 = vld [vmem:[%s263 + $0x4c8] sm:$0xff]
      %v2637 = vld [vmem:[%s263 + $0x4d0] sm:$0xff]
      %v2638 = vld [vmem:[%s263 + $0x4d8] sm:$0xff]
      %v2639 = vld [vmem:[%s263 + $0x4e0] sm:$0xff]
      %v2640 = vld [vmem:[%s263 + $0x4e8] sm:$0xff]
      %v2641 = vld [vmem:[%s263 + $0x4f0] sm:$0xff]
      %v2642 = vld [vmem:[%s263 + $0x4f8] sm:$0xff]
      %v2643 = vld [vmem:[%s263 + $0x500] sm:$0xff]
      %v2644 = vld [vmem:[%s263 + $0x508] sm:$0xff]
      %v2645 = vld [vmem:[%s263 + $0x510] sm:$0xff]
      %v2646 = vld [vmem:[%s263 + $0x518] sm:$0xff]
      %v2647 = vld [vmem:[%s263 + $0x520] sm:$0xff]
      %v2648 = vld [vmem:[%s263 + $0x528] sm:$0xff]
      %v2649 = vld [vmem:[%s263 + $0x530] sm:$0xff]
      %v2650 = vld [vmem:[%s263 + $0x538] sm:$0xff]
      %v2651 = vld [vmem:[%s263 + $0x540] sm:$0xff]
      %v2652 = vld [vmem:[%s263 + $0x548] sm:$0xff]
      %v2653 = vld [vmem:[%s263 + $0x550] sm:$0xff]
      %v2654 = vld [vmem:[%s263 + $0x558] sm:$0xff]
      %v2655 = vld [vmem:[%s263 + $0x560] sm:$0xff]
      %v2656 = vld [vmem:[%s263 + $0x568] sm:$0xff]
      %v2657 = vld [vmem:[%s263 + $0x570] sm:$0xff]
      %v2658 = vld [vmem:[%s263 + $0x578] sm:$0xff]
      %v2659 = vld [vmem:[%s263 + $0x580] sm:$0xff]
      %v2660 = vld [vmem:[%s263 + $0x588] sm:$0xff]
      %v2661 = vld [vmem:[%s263 + $0x590] sm:$0xff]
      %v2662 = vld [vmem:[%s263 + $0x598] sm:$0xff]
      %v2663 = vld [vmem:[%s263 + $0x5a0] sm:$0xff]
      %v2664 = vld [vmem:[%s263 + $0x5a8] sm:$0xff]
      %v2665 = vld [vmem:[%s263 + $0x5b0] sm:$0xff]
      %v2666 = vld [vmem:[%s263 + $0x5b8] sm:$0xff]
      %v2667 = vld [vmem:[%s263 + $0x5c0] sm:$0xff]
      %v2668 = vld [vmem:[%s263 + $0x5c8] sm:$0xff]
      %v2669 = vld [vmem:[%s263 + $0x5d0] sm:$0xff]
      %v2670 = vld [vmem:[%s263 + $0x5d8] sm:$0xff]
      %v2671 = vld [vmem:[%s263 + $0x5e0] sm:$0xff]
      %v2672 = vld [vmem:[%s263 + $0x5e8] sm:$0xff]
      %v2673 = vld [vmem:[%s263 + $0x5f0] sm:$0xff]
      %v2674 = vld [vmem:[%s263 + $0x5f8] sm:$0xff]
      %v2675 = vld [vmem:[%s263 + $0x600] sm:$0xff]
      %v2676 = vld [vmem:[%s263 + $0x608] sm:$0xff]
      %v2677 = vld [vmem:[%s263 + $0x610] sm:$0xff]
      %v2678 = vld [vmem:[%s263 + $0x618] sm:$0xff]
      %v2679 = vld [vmem:[%s263 + $0x620] sm:$0xff]
      %v2680 = vld [vmem:[%s263 + $0x628] sm:$0xff]
      %v2681 = vld [vmem:[%s263 + $0x630] sm:$0xff]
      %v2682 = vld [vmem:[%s263 + $0x638] sm:$0xff]
      %v2683 = vld [vmem:[%s263 + $0x640] sm:$0xff]
      %v2684 = vld [vmem:[%s263 + $0x648] sm:$0xff]
      %v2685 = vld [vmem:[%s263 + $0x650] sm:$0xff]
      %v2686 = vld [vmem:[%s263 + $0x658] sm:$0xff]
      %v2687 = vld [vmem:[%s263 + $0x660] sm:$0xff]
      %v2688 = vld [vmem:[%s263 + $0x668] sm:$0xff]
      %v2689 = vld [vmem:[%s263 + $0x670] sm:$0xff]
      %v2690 = vld [vmem:[%s263 + $0x678] sm:$0xff]
      %v2691 = vld [vmem:[%s263 + $0x680] sm:$0xff]
      %v2692 = vld [vmem:[%s263 + $0x688] sm:$0xff]
      %v2693 = vld [vmem:[%s263 + $0x690] sm:$0xff]
      %v2694 = vld [vmem:[%s263 + $0x698] sm:$0xff]
      %v2695 = vld [vmem:[%s263 + $0x6a0] sm:$0xff]
      %v2696 = vld [vmem:[%s263 + $0x6a8] sm:$0xff]
      %v2697 = vld [vmem:[%s263 + $0x6b0] sm:$0xff]
      %v2698 = vld [vmem:[%s263 + $0x6b8] sm:$0xff]
      %v2699 = vld [vmem:[%s263 + $0x6c0] sm:$0xff]
      %v2700 = vld [vmem:[%s263 + $0x6c8] sm:$0xff]
      %v2701 = vld [vmem:[%s263 + $0x6d0] sm:$0xff]
      %v2702 = vld [vmem:[%s263 + $0x6d8] sm:$0xff]
      %v2703 = vld [vmem:[%s263 + $0x6e0] sm:$0xff]
      %v2704 = vld [vmem:[%s263 + $0x6e8] sm:$0xff]
      %v2705 = vld [vmem:[%s263 + $0x6f0] sm:$0xff]
      %v2706 = vld [vmem:[%s263 + $0x6f8] sm:$0xff]
      %v2707 = vld [vmem:[%s263 + $0x700] sm:$0xff]
      %v2708 = vld [vmem:[%s263 + $0x708] sm:$0xff]
      %v2709 = vld [vmem:[%s263 + $0x710] sm:$0xff]
      %v2710 = vld [vmem:[%s263 + $0x718] sm:$0xff]
      %v2711 = vld [vmem:[%s263 + $0x720] sm:$0xff]
      %v2712 = vld [vmem:[%s263 + $0x728] sm:$0xff]
      %v2713 = vld [vmem:[%s263 + $0x730] sm:$0xff]
      %v2714 = vld [vmem:[%s263 + $0x738] sm:$0xff]
      %v2715 = vld [vmem:[%s263 + $0x740] sm:$0xff]
      %v2716 = vld [vmem:[%s263 + $0x748] sm:$0xff]
      %v2717 = vld [vmem:[%s263 + $0x750] sm:$0xff]
      %v2718 = vld [vmem:[%s263 + $0x758] sm:$0xff]
      %v2719 = vld [vmem:[%s263 + $0x760] sm:$0xff]
      %v2720 = vld [vmem:[%s263 + $0x768] sm:$0xff]
      %v2721 = vld [vmem:[%s263 + $0x770] sm:$0xff]
      %v2722 = vld [vmem:[%s263 + $0x778] sm:$0xff]
      %v2723 = vld [vmem:[%s263 + $0x780] sm:$0xff]
      %v2724 = vld [vmem:[%s263 + $0x788] sm:$0xff]
      %v2725 = vld [vmem:[%s263 + $0x790] sm:$0xff]
      %v2726 = vld [vmem:[%s263 + $0x798] sm:$0xff]
      %v2727 = vld [vmem:[%s263 + $0x7a0] sm:$0xff]
      %v2728 = vld [vmem:[%s263 + $0x7a8] sm:$0xff]
      %v2729 = vld [vmem:[%s263 + $0x7b0] sm:$0xff]
      %v2730 = vld [vmem:[%s263 + $0x7b8] sm:$0xff]
      %v2731 = vld [vmem:[%s263 + $0x7c0] sm:$0xff]
      %v2732 = vld [vmem:[%s263 + $0x7c8] sm:$0xff]
      %v2733 = vld [vmem:[%s263 + $0x7d0] sm:$0xff]
      %v2734 = vld [vmem:[%s263 + $0x7d8] sm:$0xff]
      %v2735 = vld [vmem:[%s263 + $0x7e0] sm:$0xff]
      %v2736 = vld [vmem:[%s263 + $0x7e8] sm:$0xff]
      %v2737 = vld [vmem:[%s263 + $0x7f0] sm:$0xff]
      %v2738 = vld [vmem:[%s263 + $0x7f8] sm:$0xff]
      %v2739 = vld [vmem:[%s263 + $0x800] sm:$0xff]
      %v2740 = vld [vmem:[%s263 + $0x808] sm:$0xff]
      %v2741 = vld [vmem:[%s263 + $0x810] sm:$0xff]
      %v2742 = vld [vmem:[%s263 + $0x818] sm:$0xff]
      %v2743 = vld [vmem:[%s263 + $0x820] sm:$0xff]
      %v2744 = vld [vmem:[%s263 + $0x828] sm:$0xff]
      %v2745 = vld [vmem:[%s263 + $0x830] sm:$0xff]
      %v2746 = vld [vmem:[%s263 + $0x838] sm:$0xff]
      %v2747 = vld [vmem:[%s263 + $0x840] sm:$0xff]
      %v2748 = vld [vmem:[%s263 + $0x848] sm:$0xff]
      %v2749 = vld [vmem:[%s263 + $0x850] sm:$0xff]
      %v2750 = vld [vmem:[%s263 + $0x858] sm:$0xff]
      %v2751 = vld [vmem:[%s263 + $0x860] sm:$0xff]
      %v2752 = vld [vmem:[%s263 + $0x868] sm:$0xff]
      %v2753 = vld [vmem:[%s263 + $0x870] sm:$0xff]
      %v2754 = vld [vmem:[%s263 + $0x878] sm:$0xff]
      %v2755 = vld [vmem:[%s263 + $0x880] sm:$0xff]
      %v2756 = vld [vmem:[%s263 + $0x888] sm:$0xff]
      %v2757 = vld [vmem:[%s263 + $0x890] sm:$0xff]
      %v2758 = vld [vmem:[%s263 + $0x898] sm:$0xff]
      %v2759 = vld [vmem:[%s263 + $0x8a0] sm:$0xff]
      %v2760 = vld [vmem:[%s263 + $0x8a8] sm:$0xff]
      %v2761 = vld [vmem:[%s263 + $0x8b0] sm:$0xff]
      %v2762 = vld [vmem:[%s263 + $0x8b8] sm:$0xff]
      %v2763 = vld [vmem:[%s263 + $0x8c0] sm:$0xff]
      %v2764 = vld [vmem:[%s263 + $0x8c8] sm:$0xff]
      %v2765 = vld [vmem:[%s263 + $0x8d0] sm:$0xff]
      %v2766 = vld [vmem:[%s263 + $0x8d8] sm:$0xff]
      %v2767 = vld [vmem:[%s263 + $0x8e0] sm:$0xff]
      %v2768 = vld [vmem:[%s263 + $0x8e8] sm:$0xff]
      %v2769 = vld [vmem:[%s263 + $0x8f0] sm:$0xff]
      %v2770 = vld [vmem:[%s263 + $0x8f8] sm:$0xff]
      %v2771 = vld [vmem:[%s263 + $0x900] sm:$0xff]
      %v2772 = vld [vmem:[%s263 + $0x908] sm:$0xff]
      %v2773 = vld [vmem:[%s263 + $0x910] sm:$0xff]
      %v2774 = vld [vmem:[%s263 + $0x918] sm:$0xff]
      %v2775 = vld [vmem:[%s263 + $0x920] sm:$0xff]
      %v2776 = vld [vmem:[%s263 + $0x928] sm:$0xff]
      %v2777 = vld [vmem:[%s263 + $0x930] sm:$0xff]
      %v2778 = vld [vmem:[%s263 + $0x938] sm:$0xff]
      %v2779 = vld [vmem:[%s263 + $0x940] sm:$0xff]
      %v2780 = vld [vmem:[%s263 + $0x948] sm:$0xff]
      %v2781 = vld [vmem:[%s263 + $0x950] sm:$0xff]
      %v2782 = vld [vmem:[%s263 + $0x958] sm:$0xff]
      %v2783 = vld [vmem:[%s263 + $0x960] sm:$0xff]
      %v2784 = vld [vmem:[%s263 + $0x968] sm:$0xff]
      %v2785 = vld [vmem:[%s263 + $0x970] sm:$0xff]
      %v2786 = vld [vmem:[%s263 + $0x978] sm:$0xff]
      %v2787 = vld [vmem:[%s263 + $0x980] sm:$0xff]
      %v2788 = vld [vmem:[%s263 + $0x988] sm:$0xff]
      %v2789 = vld [vmem:[%s263 + $0x990] sm:$0xff]
      %v2790 = vld [vmem:[%s263 + $0x998] sm:$0xff]
      %v2791 = vld [vmem:[%s263 + $0x9a0] sm:$0xff]
      %v2792 = vld [vmem:[%s263 + $0x9a8] sm:$0xff]
      %v2793 = vld [vmem:[%s263 + $0x9b0] sm:$0xff]
      %v2794 = vld [vmem:[%s263 + $0x9b8] sm:$0xff]
      %v2795 = vld [vmem:[%s263 + $0x9c0] sm:$0xff]
      %v2796 = vld [vmem:[%s263 + $0x9c8] sm:$0xff]
      %v2797 = vld [vmem:[%s263 + $0x9d0] sm:$0xff]
      %v2798 = vld [vmem:[%s263 + $0x9d8] sm:$0xff]
      %v2799 = vld [vmem:[%s263 + $0x9e0] sm:$0xff]
      %v2800 = vld [vmem:[%s263 + $0x9e8] sm:$0xff]
      %v2801 = vld [vmem:[%s263 + $0x9f0] sm:$0xff]
      %v2802 = vld [vmem:[%s263 + $0x9f8] sm:$0xff]
      %v2803 = vld [vmem:[%s263 + $0xa00] sm:$0xff]
      %v2804 = vld [vmem:[%s263 + $0xa08] sm:$0xff]
      %v2805 = vld [vmem:[%s263 + $0xa10] sm:$0xff]
      %v2806 = vld [vmem:[%s263 + $0xa18] sm:$0xff]
      %v2807 = vld [vmem:[%s263 + $0xa20] sm:$0xff]
      %v2808 = vld [vmem:[%s263 + $0xa28] sm:$0xff]
      %v2809 = vld [vmem:[%s263 + $0xa30] sm:$0xff]
      %v2810 = vld [vmem:[%s263 + $0xa38] sm:$0xff]
      %2812 = vset.pattern.permute.xlu0 0
      %2813 = vperm.xlu0 %2812, %v2483
      %v2814 = vpop.permute.xlu0 %2813
      %2817 = vset.pattern.permute.xlu0 0
      %2818 = vperm.xlu0 %2817, %v2484
      %v2819 = vpop.permute.xlu0 %2818
      %2822 = vset.pattern.permute.xlu0 0
      %2823 = vperm.xlu0 %2822, %v2485
      %v2824 = vpop.permute.xlu0 %2823
      %2827 = vset.pattern.permute.xlu0 0
      %2828 = vperm.xlu0 %2827, %v2486
      %v2829 = vpop.permute.xlu0 %2828
      %2832 = vset.pattern.permute.xlu0 0
      %2833 = vperm.xlu0 %2832, %v2487
      %v2834 = vpop.permute.xlu0 %2833
      %2837 = vset.pattern.permute.xlu0 0
      %2838 = vperm.xlu0 %2837, %v2488
      %v2839 = vpop.permute.xlu0 %2838
      %2842 = vset.pattern.permute.xlu0 0
      %2843 = vperm.xlu0 %2842, %v2489
      %v2844 = vpop.permute.xlu0 %2843
      %2847 = vset.pattern.permute.xlu0 0
      %2848 = vperm.xlu0 %2847, %v2490
      %v2849 = vpop.permute.xlu0 %2848
      %2852 = vset.pattern.permute.xlu0 0
      %2853 = vperm.xlu0 %2852, %v2491
      %v2854 = vpop.permute.xlu0 %2853
      %2857 = vset.pattern.permute.xlu0 0
      %2858 = vperm.xlu0 %2857, %v2492
      %v2859 = vpop.permute.xlu0 %2858
      %2862 = vset.pattern.permute.xlu0 0
      %2863 = vperm.xlu0 %2862, %v2493
      %v2864 = vpop.permute.xlu0 %2863
      %2867 = vset.pattern.permute.xlu0 0
      %2868 = vperm.xlu0 %2867, %v2494
      %v2869 = vpop.permute.xlu0 %2868
      %2872 = vset.pattern.permute.xlu0 0
      %2873 = vperm.xlu0 %2872, %v2495
      %v2874 = vpop.permute.xlu0 %2873
      %2877 = vset.pattern.permute.xlu0 0
      %2878 = vperm.xlu0 %2877, %v2496
      %v2879 = vpop.permute.xlu0 %2878
      %2882 = vset.pattern.permute.xlu0 0
      %2883 = vperm.xlu0 %2882, %v2497
      %v2884 = vpop.permute.xlu0 %2883
      %2887 = vset.pattern.permute.xlu0 0
      %2888 = vperm.xlu0 %2887, %v2498
      %v2889 = vpop.permute.xlu0 %2888
      %2892 = vset.pattern.permute.xlu0 0
      %2893 = vperm.xlu0 %2892, %v2499
      %v2894 = vpop.permute.xlu0 %2893
      %2897 = vset.pattern.permute.xlu0 0
      %2898 = vperm.xlu0 %2897, %v2500
      %v2899 = vpop.permute.xlu0 %2898
      %2902 = vset.pattern.permute.xlu0 0
      %2903 = vperm.xlu0 %2902, %v2501
      %v2904 = vpop.permute.xlu0 %2903
      %2907 = vset.pattern.permute.xlu0 0
      %2908 = vperm.xlu0 %2907, %v2502
      %v2909 = vpop.permute.xlu0 %2908
      %2912 = vset.pattern.permute.xlu0 0
      %2913 = vperm.xlu0 %2912, %v2503
      %v2914 = vpop.permute.xlu0 %2913
      %2917 = vset.pattern.permute.xlu0 0
      %2918 = vperm.xlu0 %2917, %v2504
      %v2919 = vpop.permute.xlu0 %2918
      %2922 = vset.pattern.permute.xlu0 0
      %2923 = vperm.xlu0 %2922, %v2505
      %v2924 = vpop.permute.xlu0 %2923
      %2927 = vset.pattern.permute.xlu0 0
      %2928 = vperm.xlu0 %2927, %v2506
      %v2929 = vpop.permute.xlu0 %2928
      %2932 = vset.pattern.permute.xlu0 0
      %2933 = vperm.xlu0 %2932, %v2507
      %v2934 = vpop.permute.xlu0 %2933
      %2937 = vset.pattern.permute.xlu0 0
      %2938 = vperm.xlu0 %2937, %v2508
      %v2939 = vpop.permute.xlu0 %2938
      %2942 = vset.pattern.permute.xlu0 0
      %2943 = vperm.xlu0 %2942, %v2509
      %v2944 = vpop.permute.xlu0 %2943
      %2947 = vset.pattern.permute.xlu0 0
      %2948 = vperm.xlu0 %2947, %v2510
      %v2949 = vpop.permute.xlu0 %2948
      %2952 = vset.pattern.permute.xlu0 0
      %2953 = vperm.xlu0 %2952, %v2511
      %v2954 = vpop.permute.xlu0 %2953
      %2957 = vset.pattern.permute.xlu0 0
      %2958 = vperm.xlu0 %2957, %v2512
      %v2959 = vpop.permute.xlu0 %2958
      %2962 = vset.pattern.permute.xlu0 0
      %2963 = vperm.xlu0 %2962, %v2513
      %v2964 = vpop.permute.xlu0 %2963
      %2967 = vset.pattern.permute.xlu0 0
      %2968 = vperm.xlu0 %2967, %v2514
      %v2969 = vpop.permute.xlu0 %2968
      %2972 = vset.pattern.permute.xlu0 0
      %2973 = vperm.xlu0 %2972, %v2515
      %v2974 = vpop.permute.xlu0 %2973
      %2977 = vset.pattern.permute.xlu0 0
      %2978 = vperm.xlu0 %2977, %v2516
      %v2979 = vpop.permute.xlu0 %2978
      %2982 = vset.pattern.permute.xlu0 0
      %2983 = vperm.xlu0 %2982, %v2517
      %v2984 = vpop.permute.xlu0 %2983
      %2987 = vset.pattern.permute.xlu0 0
      %2988 = vperm.xlu0 %2987, %v2518
      %v2989 = vpop.permute.xlu0 %2988
      %2992 = vset.pattern.permute.xlu0 0
      %2993 = vperm.xlu0 %2992, %v2519
      %v2994 = vpop.permute.xlu0 %2993
      %2997 = vset.pattern.permute.xlu0 0
      %2998 = vperm.xlu0 %2997, %v2520
      %v2999 = vpop.permute.xlu0 %2998
      %3002 = vset.pattern.permute.xlu0 0
      %3003 = vperm.xlu0 %3002, %v2521
      %v3004 = vpop.permute.xlu0 %3003
      %3007 = vset.pattern.permute.xlu0 0
      %3008 = vperm.xlu0 %3007, %v2522
      %v3009 = vpop.permute.xlu0 %3008
      %3012 = vset.pattern.permute.xlu0 0
      %3013 = vperm.xlu0 %3012, %v2523
      %v3014 = vpop.permute.xlu0 %3013
      %3017 = vset.pattern.permute.xlu0 0
      %3018 = vperm.xlu0 %3017, %v2524
      %v3019 = vpop.permute.xlu0 %3018
      %3022 = vset.pattern.permute.xlu0 0
      %3023 = vperm.xlu0 %3022, %v2525
      %v3024 = vpop.permute.xlu0 %3023
      %3027 = vset.pattern.permute.xlu0 0
      %3028 = vperm.xlu0 %3027, %v2526
      %v3029 = vpop.permute.xlu0 %3028
      %3032 = vset.pattern.permute.xlu0 0
      %3033 = vperm.xlu0 %3032, %v2527
      %v3034 = vpop.permute.xlu0 %3033
      %3037 = vset.pattern.permute.xlu0 0
      %3038 = vperm.xlu0 %3037, %v2528
      %v3039 = vpop.permute.xlu0 %3038
      %3042 = vset.pattern.permute.xlu0 0
      %3043 = vperm.xlu0 %3042, %v2529
      %v3044 = vpop.permute.xlu0 %3043
      %3047 = vset.pattern.permute.xlu0 0
      %3048 = vperm.xlu0 %3047, %v2530
      %v3049 = vpop.permute.xlu0 %3048
      %3052 = vset.pattern.permute.xlu0 0
      %3053 = vperm.xlu0 %3052, %v2531
      %v3054 = vpop.permute.xlu0 %3053
      %3057 = vset.pattern.permute.xlu0 0
      %3058 = vperm.xlu0 %3057, %v2532
      %v3059 = vpop.permute.xlu0 %3058
      %3062 = vset.pattern.permute.xlu0 0
      %3063 = vperm.xlu0 %3062, %v2533
      %v3064 = vpop.permute.xlu0 %3063
      %3067 = vset.pattern.permute.xlu0 0
      %3068 = vperm.xlu0 %3067, %v2534
      %v3069 = vpop.permute.xlu0 %3068
      %3072 = vset.pattern.permute.xlu0 0
      %3073 = vperm.xlu0 %3072, %v2535
      %v3074 = vpop.permute.xlu0 %3073
      %3077 = vset.pattern.permute.xlu0 0
      %3078 = vperm.xlu0 %3077, %v2536
      %v3079 = vpop.permute.xlu0 %3078
      %3082 = vset.pattern.permute.xlu0 0
      %3083 = vperm.xlu0 %3082, %v2537
      %v3084 = vpop.permute.xlu0 %3083
      %3087 = vset.pattern.permute.xlu0 0
      %3088 = vperm.xlu0 %3087, %v2538
      %v3089 = vpop.permute.xlu0 %3088
      %3092 = vset.pattern.permute.xlu0 0
      %3093 = vperm.xlu0 %3092, %v2539
      %v3094 = vpop.permute.xlu0 %3093
      %3097 = vset.pattern.permute.xlu0 0
      %3098 = vperm.xlu0 %3097, %v2540
      %v3099 = vpop.permute.xlu0 %3098
      %3102 = vset.pattern.permute.xlu0 0
      %3103 = vperm.xlu0 %3102, %v2541
      %v3104 = vpop.permute.xlu0 %3103
      %3107 = vset.pattern.permute.xlu0 0
      %3108 = vperm.xlu0 %3107, %v2542
      %v3109 = vpop.permute.xlu0 %3108
      %3112 = vset.pattern.permute.xlu0 0
      %3113 = vperm.xlu0 %3112, %v2543
      %v3114 = vpop.permute.xlu0 %3113
      %3117 = vset.pattern.permute.xlu0 0
      %3118 = vperm.xlu0 %3117, %v2544
      %v3119 = vpop.permute.xlu0 %3118
      %3122 = vset.pattern.permute.xlu0 0
      %3123 = vperm.xlu0 %3122, %v2545
      %v3124 = vpop.permute.xlu0 %3123
      %3127 = vset.pattern.permute.xlu0 0
      %3128 = vperm.xlu0 %3127, %v2546
      %v3129 = vpop.permute.xlu0 %3128
      %3132 = vset.pattern.permute.xlu0 0
      %3133 = vperm.xlu0 %3132, %v2547
      %v3134 = vpop.permute.xlu0 %3133
      %3137 = vset.pattern.permute.xlu0 0
      %3138 = vperm.xlu0 %3137, %v2548
      %v3139 = vpop.permute.xlu0 %3138
      %3142 = vset.pattern.permute.xlu0 0
      %3143 = vperm.xlu0 %3142, %v2549
      %v3144 = vpop.permute.xlu0 %3143
      %3147 = vset.pattern.permute.xlu0 0
      %3148 = vperm.xlu0 %3147, %v2550
      %v3149 = vpop.permute.xlu0 %3148
      %3152 = vset.pattern.permute.xlu0 0
      %3153 = vperm.xlu0 %3152, %v2551
      %v3154 = vpop.permute.xlu0 %3153
      %3157 = vset.pattern.permute.xlu0 0
      %3158 = vperm.xlu0 %3157, %v2552
      %v3159 = vpop.permute.xlu0 %3158
      %3162 = vset.pattern.permute.xlu0 0
      %3163 = vperm.xlu0 %3162, %v2553
      %v3164 = vpop.permute.xlu0 %3163
      %3167 = vset.pattern.permute.xlu0 0
      %3168 = vperm.xlu0 %3167, %v2554
      %v3169 = vpop.permute.xlu0 %3168
      %3172 = vset.pattern.permute.xlu0 0
      %3173 = vperm.xlu0 %3172, %v2555
      %v3174 = vpop.permute.xlu0 %3173
      %3177 = vset.pattern.permute.xlu0 0
      %3178 = vperm.xlu0 %3177, %v2556
      %v3179 = vpop.permute.xlu0 %3178
      %3182 = vset.pattern.permute.xlu0 0
      %3183 = vperm.xlu0 %3182, %v2557
      %v3184 = vpop.permute.xlu0 %3183
      %3187 = vset.pattern.permute.xlu0 0
      %3188 = vperm.xlu0 %3187, %v2558
      %v3189 = vpop.permute.xlu0 %3188
      %3192 = vset.pattern.permute.xlu0 0
      %3193 = vperm.xlu0 %3192, %v2559
      %v3194 = vpop.permute.xlu0 %3193
      %3197 = vset.pattern.permute.xlu0 0
      %3198 = vperm.xlu0 %3197, %v2560
      %v3199 = vpop.permute.xlu0 %3198
      %3202 = vset.pattern.permute.xlu0 0
      %3203 = vperm.xlu0 %3202, %v2561
      %v3204 = vpop.permute.xlu0 %3203
      %3207 = vset.pattern.permute.xlu0 0
      %3208 = vperm.xlu0 %3207, %v2562
      %v3209 = vpop.permute.xlu0 %3208
      %3212 = vset.pattern.permute.xlu0 0
      %3213 = vperm.xlu0 %3212, %v2563
      %v3214 = vpop.permute.xlu0 %3213
      %3217 = vset.pattern.permute.xlu0 0
      %3218 = vperm.xlu0 %3217, %v2564
      %v3219 = vpop.permute.xlu0 %3218
      %3222 = vset.pattern.permute.xlu0 0
      %3223 = vperm.xlu0 %3222, %v2565
      %v3224 = vpop.permute.xlu0 %3223
      %3227 = vset.pattern.permute.xlu0 0
      %3228 = vperm.xlu0 %3227, %v2566
      %v3229 = vpop.permute.xlu0 %3228
      %3232 = vset.pattern.permute.xlu0 0
      %3233 = vperm.xlu0 %3232, %v2567
      %v3234 = vpop.permute.xlu0 %3233
      %3237 = vset.pattern.permute.xlu0 0
      %3238 = vperm.xlu0 %3237, %v2568
      %v3239 = vpop.permute.xlu0 %3238
      %3242 = vset.pattern.permute.xlu0 0
      %3243 = vperm.xlu0 %3242, %v2569
      %v3244 = vpop.permute.xlu0 %3243
      %3247 = vset.pattern.permute.xlu0 0
      %3248 = vperm.xlu0 %3247, %v2570
      %v3249 = vpop.permute.xlu0 %3248
      %3252 = vset.pattern.permute.xlu0 0
      %3253 = vperm.xlu0 %3252, %v2571
      %v3254 = vpop.permute.xlu0 %3253
      %3257 = vset.pattern.permute.xlu0 0
      %3258 = vperm.xlu0 %3257, %v2572
      %v3259 = vpop.permute.xlu0 %3258
      %3262 = vset.pattern.permute.xlu0 0
      %3263 = vperm.xlu0 %3262, %v2573
      %v3264 = vpop.permute.xlu0 %3263
      %3267 = vset.pattern.permute.xlu0 0
      %3268 = vperm.xlu0 %3267, %v2574
      %v3269 = vpop.permute.xlu0 %3268
      %3272 = vset.pattern.permute.xlu0 0
      %3273 = vperm.xlu0 %3272, %v2575
      %v3274 = vpop.permute.xlu0 %3273
      %3277 = vset.pattern.permute.xlu0 0
      %3278 = vperm.xlu0 %3277, %v2576
      %v3279 = vpop.permute.xlu0 %3278
      %3282 = vset.pattern.permute.xlu0 0
      %3283 = vperm.xlu0 %3282, %v2577
      %v3284 = vpop.permute.xlu0 %3283
      %3287 = vset.pattern.permute.xlu0 0
      %3288 = vperm.xlu0 %3287, %v2578
      %v3289 = vpop.permute.xlu0 %3288
      %3292 = vset.pattern.permute.xlu0 0
      %3293 = vperm.xlu0 %3292, %v2579
      %v3294 = vpop.permute.xlu0 %3293
      %3297 = vset.pattern.permute.xlu0 0
      %3298 = vperm.xlu0 %3297, %v2580
      %v3299 = vpop.permute.xlu0 %3298
      %3302 = vset.pattern.permute.xlu0 0
      %3303 = vperm.xlu0 %3302, %v2581
      %v3304 = vpop.permute.xlu0 %3303
      %3307 = vset.pattern.permute.xlu0 0
      %3308 = vperm.xlu0 %3307, %v2582
      %v3309 = vpop.permute.xlu0 %3308
      %3312 = vset.pattern.permute.xlu0 0
      %3313 = vperm.xlu0 %3312, %v2583
      %v3314 = vpop.permute.xlu0 %3313
      %3317 = vset.pattern.permute.xlu0 0
      %3318 = vperm.xlu0 %3317, %v2584
      %v3319 = vpop.permute.xlu0 %3318
      %3322 = vset.pattern.permute.xlu0 0
      %3323 = vperm.xlu0 %3322, %v2585
      %v3324 = vpop.permute.xlu0 %3323
      %3327 = vset.pattern.permute.xlu0 0
      %3328 = vperm.xlu0 %3327, %v2586
      %v3329 = vpop.permute.xlu0 %3328
      %3332 = vset.pattern.permute.xlu0 0
      %3333 = vperm.xlu0 %3332, %v2587
      %v3334 = vpop.permute.xlu0 %3333
      %3337 = vset.pattern.permute.xlu0 0
      %3338 = vperm.xlu0 %3337, %v2588
      %v3339 = vpop.permute.xlu0 %3338
      %3342 = vset.pattern.permute.xlu0 0
      %3343 = vperm.xlu0 %3342, %v2589
      %v3344 = vpop.permute.xlu0 %3343
      %3347 = vset.pattern.permute.xlu0 0
      %3348 = vperm.xlu0 %3347, %v2590
      %v3349 = vpop.permute.xlu0 %3348
      %3352 = vset.pattern.permute.xlu0 0
      %3353 = vperm.xlu0 %3352, %v2591
      %v3354 = vpop.permute.xlu0 %3353
      %3357 = vset.pattern.permute.xlu0 0
      %3358 = vperm.xlu0 %3357, %v2592
      %v3359 = vpop.permute.xlu0 %3358
      %3362 = vset.pattern.permute.xlu0 0
      %3363 = vperm.xlu0 %3362, %v2593
      %v3364 = vpop.permute.xlu0 %3363
      %3367 = vset.pattern.permute.xlu0 0
      %3368 = vperm.xlu0 %3367, %v2594
      %v3369 = vpop.permute.xlu0 %3368
      %3372 = vset.pattern.permute.xlu0 0
      %3373 = vperm.xlu0 %3372, %v2595
      %v3374 = vpop.permute.xlu0 %3373
      %3377 = vset.pattern.permute.xlu0 0
      %3378 = vperm.xlu0 %3377, %v2596
      %v3379 = vpop.permute.xlu0 %3378
      %3382 = vset.pattern.permute.xlu0 0
      %3383 = vperm.xlu0 %3382, %v2597
      %v3384 = vpop.permute.xlu0 %3383
      %3387 = vset.pattern.permute.xlu0 0
      %3388 = vperm.xlu0 %3387, %v2598
      %v3389 = vpop.permute.xlu0 %3388
      %3392 = vset.pattern.permute.xlu0 0
      %3393 = vperm.xlu0 %3392, %v2599
      %v3394 = vpop.permute.xlu0 %3393
      %3397 = vset.pattern.permute.xlu0 0
      %3398 = vperm.xlu0 %3397, %v2600
      %v3399 = vpop.permute.xlu0 %3398
      %3402 = vset.pattern.permute.xlu0 0
      %3403 = vperm.xlu0 %3402, %v2601
      %v3404 = vpop.permute.xlu0 %3403
      %3407 = vset.pattern.permute.xlu0 0
      %3408 = vperm.xlu0 %3407, %v2602
      %v3409 = vpop.permute.xlu0 %3408
      %3412 = vset.pattern.permute.xlu0 0
      %3413 = vperm.xlu0 %3412, %v2603
      %v3414 = vpop.permute.xlu0 %3413
      %3417 = vset.pattern.permute.xlu0 0
      %3418 = vperm.xlu0 %3417, %v2604
      %v3419 = vpop.permute.xlu0 %3418
      %3422 = vset.pattern.permute.xlu0 0
      %3423 = vperm.xlu0 %3422, %v2605
      %v3424 = vpop.permute.xlu0 %3423
      %3427 = vset.pattern.permute.xlu0 0
      %3428 = vperm.xlu0 %3427, %v2606
      %v3429 = vpop.permute.xlu0 %3428
      %3432 = vset.pattern.permute.xlu0 0
      %3433 = vperm.xlu0 %3432, %v2607
      %v3434 = vpop.permute.xlu0 %3433
      %3437 = vset.pattern.permute.xlu0 0
      %3438 = vperm.xlu0 %3437, %v2608
      %v3439 = vpop.permute.xlu0 %3438
      %3442 = vset.pattern.permute.xlu0 0
      %3443 = vperm.xlu0 %3442, %v2609
      %v3444 = vpop.permute.xlu0 %3443
      %3447 = vset.pattern.permute.xlu0 0
      %3448 = vperm.xlu0 %3447, %v2610
      %v3449 = vpop.permute.xlu0 %3448
      %3452 = vset.pattern.permute.xlu0 0
      %3453 = vperm.xlu0 %3452, %v2611
      %v3454 = vpop.permute.xlu0 %3453
      %3457 = vset.pattern.permute.xlu0 0
      %3458 = vperm.xlu0 %3457, %v2612
      %v3459 = vpop.permute.xlu0 %3458
      %3462 = vset.pattern.permute.xlu0 0
      %3463 = vperm.xlu0 %3462, %v2613
      %v3464 = vpop.permute.xlu0 %3463
      %3467 = vset.pattern.permute.xlu0 0
      %3468 = vperm.xlu0 %3467, %v2614
      %v3469 = vpop.permute.xlu0 %3468
      %3472 = vset.pattern.permute.xlu0 0
      %3473 = vperm.xlu0 %3472, %v2615
      %v3474 = vpop.permute.xlu0 %3473
      %3477 = vset.pattern.permute.xlu0 0
      %3478 = vperm.xlu0 %3477, %v2616
      %v3479 = vpop.permute.xlu0 %3478
      %3482 = vset.pattern.permute.xlu0 0
      %3483 = vperm.xlu0 %3482, %v2617
      %v3484 = vpop.permute.xlu0 %3483
      %3487 = vset.pattern.permute.xlu0 0
      %3488 = vperm.xlu0 %3487, %v2618
      %v3489 = vpop.permute.xlu0 %3488
      %3492 = vset.pattern.permute.xlu0 0
      %3493 = vperm.xlu0 %3492, %v2619
      %v3494 = vpop.permute.xlu0 %3493
      %3497 = vset.pattern.permute.xlu0 0
      %3498 = vperm.xlu0 %3497, %v2620
      %v3499 = vpop.permute.xlu0 %3498
      %3502 = vset.pattern.permute.xlu0 0
      %3503 = vperm.xlu0 %3502, %v2621
      %v3504 = vpop.permute.xlu0 %3503
      %3507 = vset.pattern.permute.xlu0 0
      %3508 = vperm.xlu0 %3507, %v2622
      %v3509 = vpop.permute.xlu0 %3508
      %3512 = vset.pattern.permute.xlu0 0
      %3513 = vperm.xlu0 %3512, %v2623
      %v3514 = vpop.permute.xlu0 %3513
      %3517 = vset.pattern.permute.xlu0 0
      %3518 = vperm.xlu0 %3517, %v2624
      %v3519 = vpop.permute.xlu0 %3518
      %3522 = vset.pattern.permute.xlu0 0
      %3523 = vperm.xlu0 %3522, %v2625
      %v3524 = vpop.permute.xlu0 %3523
      %3527 = vset.pattern.permute.xlu0 0
      %3528 = vperm.xlu0 %3527, %v2626
      %v3529 = vpop.permute.xlu0 %3528
      %3532 = vset.pattern.permute.xlu0 0
      %3533 = vperm.xlu0 %3532, %v2627
      %v3534 = vpop.permute.xlu0 %3533
      %3537 = vset.pattern.permute.xlu0 0
      %3538 = vperm.xlu0 %3537, %v2628
      %v3539 = vpop.permute.xlu0 %3538
      %3542 = vset.pattern.permute.xlu0 0
      %3543 = vperm.xlu0 %3542, %v2629
      %v3544 = vpop.permute.xlu0 %3543
      %3547 = vset.pattern.permute.xlu0 0
      %3548 = vperm.xlu0 %3547, %v2630
      %v3549 = vpop.permute.xlu0 %3548
      %3552 = vset.pattern.permute.xlu0 0
      %3553 = vperm.xlu0 %3552, %v2631
      %v3554 = vpop.permute.xlu0 %3553
      %3557 = vset.pattern.permute.xlu0 0
      %3558 = vperm.xlu0 %3557, %v2632
      %v3559 = vpop.permute.xlu0 %3558
      %3562 = vset.pattern.permute.xlu0 0
      %3563 = vperm.xlu0 %3562, %v2633
      %v3564 = vpop.permute.xlu0 %3563
      %3567 = vset.pattern.permute.xlu0 0
      %3568 = vperm.xlu0 %3567, %v2634
      %v3569 = vpop.permute.xlu0 %3568
      %3572 = vset.pattern.permute.xlu0 0
      %3573 = vperm.xlu0 %3572, %v2635
      %v3574 = vpop.permute.xlu0 %3573
      %3577 = vset.pattern.permute.xlu0 0
      %3578 = vperm.xlu0 %3577, %v2636
      %v3579 = vpop.permute.xlu0 %3578
      %3582 = vset.pattern.permute.xlu0 0
      %3583 = vperm.xlu0 %3582, %v2637
      %v3584 = vpop.permute.xlu0 %3583
      %3587 = vset.pattern.permute.xlu0 0
      %3588 = vperm.xlu0 %3587, %v2638
      %v3589 = vpop.permute.xlu0 %3588
      %3592 = vset.pattern.permute.xlu0 0
      %3593 = vperm.xlu0 %3592, %v2639
      %v3594 = vpop.permute.xlu0 %3593
      %3597 = vset.pattern.permute.xlu0 0
      %3598 = vperm.xlu0 %3597, %v2640
      %v3599 = vpop.permute.xlu0 %3598
      %3602 = vset.pattern.permute.xlu0 0
      %3603 = vperm.xlu0 %3602, %v2641
      %v3604 = vpop.permute.xlu0 %3603
      %3607 = vset.pattern.permute.xlu0 0
      %3608 = vperm.xlu0 %3607, %v2642
      %v3609 = vpop.permute.xlu0 %3608
      %3612 = vset.pattern.permute.xlu0 0
      %3613 = vperm.xlu0 %3612, %v2643
      %v3614 = vpop.permute.xlu0 %3613
      %3617 = vset.pattern.permute.xlu0 0
      %3618 = vperm.xlu0 %3617, %v2644
      %v3619 = vpop.permute.xlu0 %3618
      %3622 = vset.pattern.permute.xlu0 0
      %3623 = vperm.xlu0 %3622, %v2645
      %v3624 = vpop.permute.xlu0 %3623
      %3627 = vset.pattern.permute.xlu0 0
      %3628 = vperm.xlu0 %3627, %v2646
      %v3629 = vpop.permute.xlu0 %3628
      %3632 = vset.pattern.permute.xlu0 0
      %3633 = vperm.xlu0 %3632, %v2647
      %v3634 = vpop.permute.xlu0 %3633
      %3637 = vset.pattern.permute.xlu0 0
      %3638 = vperm.xlu0 %3637, %v2648
      %v3639 = vpop.permute.xlu0 %3638
      %3642 = vset.pattern.permute.xlu0 0
      %3643 = vperm.xlu0 %3642, %v2649
      %v3644 = vpop.permute.xlu0 %3643
      %3647 = vset.pattern.permute.xlu0 0
      %3648 = vperm.xlu0 %3647, %v2650
      %v3649 = vpop.permute.xlu0 %3648
      %3652 = vset.pattern.permute.xlu0 0
      %3653 = vperm.xlu0 %3652, %v2651
      %v3654 = vpop.permute.xlu0 %3653
      %3657 = vset.pattern.permute.xlu0 0
      %3658 = vperm.xlu0 %3657, %v2652
      %v3659 = vpop.permute.xlu0 %3658
      %3662 = vset.pattern.permute.xlu0 0
      %3663 = vperm.xlu0 %3662, %v2653
      %v3664 = vpop.permute.xlu0 %3663
      %3667 = vset.pattern.permute.xlu0 0
      %3668 = vperm.xlu0 %3667, %v2654
      %v3669 = vpop.permute.xlu0 %3668
      %3672 = vset.pattern.permute.xlu0 0
      %3673 = vperm.xlu0 %3672, %v2655
      %v3674 = vpop.permute.xlu0 %3673
      %3677 = vset.pattern.permute.xlu0 0
      %3678 = vperm.xlu0 %3677, %v2656
      %v3679 = vpop.permute.xlu0 %3678
      %3682 = vset.pattern.permute.xlu0 0
      %3683 = vperm.xlu0 %3682, %v2657
      %v3684 = vpop.permute.xlu0 %3683
      %3687 = vset.pattern.permute.xlu0 0
      %3688 = vperm.xlu0 %3687, %v2658
      %v3689 = vpop.permute.xlu0 %3688
      %3692 = vset.pattern.permute.xlu0 0
      %3693 = vperm.xlu0 %3692, %v2659
      %v3694 = vpop.permute.xlu0 %3693
      %3697 = vset.pattern.permute.xlu0 0
      %3698 = vperm.xlu0 %3697, %v2660
      %v3699 = vpop.permute.xlu0 %3698
      %3702 = vset.pattern.permute.xlu0 0
      %3703 = vperm.xlu0 %3702, %v2661
      %v3704 = vpop.permute.xlu0 %3703
      %3707 = vset.pattern.permute.xlu0 0
      %3708 = vperm.xlu0 %3707, %v2662
      %v3709 = vpop.permute.xlu0 %3708
      %3712 = vset.pattern.permute.xlu0 0
      %3713 = vperm.xlu0 %3712, %v2663
      %v3714 = vpop.permute.xlu0 %3713
      %3717 = vset.pattern.permute.xlu0 0
      %3718 = vperm.xlu0 %3717, %v2664
      %v3719 = vpop.permute.xlu0 %3718
      %3722 = vset.pattern.permute.xlu0 0
      %3723 = vperm.xlu0 %3722, %v2665
      %v3724 = vpop.permute.xlu0 %3723
      %3727 = vset.pattern.permute.xlu0 0
      %3728 = vperm.xlu0 %3727, %v2666
      %v3729 = vpop.permute.xlu0 %3728
      %3732 = vset.pattern.permute.xlu0 0
      %3733 = vperm.xlu0 %3732, %v2667
      %v3734 = vpop.permute.xlu0 %3733
      %3737 = vset.pattern.permute.xlu0 0
      %3738 = vperm.xlu0 %3737, %v2668
      %v3739 = vpop.permute.xlu0 %3738
      %3742 = vset.pattern.permute.xlu0 0
      %3743 = vperm.xlu0 %3742, %v2669
      %v3744 = vpop.permute.xlu0 %3743
      %3747 = vset.pattern.permute.xlu0 0
      %3748 = vperm.xlu0 %3747, %v2670
      %v3749 = vpop.permute.xlu0 %3748
      %3752 = vset.pattern.permute.xlu0 0
      %3753 = vperm.xlu0 %3752, %v2671
      %v3754 = vpop.permute.xlu0 %3753
      %3757 = vset.pattern.permute.xlu0 0
      %3758 = vperm.xlu0 %3757, %v2672
      %v3759 = vpop.permute.xlu0 %3758
      %3762 = vset.pattern.permute.xlu0 0
      %3763 = vperm.xlu0 %3762, %v2673
      %v3764 = vpop.permute.xlu0 %3763
      %3767 = vset.pattern.permute.xlu0 0
      %3768 = vperm.xlu0 %3767, %v2674
      %v3769 = vpop.permute.xlu0 %3768
      %3772 = vset.pattern.permute.xlu0 0
      %3773 = vperm.xlu0 %3772, %v2675
      %v3774 = vpop.permute.xlu0 %3773
      %3777 = vset.pattern.permute.xlu0 0
      %3778 = vperm.xlu0 %3777, %v2676
      %v3779 = vpop.permute.xlu0 %3778
      %3782 = vset.pattern.permute.xlu0 0
      %3783 = vperm.xlu0 %3782, %v2677
      %v3784 = vpop.permute.xlu0 %3783
      %3787 = vset.pattern.permute.xlu0 0
      %3788 = vperm.xlu0 %3787, %v2678
      %v3789 = vpop.permute.xlu0 %3788
      %3792 = vset.pattern.permute.xlu0 0
      %3793 = vperm.xlu0 %3792, %v2679
      %v3794 = vpop.permute.xlu0 %3793
      %3797 = vset.pattern.permute.xlu0 0
      %3798 = vperm.xlu0 %3797, %v2680
      %v3799 = vpop.permute.xlu0 %3798
      %3802 = vset.pattern.permute.xlu0 0
      %3803 = vperm.xlu0 %3802, %v2681
      %v3804 = vpop.permute.xlu0 %3803
      %3807 = vset.pattern.permute.xlu0 0
      %3808 = vperm.xlu0 %3807, %v2682
      %v3809 = vpop.permute.xlu0 %3808
      %3812 = vset.pattern.permute.xlu0 0
      %3813 = vperm.xlu0 %3812, %v2683
      %v3814 = vpop.permute.xlu0 %3813
      %3817 = vset.pattern.permute.xlu0 0
      %3818 = vperm.xlu0 %3817, %v2684
      %v3819 = vpop.permute.xlu0 %3818
      %3822 = vset.pattern.permute.xlu0 0
      %3823 = vperm.xlu0 %3822, %v2685
      %v3824 = vpop.permute.xlu0 %3823
      %3827 = vset.pattern.permute.xlu0 0
      %3828 = vperm.xlu0 %3827, %v2686
      %v3829 = vpop.permute.xlu0 %3828
      %3832 = vset.pattern.permute.xlu0 0
      %3833 = vperm.xlu0 %3832, %v2687
      %v3834 = vpop.permute.xlu0 %3833
      %3837 = vset.pattern.permute.xlu0 0
      %3838 = vperm.xlu0 %3837, %v2688
      %v3839 = vpop.permute.xlu0 %3838
      %3842 = vset.pattern.permute.xlu0 0
      %3843 = vperm.xlu0 %3842, %v2689
      %v3844 = vpop.permute.xlu0 %3843
      %3847 = vset.pattern.permute.xlu0 0
      %3848 = vperm.xlu0 %3847, %v2690
      %v3849 = vpop.permute.xlu0 %3848
      %3852 = vset.pattern.permute.xlu0 0
      %3853 = vperm.xlu0 %3852, %v2691
      %v3854 = vpop.permute.xlu0 %3853
      %3857 = vset.pattern.permute.xlu0 0
      %3858 = vperm.xlu0 %3857, %v2692
      %v3859 = vpop.permute.xlu0 %3858
      %3862 = vset.pattern.permute.xlu0 0
      %3863 = vperm.xlu0 %3862, %v2693
      %v3864 = vpop.permute.xlu0 %3863
      %3867 = vset.pattern.permute.xlu0 0
      %3868 = vperm.xlu0 %3867, %v2694
      %v3869 = vpop.permute.xlu0 %3868
      %3872 = vset.pattern.permute.xlu0 0
      %3873 = vperm.xlu0 %3872, %v2695
      %v3874 = vpop.permute.xlu0 %3873
      %3877 = vset.pattern.permute.xlu0 0
      %3878 = vperm.xlu0 %3877, %v2696
      %v3879 = vpop.permute.xlu0 %3878
      %3882 = vset.pattern.permute.xlu0 0
      %3883 = vperm.xlu0 %3882, %v2697
      %v3884 = vpop.permute.xlu0 %3883
      %3887 = vset.pattern.permute.xlu0 0
      %3888 = vperm.xlu0 %3887, %v2698
      %v3889 = vpop.permute.xlu0 %3888
      %3892 = vset.pattern.permute.xlu0 0
      %3893 = vperm.xlu0 %3892, %v2699
      %v3894 = vpop.permute.xlu0 %3893
      %3897 = vset.pattern.permute.xlu0 0
      %3898 = vperm.xlu0 %3897, %v2700
      %v3899 = vpop.permute.xlu0 %3898
      %3902 = vset.pattern.permute.xlu0 0
      %3903 = vperm.xlu0 %3902, %v2701
      %v3904 = vpop.permute.xlu0 %3903
      %3907 = vset.pattern.permute.xlu0 0
      %3908 = vperm.xlu0 %3907, %v2702
      %v3909 = vpop.permute.xlu0 %3908
      %3912 = vset.pattern.permute.xlu0 0
      %3913 = vperm.xlu0 %3912, %v2703
      %v3914 = vpop.permute.xlu0 %3913
      %3917 = vset.pattern.permute.xlu0 0
      %3918 = vperm.xlu0 %3917, %v2704
      %v3919 = vpop.permute.xlu0 %3918
      %3922 = vset.pattern.permute.xlu0 0
      %3923 = vperm.xlu0 %3922, %v2705
      %v3924 = vpop.permute.xlu0 %3923
      %3927 = vset.pattern.permute.xlu0 0
      %3928 = vperm.xlu0 %3927, %v2706
      %v3929 = vpop.permute.xlu0 %3928
      %3932 = vset.pattern.permute.xlu0 0
      %3933 = vperm.xlu0 %3932, %v2707
      %v3934 = vpop.permute.xlu0 %3933
      %3937 = vset.pattern.permute.xlu0 0
      %3938 = vperm.xlu0 %3937, %v2708
      %v3939 = vpop.permute.xlu0 %3938
      %3942 = vset.pattern.permute.xlu0 0
      %3943 = vperm.xlu0 %3942, %v2709
      %v3944 = vpop.permute.xlu0 %3943
      %3947 = vset.pattern.permute.xlu0 0
      %3948 = vperm.xlu0 %3947, %v2710
      %v3949 = vpop.permute.xlu0 %3948
      %3952 = vset.pattern.permute.xlu0 0
      %3953 = vperm.xlu0 %3952, %v2711
      %v3954 = vpop.permute.xlu0 %3953
      %3957 = vset.pattern.permute.xlu0 0
      %3958 = vperm.xlu0 %3957, %v2712
      %v3959 = vpop.permute.xlu0 %3958
      %3962 = vset.pattern.permute.xlu0 0
      %3963 = vperm.xlu0 %3962, %v2713
      %v3964 = vpop.permute.xlu0 %3963
      %3967 = vset.pattern.permute.xlu0 0
      %3968 = vperm.xlu0 %3967, %v2714
      %v3969 = vpop.permute.xlu0 %3968
      %3972 = vset.pattern.permute.xlu0 0
      %3973 = vperm.xlu0 %3972, %v2715
      %v3974 = vpop.permute.xlu0 %3973
      %3977 = vset.pattern.permute.xlu0 0
      %3978 = vperm.xlu0 %3977, %v2716
      %v3979 = vpop.permute.xlu0 %3978
      %3982 = vset.pattern.permute.xlu0 0
      %3983 = vperm.xlu0 %3982, %v2717
      %v3984 = vpop.permute.xlu0 %3983
      %3987 = vset.pattern.permute.xlu0 0
      %3988 = vperm.xlu0 %3987, %v2718
      %v3989 = vpop.permute.xlu0 %3988
      %3992 = vset.pattern.permute.xlu0 0
      %3993 = vperm.xlu0 %3992, %v2719
      %v3994 = vpop.permute.xlu0 %3993
      %3997 = vset.pattern.permute.xlu0 0
      %3998 = vperm.xlu0 %3997, %v2720
      %v3999 = vpop.permute.xlu0 %3998
      %4002 = vset.pattern.permute.xlu0 0
      %4003 = vperm.xlu0 %4002, %v2721
      %v4004 = vpop.permute.xlu0 %4003
      %4007 = vset.pattern.permute.xlu0 0
      %4008 = vperm.xlu0 %4007, %v2722
      %v4009 = vpop.permute.xlu0 %4008
      %4012 = vset.pattern.permute.xlu0 0
      %4013 = vperm.xlu0 %4012, %v2723
      %v4014 = vpop.permute.xlu0 %4013
      %4017 = vset.pattern.permute.xlu0 0
      %4018 = vperm.xlu0 %4017, %v2724
      %v4019 = vpop.permute.xlu0 %4018
      %4022 = vset.pattern.permute.xlu0 0
      %4023 = vperm.xlu0 %4022, %v2725
      %v4024 = vpop.permute.xlu0 %4023
      %4027 = vset.pattern.permute.xlu0 0
      %4028 = vperm.xlu0 %4027, %v2726
      %v4029 = vpop.permute.xlu0 %4028
      %4032 = vset.pattern.permute.xlu0 0
      %4033 = vperm.xlu0 %4032, %v2727
      %v4034 = vpop.permute.xlu0 %4033
      %4037 = vset.pattern.permute.xlu0 0
      %4038 = vperm.xlu0 %4037, %v2728
      %v4039 = vpop.permute.xlu0 %4038
      %4042 = vset.pattern.permute.xlu0 0
      %4043 = vperm.xlu0 %4042, %v2729
      %v4044 = vpop.permute.xlu0 %4043
      %4047 = vset.pattern.permute.xlu0 0
      %4048 = vperm.xlu0 %4047, %v2730
      %v4049 = vpop.permute.xlu0 %4048
      %4052 = vset.pattern.permute.xlu0 0
      %4053 = vperm.xlu0 %4052, %v2731
      %v4054 = vpop.permute.xlu0 %4053
      %4057 = vset.pattern.permute.xlu0 0
      %4058 = vperm.xlu0 %4057, %v2732
      %v4059 = vpop.permute.xlu0 %4058
      %4062 = vset.pattern.permute.xlu0 0
      %4063 = vperm.xlu0 %4062, %v2733
      %v4064 = vpop.permute.xlu0 %4063
      %4067 = vset.pattern.permute.xlu0 0
      %4068 = vperm.xlu0 %4067, %v2734
      %v4069 = vpop.permute.xlu0 %4068
      %4072 = vset.pattern.permute.xlu0 0
      %4073 = vperm.xlu0 %4072, %v2735
      %v4074 = vpop.permute.xlu0 %4073
      %4077 = vset.pattern.permute.xlu0 0
      %4078 = vperm.xlu0 %4077, %v2736
      %v4079 = vpop.permute.xlu0 %4078
      %4082 = vset.pattern.permute.xlu0 0
      %4083 = vperm.xlu0 %4082, %v2737
      %v4084 = vpop.permute.xlu0 %4083
      %4087 = vset.pattern.permute.xlu0 0
      %4088 = vperm.xlu0 %4087, %v2738
      %v4089 = vpop.permute.xlu0 %4088
      %4092 = vset.pattern.permute.xlu0 0
      %4093 = vperm.xlu0 %4092, %v2739
      %v4094 = vpop.permute.xlu0 %4093
      %4097 = vset.pattern.permute.xlu0 0
      %4098 = vperm.xlu0 %4097, %v2740
      %v4099 = vpop.permute.xlu0 %4098
      %4102 = vset.pattern.permute.xlu0 0
      %4103 = vperm.xlu0 %4102, %v2741
      %v4104 = vpop.permute.xlu0 %4103
      %4107 = vset.pattern.permute.xlu0 0
      %4108 = vperm.xlu0 %4107, %v2742
      %v4109 = vpop.permute.xlu0 %4108
      %4112 = vset.pattern.permute.xlu0 0
      %4113 = vperm.xlu0 %4112, %v2743
      %v4114 = vpop.permute.xlu0 %4113
      %4117 = vset.pattern.permute.xlu0 0
      %4118 = vperm.xlu0 %4117, %v2744
      %v4119 = vpop.permute.xlu0 %4118
      %4122 = vset.pattern.permute.xlu0 0
      %4123 = vperm.xlu0 %4122, %v2745
      %v4124 = vpop.permute.xlu0 %4123
      %4127 = vset.pattern.permute.xlu0 0
      %4128 = vperm.xlu0 %4127, %v2746
      %v4129 = vpop.permute.xlu0 %4128
      %4132 = vset.pattern.permute.xlu0 0
      %4133 = vperm.xlu0 %4132, %v2747
      %v4134 = vpop.permute.xlu0 %4133
      %4137 = vset.pattern.permute.xlu0 0
      %4138 = vperm.xlu0 %4137, %v2748
      %v4139 = vpop.permute.xlu0 %4138
      %4142 = vset.pattern.permute.xlu0 0
      %4143 = vperm.xlu0 %4142, %v2749
      %v4144 = vpop.permute.xlu0 %4143
      %4147 = vset.pattern.permute.xlu0 0
      %4148 = vperm.xlu0 %4147, %v2750
      %v4149 = vpop.permute.xlu0 %4148
      %4152 = vset.pattern.permute.xlu0 0
      %4153 = vperm.xlu0 %4152, %v2751
      %v4154 = vpop.permute.xlu0 %4153
      %4157 = vset.pattern.permute.xlu0 0
      %4158 = vperm.xlu0 %4157, %v2752
      %v4159 = vpop.permute.xlu0 %4158
      %4162 = vset.pattern.permute.xlu0 0
      %4163 = vperm.xlu0 %4162, %v2753
      %v4164 = vpop.permute.xlu0 %4163
      %4167 = vset.pattern.permute.xlu0 0
      %4168 = vperm.xlu0 %4167, %v2754
      %v4169 = vpop.permute.xlu0 %4168
      %4172 = vset.pattern.permute.xlu0 0
      %4173 = vperm.xlu0 %4172, %v2755
      %v4174 = vpop.permute.xlu0 %4173
      %4177 = vset.pattern.permute.xlu0 0
      %4178 = vperm.xlu0 %4177, %v2756
      %v4179 = vpop.permute.xlu0 %4178
      %4182 = vset.pattern.permute.xlu0 0
      %4183 = vperm.xlu0 %4182, %v2757
      %v4184 = vpop.permute.xlu0 %4183
      %4187 = vset.pattern.permute.xlu0 0
      %4188 = vperm.xlu0 %4187, %v2758
      %v4189 = vpop.permute.xlu0 %4188
      %4192 = vset.pattern.permute.xlu0 0
      %4193 = vperm.xlu0 %4192, %v2759
      %v4194 = vpop.permute.xlu0 %4193
      %4197 = vset.pattern.permute.xlu0 0
      %4198 = vperm.xlu0 %4197, %v2760
      %v4199 = vpop.permute.xlu0 %4198
      %4202 = vset.pattern.permute.xlu0 0
      %4203 = vperm.xlu0 %4202, %v2761
      %v4204 = vpop.permute.xlu0 %4203
      %4207 = vset.pattern.permute.xlu0 0
      %4208 = vperm.xlu0 %4207, %v2762
      %v4209 = vpop.permute.xlu0 %4208
      %4212 = vset.pattern.permute.xlu0 0
      %4213 = vperm.xlu0 %4212, %v2763
      %v4214 = vpop.permute.xlu0 %4213
      %4217 = vset.pattern.permute.xlu0 0
      %4218 = vperm.xlu0 %4217, %v2764
      %v4219 = vpop.permute.xlu0 %4218
      %4222 = vset.pattern.permute.xlu0 0
      %4223 = vperm.xlu0 %4222, %v2765
      %v4224 = vpop.permute.xlu0 %4223
      %4227 = vset.pattern.permute.xlu0 0
      %4228 = vperm.xlu0 %4227, %v2766
      %v4229 = vpop.permute.xlu0 %4228
      %4232 = vset.pattern.permute.xlu0 0
      %4233 = vperm.xlu0 %4232, %v2767
      %v4234 = vpop.permute.xlu0 %4233
      %4237 = vset.pattern.permute.xlu0 0
      %4238 = vperm.xlu0 %4237, %v2768
      %v4239 = vpop.permute.xlu0 %4238
      %4242 = vset.pattern.permute.xlu0 0
      %4243 = vperm.xlu0 %4242, %v2769
      %v4244 = vpop.permute.xlu0 %4243
      %4247 = vset.pattern.permute.xlu0 0
      %4248 = vperm.xlu0 %4247, %v2770
      %v4249 = vpop.permute.xlu0 %4248
      %4252 = vset.pattern.permute.xlu0 0
      %4253 = vperm.xlu0 %4252, %v2771
      %v4254 = vpop.permute.xlu0 %4253
      %4257 = vset.pattern.permute.xlu0 0
      %4258 = vperm.xlu0 %4257, %v2772
      %v4259 = vpop.permute.xlu0 %4258
      %4262 = vset.pattern.permute.xlu0 0
      %4263 = vperm.xlu0 %4262, %v2773
      %v4264 = vpop.permute.xlu0 %4263
      %4267 = vset.pattern.permute.xlu0 0
      %4268 = vperm.xlu0 %4267, %v2774
      %v4269 = vpop.permute.xlu0 %4268
      %4272 = vset.pattern.permute.xlu0 0
      %4273 = vperm.xlu0 %4272, %v2775
      %v4274 = vpop.permute.xlu0 %4273
      %4277 = vset.pattern.permute.xlu0 0
      %4278 = vperm.xlu0 %4277, %v2776
      %v4279 = vpop.permute.xlu0 %4278
      %4282 = vset.pattern.permute.xlu0 0
      %4283 = vperm.xlu0 %4282, %v2777
      %v4284 = vpop.permute.xlu0 %4283
      %4287 = vset.pattern.permute.xlu0 0
      %4288 = vperm.xlu0 %4287, %v2778
      %v4289 = vpop.permute.xlu0 %4288
      %4292 = vset.pattern.permute.xlu0 0
      %4293 = vperm.xlu0 %4292, %v2779
      %v4294 = vpop.permute.xlu0 %4293
      %4297 = vset.pattern.permute.xlu0 0
      %4298 = vperm.xlu0 %4297, %v2780
      %v4299 = vpop.permute.xlu0 %4298
      %4302 = vset.pattern.permute.xlu0 0
      %4303 = vperm.xlu0 %4302, %v2781
      %v4304 = vpop.permute.xlu0 %4303
      %4307 = vset.pattern.permute.xlu0 0
      %4308 = vperm.xlu0 %4307, %v2782
      %v4309 = vpop.permute.xlu0 %4308
      %4312 = vset.pattern.permute.xlu0 0
      %4313 = vperm.xlu0 %4312, %v2783
      %v4314 = vpop.permute.xlu0 %4313
      %4317 = vset.pattern.permute.xlu0 0
      %4318 = vperm.xlu0 %4317, %v2784
      %v4319 = vpop.permute.xlu0 %4318
      %4322 = vset.pattern.permute.xlu0 0
      %4323 = vperm.xlu0 %4322, %v2785
      %v4324 = vpop.permute.xlu0 %4323
      %4327 = vset.pattern.permute.xlu0 0
      %4328 = vperm.xlu0 %4327, %v2786
      %v4329 = vpop.permute.xlu0 %4328
      %4332 = vset.pattern.permute.xlu0 0
      %4333 = vperm.xlu0 %4332, %v2787
      %v4334 = vpop.permute.xlu0 %4333
      %4337 = vset.pattern.permute.xlu0 0
      %4338 = vperm.xlu0 %4337, %v2788
      %v4339 = vpop.permute.xlu0 %4338
      %4342 = vset.pattern.permute.xlu0 0
      %4343 = vperm.xlu0 %4342, %v2789
      %v4344 = vpop.permute.xlu0 %4343
      %4347 = vset.pattern.permute.xlu0 0
      %4348 = vperm.xlu0 %4347, %v2790
      %v4349 = vpop.permute.xlu0 %4348
      %4352 = vset.pattern.permute.xlu0 0
      %4353 = vperm.xlu0 %4352, %v2791
      %v4354 = vpop.permute.xlu0 %4353
      %4357 = vset.pattern.permute.xlu0 0
      %4358 = vperm.xlu0 %4357, %v2792
      %v4359 = vpop.permute.xlu0 %4358
      %4362 = vset.pattern.permute.xlu0 0
      %4363 = vperm.xlu0 %4362, %v2793
      %v4364 = vpop.permute.xlu0 %4363
      %4367 = vset.pattern.permute.xlu0 0
      %4368 = vperm.xlu0 %4367, %v2794
      %v4369 = vpop.permute.xlu0 %4368
      %4372 = vset.pattern.permute.xlu0 0
      %4373 = vperm.xlu0 %4372, %v2795
      %v4374 = vpop.permute.xlu0 %4373
      %4377 = vset.pattern.permute.xlu0 0
      %4378 = vperm.xlu0 %4377, %v2796
      %v4379 = vpop.permute.xlu0 %4378
      %4382 = vset.pattern.permute.xlu0 0
      %4383 = vperm.xlu0 %4382, %v2797
      %v4384 = vpop.permute.xlu0 %4383
      %4387 = vset.pattern.permute.xlu0 0
      %4388 = vperm.xlu0 %4387, %v2798
      %v4389 = vpop.permute.xlu0 %4388
      %4392 = vset.pattern.permute.xlu0 0
      %4393 = vperm.xlu0 %4392, %v2799
      %v4394 = vpop.permute.xlu0 %4393
      %4397 = vset.pattern.permute.xlu0 0
      %4398 = vperm.xlu0 %4397, %v2800
      %v4399 = vpop.permute.xlu0 %4398
      %4402 = vset.pattern.permute.xlu0 0
      %4403 = vperm.xlu0 %4402, %v2801
      %v4404 = vpop.permute.xlu0 %4403
      %4407 = vset.pattern.permute.xlu0 0
      %4408 = vperm.xlu0 %4407, %v2802
      %v4409 = vpop.permute.xlu0 %4408
      %4412 = vset.pattern.permute.xlu0 0
      %4413 = vperm.xlu0 %4412, %v2803
      %v4414 = vpop.permute.xlu0 %4413
      %4417 = vset.pattern.permute.xlu0 0
      %4418 = vperm.xlu0 %4417, %v2804
      %v4419 = vpop.permute.xlu0 %4418
      %4422 = vset.pattern.permute.xlu0 0
      %4423 = vperm.xlu0 %4422, %v2805
      %v4424 = vpop.permute.xlu0 %4423
      %4427 = vset.pattern.permute.xlu0 0
      %4428 = vperm.xlu0 %4427, %v2806
      %v4429 = vpop.permute.xlu0 %4428
      %4432 = vset.pattern.permute.xlu0 0
      %4433 = vperm.xlu0 %4432, %v2807
      %v4434 = vpop.permute.xlu0 %4433
      %4437 = vset.pattern.permute.xlu0 0
      %4438 = vperm.xlu0 %4437, %v2808
      %v4439 = vpop.permute.xlu0 %4438
      %4442 = vset.pattern.permute.xlu0 0
      %4443 = vperm.xlu0 %4442, %v2809
      %v4444 = vpop.permute.xlu0 %4443
      %4447 = vset.pattern.permute.xlu0 0
      %4448 = vperm.xlu0 %4447, %v2810
      %v4449 = vpop.permute.xlu0 %4448
      %v4451 = vmul.f32 %v1664, %v2814
      %v4452 = vmul.f32 %v1666, %v2819
      %v4453 = vmul.f32 %v1669, %v2824
      %v4454 = vmul.f32 %v1671, %v2829
      %v4455 = vmul.f32 %v1674, %v2834
      %v4456 = vmul.f32 %v1676, %v2839
      %v4457 = vmul.f32 %v1679, %v2844
      %v4458 = vmul.f32 %v1681, %v2849
      %v4459 = vmul.f32 %v1684, %v2854
      %v4460 = vmul.f32 %v1686, %v2859
      %v4461 = vmul.f32 %v1689, %v2864
      %v4462 = vmul.f32 %v1691, %v2869
      %v4463 = vmul.f32 %v1694, %v2874
      %v4464 = vmul.f32 %v1696, %v2879
      %v4465 = vmul.f32 %v1699, %v2884
      %v4466 = vmul.f32 %v1701, %v2889
      %v4467 = vmul.f32 %v1704, %v2894
      %v4468 = vmul.f32 %v1706, %v2899
      %v4469 = vmul.f32 %v1709, %v2904
      %v4470 = vmul.f32 %v1711, %v2909
      %v4471 = vmul.f32 %v1714, %v2914
      %v4472 = vmul.f32 %v1716, %v2919
      %v4473 = vmul.f32 %v1719, %v2924
      %v4474 = vmul.f32 %v1721, %v2929
      %v4475 = vmul.f32 %v1724, %v2934
      %v4476 = vmul.f32 %v1726, %v2939
      %v4477 = vmul.f32 %v1729, %v2944
      %v4478 = vmul.f32 %v1731, %v2949
      %v4479 = vmul.f32 %v1734, %v2954
      %v4480 = vmul.f32 %v1736, %v2959
      %v4481 = vmul.f32 %v1739, %v2964
      %v4482 = vmul.f32 %v1741, %v2969
      %v4483 = vmul.f32 %v1744, %v2974
      %v4484 = vmul.f32 %v1746, %v2979
      %v4485 = vmul.f32 %v1749, %v2984
      %v4486 = vmul.f32 %v1751, %v2989
      %v4487 = vmul.f32 %v1754, %v2994
      %v4488 = vmul.f32 %v1756, %v2999
      %v4489 = vmul.f32 %v1759, %v3004
      %v4490 = vmul.f32 %v1761, %v3009
      %v4491 = vmul.f32 %v1764, %v3014
      %v4492 = vmul.f32 %v1766, %v3019
      %v4493 = vmul.f32 %v1769, %v3024
      %v4494 = vmul.f32 %v1771, %v3029
      %v4495 = vmul.f32 %v1774, %v3034
      %v4496 = vmul.f32 %v1776, %v3039
      %v4497 = vmul.f32 %v1779, %v3044
      %v4498 = vmul.f32 %v1781, %v3049
      %v4499 = vmul.f32 %v1784, %v3054
      %v4500 = vmul.f32 %v1786, %v3059
      %v4501 = vmul.f32 %v1789, %v3064
      %v4502 = vmul.f32 %v1791, %v3069
      %v4503 = vmul.f32 %v1794, %v3074
      %v4504 = vmul.f32 %v1796, %v3079
      %v4505 = vmul.f32 %v1799, %v3084
      %v4506 = vmul.f32 %v1801, %v3089
      %v4507 = vmul.f32 %v1804, %v3094
      %v4508 = vmul.f32 %v1806, %v3099
      %v4509 = vmul.f32 %v1809, %v3104
      %v4510 = vmul.f32 %v1811, %v3109
      %v4511 = vmul.f32 %v1814, %v3114
      %v4512 = vmul.f32 %v1816, %v3119
      %v4513 = vmul.f32 %v1819, %v3124
      %v4514 = vmul.f32 %v1821, %v3129
      %v4515 = vmul.f32 %v1824, %v3134
      %v4516 = vmul.f32 %v1826, %v3139
      %v4517 = vmul.f32 %v1829, %v3144
      %v4518 = vmul.f32 %v1831, %v3149
      %v4519 = vmul.f32 %v1834, %v3154
      %v4520 = vmul.f32 %v1836, %v3159
      %v4521 = vmul.f32 %v1839, %v3164
      %v4522 = vmul.f32 %v1841, %v3169
      %v4523 = vmul.f32 %v1844, %v3174
      %v4524 = vmul.f32 %v1846, %v3179
      %v4525 = vmul.f32 %v1849, %v3184
      %v4526 = vmul.f32 %v1851, %v3189
      %v4527 = vmul.f32 %v1854, %v3194
      %v4528 = vmul.f32 %v1856, %v3199
      %v4529 = vmul.f32 %v1859, %v3204
      %v4530 = vmul.f32 %v1861, %v3209
      %v4531 = vmul.f32 %v1864, %v3214
      %v4532 = vmul.f32 %v1866, %v3219
      %v4533 = vmul.f32 %v1869, %v3224
      %v4534 = vmul.f32 %v1871, %v3229
      %v4535 = vmul.f32 %v1874, %v3234
      %v4536 = vmul.f32 %v1876, %v3239
      %v4537 = vmul.f32 %v1879, %v3244
      %v4538 = vmul.f32 %v1881, %v3249
      %v4539 = vmul.f32 %v1884, %v3254
      %v4540 = vmul.f32 %v1886, %v3259
      %v4541 = vmul.f32 %v1889, %v3264
      %v4542 = vmul.f32 %v1891, %v3269
      %v4543 = vmul.f32 %v1894, %v3274
      %v4544 = vmul.f32 %v1896, %v3279
      %v4545 = vmul.f32 %v1899, %v3284
      %v4546 = vmul.f32 %v1901, %v3289
      %v4547 = vmul.f32 %v1904, %v3294
      %v4548 = vmul.f32 %v1906, %v3299
      %v4549 = vmul.f32 %v1909, %v3304
      %v4550 = vmul.f32 %v1911, %v3309
      %v4551 = vmul.f32 %v1914, %v3314
      %v4552 = vmul.f32 %v1916, %v3319
      %v4553 = vmul.f32 %v1919, %v3324
      %v4554 = vmul.f32 %v1921, %v3329
      %v4555 = vmul.f32 %v1924, %v3334
      %v4556 = vmul.f32 %v1926, %v3339
      %v4557 = vmul.f32 %v1929, %v3344
      %v4558 = vmul.f32 %v1931, %v3349
      %v4559 = vmul.f32 %v1934, %v3354
      %v4560 = vmul.f32 %v1936, %v3359
      %v4561 = vmul.f32 %v1939, %v3364
      %v4562 = vmul.f32 %v1941, %v3369
      %v4563 = vmul.f32 %v1944, %v3374
      %v4564 = vmul.f32 %v1946, %v3379
      %v4565 = vmul.f32 %v1949, %v3384
      %v4566 = vmul.f32 %v1951, %v3389
      %v4567 = vmul.f32 %v1954, %v3394
      %v4568 = vmul.f32 %v1956, %v3399
      %v4569 = vmul.f32 %v1959, %v3404
      %v4570 = vmul.f32 %v1961, %v3409
      %v4571 = vmul.f32 %v1964, %v3414
      %v4572 = vmul.f32 %v1966, %v3419
      %v4573 = vmul.f32 %v1969, %v3424
      %v4574 = vmul.f32 %v1971, %v3429
      %v4575 = vmul.f32 %v1974, %v3434
      %v4576 = vmul.f32 %v1976, %v3439
      %v4577 = vmul.f32 %v1979, %v3444
      %v4578 = vmul.f32 %v1981, %v3449
      %v4579 = vmul.f32 %v1984, %v3454
      %v4580 = vmul.f32 %v1986, %v3459
      %v4581 = vmul.f32 %v1989, %v3464
      %v4582 = vmul.f32 %v1991, %v3469
      %v4583 = vmul.f32 %v1994, %v3474
      %v4584 = vmul.f32 %v1996, %v3479
      %v4585 = vmul.f32 %v1999, %v3484
      %v4586 = vmul.f32 %v2001, %v3489
      %v4587 = vmul.f32 %v2004, %v3494
      %v4588 = vmul.f32 %v2006, %v3499
      %v4589 = vmul.f32 %v2009, %v3504
      %v4590 = vmul.f32 %v2011, %v3509
      %v4591 = vmul.f32 %v2014, %v3514
      %v4592 = vmul.f32 %v2016, %v3519
      %v4593 = vmul.f32 %v2019, %v3524
      %v4594 = vmul.f32 %v2021, %v3529
      %v4595 = vmul.f32 %v2024, %v3534
      %v4596 = vmul.f32 %v2026, %v3539
      %v4597 = vmul.f32 %v2029, %v3544
      %v4598 = vmul.f32 %v2031, %v3549
      %v4599 = vmul.f32 %v2034, %v3554
      %v4600 = vmul.f32 %v2036, %v3559
      %v4601 = vmul.f32 %v2039, %v3564
      %v4602 = vmul.f32 %v2041, %v3569
      %v4603 = vmul.f32 %v2044, %v3574
      %v4604 = vmul.f32 %v2046, %v3579
      %v4605 = vmul.f32 %v2049, %v3584
      %v4606 = vmul.f32 %v2051, %v3589
      %v4607 = vmul.f32 %v2054, %v3594
      %v4608 = vmul.f32 %v2056, %v3599
      %v4609 = vmul.f32 %v2059, %v3604
      %v4610 = vmul.f32 %v2061, %v3609
      %v4611 = vmul.f32 %v2064, %v3614
      %v4612 = vmul.f32 %v2066, %v3619
      %v4613 = vmul.f32 %v2069, %v3624
      %v4614 = vmul.f32 %v2071, %v3629
      %v4615 = vmul.f32 %v2074, %v3634
      %v4616 = vmul.f32 %v2076, %v3639
      %v4617 = vmul.f32 %v2079, %v3644
      %v4618 = vmul.f32 %v2081, %v3649
      %v4619 = vmul.f32 %v2084, %v3654
      %v4620 = vmul.f32 %v2086, %v3659
      %v4621 = vmul.f32 %v2089, %v3664
      %v4622 = vmul.f32 %v2091, %v3669
      %v4623 = vmul.f32 %v2094, %v3674
      %v4624 = vmul.f32 %v2096, %v3679
      %v4625 = vmul.f32 %v2099, %v3684
      %v4626 = vmul.f32 %v2101, %v3689
      %v4627 = vmul.f32 %v2104, %v3694
      %v4628 = vmul.f32 %v2106, %v3699
      %v4629 = vmul.f32 %v2109, %v3704
      %v4630 = vmul.f32 %v2111, %v3709
      %v4631 = vmul.f32 %v2114, %v3714
      %v4632 = vmul.f32 %v2116, %v3719
      %v4633 = vmul.f32 %v2119, %v3724
      %v4634 = vmul.f32 %v2121, %v3729
      %v4635 = vmul.f32 %v2124, %v3734
      %v4636 = vmul.f32 %v2126, %v3739
      %v4637 = vmul.f32 %v2129, %v3744
      %v4638 = vmul.f32 %v2131, %v3749
      %v4639 = vmul.f32 %v2134, %v3754
      %v4640 = vmul.f32 %v2136, %v3759
      %v4641 = vmul.f32 %v2139, %v3764
      %v4642 = vmul.f32 %v2141, %v3769
      %v4643 = vmul.f32 %v2144, %v3774
      %v4644 = vmul.f32 %v2146, %v3779
      %v4645 = vmul.f32 %v2149, %v3784
      %v4646 = vmul.f32 %v2151, %v3789
      %v4647 = vmul.f32 %v2154, %v3794
      %v4648 = vmul.f32 %v2156, %v3799
      %v4649 = vmul.f32 %v2159, %v3804
      %v4650 = vmul.f32 %v2161, %v3809
      %v4651 = vmul.f32 %v2164, %v3814
      %v4652 = vmul.f32 %v2166, %v3819
      %v4653 = vmul.f32 %v2169, %v3824
      %v4654 = vmul.f32 %v2171, %v3829
      %v4655 = vmul.f32 %v2174, %v3834
      %v4656 = vmul.f32 %v2176, %v3839
      %v4657 = vmul.f32 %v2179, %v3844
      %v4658 = vmul.f32 %v2181, %v3849
      %v4659 = vmul.f32 %v2184, %v3854
      %v4660 = vmul.f32 %v2186, %v3859
      %v4661 = vmul.f32 %v2189, %v3864
      %v4662 = vmul.f32 %v2191, %v3869
      %v4663 = vmul.f32 %v2194, %v3874
      %v4664 = vmul.f32 %v2196, %v3879
      %v4665 = vmul.f32 %v2199, %v3884
      %v4666 = vmul.f32 %v2201, %v3889
      %v4667 = vmul.f32 %v2204, %v3894
      %v4668 = vmul.f32 %v2206, %v3899
      %v4669 = vmul.f32 %v2209, %v3904
      %v4670 = vmul.f32 %v2211, %v3909
      %v4671 = vmul.f32 %v2214, %v3914
      %v4672 = vmul.f32 %v2216, %v3919
      %v4673 = vmul.f32 %v2219, %v3924
      %v4674 = vmul.f32 %v2221, %v3929
      %v4675 = vmul.f32 %v2224, %v3934
      %v4676 = vmul.f32 %v2226, %v3939
      %v4677 = vmul.f32 %v2229, %v3944
      %v4678 = vmul.f32 %v2231, %v3949
      %v4679 = vmul.f32 %v2234, %v3954
      %v4680 = vmul.f32 %v2236, %v3959
      %v4681 = vmul.f32 %v2239, %v3964
      %v4682 = vmul.f32 %v2241, %v3969
      %v4683 = vmul.f32 %v2244, %v3974
      %v4684 = vmul.f32 %v2246, %v3979
      %v4685 = vmul.f32 %v2249, %v3984
      %v4686 = vmul.f32 %v2251, %v3989
      %v4687 = vmul.f32 %v2254, %v3994
      %v4688 = vmul.f32 %v2256, %v3999
      %v4689 = vmul.f32 %v2259, %v4004
      %v4690 = vmul.f32 %v2261, %v4009
      %v4691 = vmul.f32 %v2264, %v4014
      %v4692 = vmul.f32 %v2266, %v4019
      %v4693 = vmul.f32 %v2269, %v4024
      %v4694 = vmul.f32 %v2271, %v4029
      %v4695 = vmul.f32 %v2274, %v4034
      %v4696 = vmul.f32 %v2276, %v4039
      %v4697 = vmul.f32 %v2279, %v4044
      %v4698 = vmul.f32 %v2281, %v4049
      %v4699 = vmul.f32 %v2284, %v4054
      %v4700 = vmul.f32 %v2286, %v4059
      %v4701 = vmul.f32 %v2289, %v4064
      %v4702 = vmul.f32 %v2291, %v4069
      %v4703 = vmul.f32 %v2294, %v4074
      %v4704 = vmul.f32 %v2296, %v4079
      %v4705 = vmul.f32 %v2299, %v4084
      %v4706 = vmul.f32 %v2301, %v4089
      %v4707 = vmul.f32 %v2304, %v4094
      %v4708 = vmul.f32 %v2306, %v4099
      %v4709 = vmul.f32 %v2309, %v4104
      %v4710 = vmul.f32 %v2311, %v4109
      %v4711 = vmul.f32 %v2314, %v4114
      %v4712 = vmul.f32 %v2316, %v4119
      %v4713 = vmul.f32 %v2319, %v4124
      %v4714 = vmul.f32 %v2321, %v4129
      %v4715 = vmul.f32 %v2324, %v4134
      %v4716 = vmul.f32 %v2326, %v4139
      %v4717 = vmul.f32 %v2329, %v4144
      %v4718 = vmul.f32 %v2331, %v4149
      %v4719 = vmul.f32 %v2334, %v4154
      %v4720 = vmul.f32 %v2336, %v4159
      %v4721 = vmul.f32 %v2339, %v4164
      %v4722 = vmul.f32 %v2341, %v4169
      %v4723 = vmul.f32 %v2344, %v4174
      %v4724 = vmul.f32 %v2346, %v4179
      %v4725 = vmul.f32 %v2349, %v4184
      %v4726 = vmul.f32 %v2351, %v4189
      %v4727 = vmul.f32 %v2354, %v4194
      %v4728 = vmul.f32 %v2356, %v4199
      %v4729 = vmul.f32 %v2359, %v4204
      %v4730 = vmul.f32 %v2361, %v4209
      %v4731 = vmul.f32 %v2364, %v4214
      %v4732 = vmul.f32 %v2366, %v4219
      %v4733 = vmul.f32 %v2369, %v4224
      %v4734 = vmul.f32 %v2371, %v4229
      %v4735 = vmul.f32 %v2374, %v4234
      %v4736 = vmul.f32 %v2376, %v4239
      %v4737 = vmul.f32 %v2379, %v4244
      %v4738 = vmul.f32 %v2381, %v4249
      %v4739 = vmul.f32 %v2384, %v4254
      %v4740 = vmul.f32 %v2386, %v4259
      %v4741 = vmul.f32 %v2389, %v4264
      %v4742 = vmul.f32 %v2391, %v4269
      %v4743 = vmul.f32 %v2394, %v4274
      %v4744 = vmul.f32 %v2396, %v4279
      %v4745 = vmul.f32 %v2399, %v4284
      %v4746 = vmul.f32 %v2401, %v4289
      %v4747 = vmul.f32 %v2404, %v4294
      %v4748 = vmul.f32 %v2406, %v4299
      %v4749 = vmul.f32 %v2409, %v4304
      %v4750 = vmul.f32 %v2411, %v4309
      %v4751 = vmul.f32 %v2414, %v4314
      %v4752 = vmul.f32 %v2416, %v4319
      %v4753 = vmul.f32 %v2419, %v4324
      %v4754 = vmul.f32 %v2421, %v4329
      %v4755 = vmul.f32 %v2424, %v4334
      %v4756 = vmul.f32 %v2426, %v4339
      %v4757 = vmul.f32 %v2429, %v4344
      %v4758 = vmul.f32 %v2431, %v4349
      %v4759 = vmul.f32 %v2434, %v4354
      %v4760 = vmul.f32 %v2436, %v4359
      %v4761 = vmul.f32 %v2439, %v4364
      %v4762 = vmul.f32 %v2441, %v4369
      %v4763 = vmul.f32 %v2444, %v4374
      %v4764 = vmul.f32 %v2446, %v4379
      %v4765 = vmul.f32 %v2449, %v4384
      %v4766 = vmul.f32 %v2451, %v4389
      %v4767 = vmul.f32 %v2454, %v4394
      %v4768 = vmul.f32 %v2456, %v4399
      %v4769 = vmul.f32 %v2459, %v4404
      %v4770 = vmul.f32 %v2461, %v4409
      %v4771 = vmul.f32 %v2464, %v4414
      %v4772 = vmul.f32 %v2466, %v4419
      %v4773 = vmul.f32 %v2469, %v4424
      %v4774 = vmul.f32 %v2471, %v4429
      %v4775 = vmul.f32 %v2474, %v4434
      %v4776 = vmul.f32 %v2476, %v4439
      %v4777 = vmul.f32 %v2479, %v4444
      %v4778 = vmul.f32 %v2481, %v4449
      %v4779 = vmax.f32 %v4451, 0.0
      %v4780 = vmax.f32 %v4452, 0.0
      %v4781 = vmax.f32 %v4453, 0.0
      %v4782 = vmax.f32 %v4454, 0.0
      %v4783 = vmax.f32 %v4455, 0.0
      %v4784 = vmax.f32 %v4456, 0.0
      %v4785 = vmax.f32 %v4457, 0.0
      %v4786 = vmax.f32 %v4458, 0.0
      %v4787 = vmax.f32 %v4459, 0.0
      %v4788 = vmax.f32 %v4460, 0.0
      %v4789 = vmax.f32 %v4461, 0.0
      %v4790 = vmax.f32 %v4462, 0.0
      %v4791 = vmax.f32 %v4463, 0.0
      %v4792 = vmax.f32 %v4464, 0.0
      %v4793 = vmax.f32 %v4465, 0.0
      %v4794 = vmax.f32 %v4466, 0.0
      %v4795 = vmax.f32 %v4467, 0.0
      %v4796 = vmax.f32 %v4468, 0.0
      %v4797 = vmax.f32 %v4469, 0.0
      %v4798 = vmax.f32 %v4470, 0.0
      %v4799 = vmax.f32 %v4471, 0.0
      %v4800 = vmax.f32 %v4472, 0.0
      %v4801 = vmax.f32 %v4473, 0.0
      %v4802 = vmax.f32 %v4474, 0.0
      %v4803 = vmax.f32 %v4475, 0.0
      %v4804 = vmax.f32 %v4476, 0.0
      %v4805 = vmax.f32 %v4477, 0.0
      %v4806 = vmax.f32 %v4478, 0.0
      %v4807 = vmax.f32 %v4479, 0.0
      %v4808 = vmax.f32 %v4480, 0.0
      %v4809 = vmax.f32 %v4481, 0.0
      %v4810 = vmax.f32 %v4482, 0.0
      %v4811 = vmax.f32 %v4483, 0.0
      %v4812 = vmax.f32 %v4484, 0.0
      %v4813 = vmax.f32 %v4485, 0.0
      %v4814 = vmax.f32 %v4486, 0.0
      %v4815 = vmax.f32 %v4487, 0.0
      %v4816 = vmax.f32 %v4488, 0.0
      %v4817 = vmax.f32 %v4489, 0.0
      %v4818 = vmax.f32 %v4490, 0.0
      %v4819 = vmax.f32 %v4491, 0.0
      %v4820 = vmax.f32 %v4492, 0.0
      %v4821 = vmax.f32 %v4493, 0.0
      %v4822 = vmax.f32 %v4494, 0.0
      %v4823 = vmax.f32 %v4495, 0.0
      %v4824 = vmax.f32 %v4496, 0.0
      %v4825 = vmax.f32 %v4497, 0.0
      %v4826 = vmax.f32 %v4498, 0.0
      %v4827 = vmax.f32 %v4499, 0.0
      %v4828 = vmax.f32 %v4500, 0.0
      %v4829 = vmax.f32 %v4501, 0.0
      %v4830 = vmax.f32 %v4502, 0.0
      %v4831 = vmax.f32 %v4503, 0.0
      %v4832 = vmax.f32 %v4504, 0.0
      %v4833 = vmax.f32 %v4505, 0.0
      %v4834 = vmax.f32 %v4506, 0.0
      %v4835 = vmax.f32 %v4507, 0.0
      %v4836 = vmax.f32 %v4508, 0.0
      %v4837 = vmax.f32 %v4509, 0.0
      %v4838 = vmax.f32 %v4510, 0.0
      %v4839 = vmax.f32 %v4511, 0.0
      %v4840 = vmax.f32 %v4512, 0.0
      %v4841 = vmax.f32 %v4513, 0.0
      %v4842 = vmax.f32 %v4514, 0.0
      %v4843 = vmax.f32 %v4515, 0.0
      %v4844 = vmax.f32 %v4516, 0.0
      %v4845 = vmax.f32 %v4517, 0.0
      %v4846 = vmax.f32 %v4518, 0.0
      %v4847 = vmax.f32 %v4519, 0.0
      %v4848 = vmax.f32 %v4520, 0.0
      %v4849 = vmax.f32 %v4521, 0.0
      %v4850 = vmax.f32 %v4522, 0.0
      %v4851 = vmax.f32 %v4523, 0.0
      %v4852 = vmax.f32 %v4524, 0.0
      %v4853 = vmax.f32 %v4525, 0.0
      %v4854 = vmax.f32 %v4526, 0.0
      %v4855 = vmax.f32 %v4527, 0.0
      %v4856 = vmax.f32 %v4528, 0.0
      %v4857 = vmax.f32 %v4529, 0.0
      %v4858 = vmax.f32 %v4530, 0.0
      %v4859 = vmax.f32 %v4531, 0.0
      %v4860 = vmax.f32 %v4532, 0.0
      %v4861 = vmax.f32 %v4533, 0.0
      %v4862 = vmax.f32 %v4534, 0.0
      %v4863 = vmax.f32 %v4535, 0.0
      %v4864 = vmax.f32 %v4536, 0.0
      %v4865 = vmax.f32 %v4537, 0.0
      %v4866 = vmax.f32 %v4538, 0.0
      %v4867 = vmax.f32 %v4539, 0.0
      %v4868 = vmax.f32 %v4540, 0.0
      %v4869 = vmax.f32 %v4541, 0.0
      %v4870 = vmax.f32 %v4542, 0.0
      %v4871 = vmax.f32 %v4543, 0.0
      %v4872 = vmax.f32 %v4544, 0.0
      %v4873 = vmax.f32 %v4545, 0.0
      %v4874 = vmax.f32 %v4546, 0.0
      %v4875 = vmax.f32 %v4547, 0.0
      %v4876 = vmax.f32 %v4548, 0.0
      %v4877 = vmax.f32 %v4549, 0.0
      %v4878 = vmax.f32 %v4550, 0.0
      %v4879 = vmax.f32 %v4551, 0.0
      %v4880 = vmax.f32 %v4552, 0.0
      %v4881 = vmax.f32 %v4553, 0.0
      %v4882 = vmax.f32 %v4554, 0.0
      %v4883 = vmax.f32 %v4555, 0.0
      %v4884 = vmax.f32 %v4556, 0.0
      %v4885 = vmax.f32 %v4557, 0.0
      %v4886 = vmax.f32 %v4558, 0.0
      %v4887 = vmax.f32 %v4559, 0.0
      %v4888 = vmax.f32 %v4560, 0.0
      %v4889 = vmax.f32 %v4561, 0.0
      %v4890 = vmax.f32 %v4562, 0.0
      %v4891 = vmax.f32 %v4563, 0.0
      %v4892 = vmax.f32 %v4564, 0.0
      %v4893 = vmax.f32 %v4565, 0.0
      %v4894 = vmax.f32 %v4566, 0.0
      %v4895 = vmax.f32 %v4567, 0.0
      %v4896 = vmax.f32 %v4568, 0.0
      %v4897 = vmax.f32 %v4569, 0.0
      %v4898 = vmax.f32 %v4570, 0.0
      %v4899 = vmax.f32 %v4571, 0.0
      %v4900 = vmax.f32 %v4572, 0.0
      %v4901 = vmax.f32 %v4573, 0.0
      %v4902 = vmax.f32 %v4574, 0.0
      %v4903 = vmax.f32 %v4575, 0.0
      %v4904 = vmax.f32 %v4576, 0.0
      %v4905 = vmax.f32 %v4577, 0.0
      %v4906 = vmax.f32 %v4578, 0.0
      %v4907 = vmax.f32 %v4579, 0.0
      %v4908 = vmax.f32 %v4580, 0.0
      %v4909 = vmax.f32 %v4581, 0.0
      %v4910 = vmax.f32 %v4582, 0.0
      %v4911 = vmax.f32 %v4583, 0.0
      %v4912 = vmax.f32 %v4584, 0.0
      %v4913 = vmax.f32 %v4585, 0.0
      %v4914 = vmax.f32 %v4586, 0.0
      %v4915 = vmax.f32 %v4587, 0.0
      %v4916 = vmax.f32 %v4588, 0.0
      %v4917 = vmax.f32 %v4589, 0.0
      %v4918 = vmax.f32 %v4590, 0.0
      %v4919 = vmax.f32 %v4591, 0.0
      %v4920 = vmax.f32 %v4592, 0.0
      %v4921 = vmax.f32 %v4593, 0.0
      %v4922 = vmax.f32 %v4594, 0.0
      %v4923 = vmax.f32 %v4595, 0.0
      %v4924 = vmax.f32 %v4596, 0.0
      %v4925 = vmax.f32 %v4597, 0.0
      %v4926 = vmax.f32 %v4598, 0.0
      %v4927 = vmax.f32 %v4599, 0.0
      %v4928 = vmax.f32 %v4600, 0.0
      %v4929 = vmax.f32 %v4601, 0.0
      %v4930 = vmax.f32 %v4602, 0.0
      %v4931 = vmax.f32 %v4603, 0.0
      %v4932 = vmax.f32 %v4604, 0.0
      %v4933 = vmax.f32 %v4605, 0.0
      %v4934 = vmax.f32 %v4606, 0.0
      %v4935 = vmax.f32 %v4607, 0.0
      %v4936 = vmax.f32 %v4608, 0.0
      %v4937 = vmax.f32 %v4609, 0.0
      %v4938 = vmax.f32 %v4610, 0.0
      %v4939 = vmax.f32 %v4611, 0.0
      %v4940 = vmax.f32 %v4612, 0.0
      %v4941 = vmax.f32 %v4613, 0.0
      %v4942 = vmax.f32 %v4614, 0.0
      %v4943 = vmax.f32 %v4615, 0.0
      %v4944 = vmax.f32 %v4616, 0.0
      %v4945 = vmax.f32 %v4617, 0.0
      %v4946 = vmax.f32 %v4618, 0.0
      %v4947 = vmax.f32 %v4619, 0.0
      %v4948 = vmax.f32 %v4620, 0.0
      %v4949 = vmax.f32 %v4621, 0.0
      %v4950 = vmax.f32 %v4622, 0.0
      %v4951 = vmax.f32 %v4623, 0.0
      %v4952 = vmax.f32 %v4624, 0.0
      %v4953 = vmax.f32 %v4625, 0.0
      %v4954 = vmax.f32 %v4626, 0.0
      %v4955 = vmax.f32 %v4627, 0.0
      %v4956 = vmax.f32 %v4628, 0.0
      %v4957 = vmax.f32 %v4629, 0.0
      %v4958 = vmax.f32 %v4630, 0.0
      %v4959 = vmax.f32 %v4631, 0.0
      %v4960 = vmax.f32 %v4632, 0.0
      %v4961 = vmax.f32 %v4633, 0.0
      %v4962 = vmax.f32 %v4634, 0.0
      %v4963 = vmax.f32 %v4635, 0.0
      %v4964 = vmax.f32 %v4636, 0.0
      %v4965 = vmax.f32 %v4637, 0.0
      %v4966 = vmax.f32 %v4638, 0.0
      %v4967 = vmax.f32 %v4639, 0.0
      %v4968 = vmax.f32 %v4640, 0.0
      %v4969 = vmax.f32 %v4641, 0.0
      %v4970 = vmax.f32 %v4642, 0.0
      %v4971 = vmax.f32 %v4643, 0.0
      %v4972 = vmax.f32 %v4644, 0.0
      %v4973 = vmax.f32 %v4645, 0.0
      %v4974 = vmax.f32 %v4646, 0.0
      %v4975 = vmax.f32 %v4647, 0.0
      %v4976 = vmax.f32 %v4648, 0.0
      %v4977 = vmax.f32 %v4649, 0.0
      %v4978 = vmax.f32 %v4650, 0.0
      %v4979 = vmax.f32 %v4651, 0.0
      %v4980 = vmax.f32 %v4652, 0.0
      %v4981 = vmax.f32 %v4653, 0.0
      %v4982 = vmax.f32 %v4654, 0.0
      %v4983 = vmax.f32 %v4655, 0.0
      %v4984 = vmax.f32 %v4656, 0.0
      %v4985 = vmax.f32 %v4657, 0.0
      %v4986 = vmax.f32 %v4658, 0.0
      %v4987 = vmax.f32 %v4659, 0.0
      %v4988 = vmax.f32 %v4660, 0.0
      %v4989 = vmax.f32 %v4661, 0.0
      %v4990 = vmax.f32 %v4662, 0.0
      %v4991 = vmax.f32 %v4663, 0.0
      %v4992 = vmax.f32 %v4664, 0.0
      %v4993 = vmax.f32 %v4665, 0.0
      %v4994 = vmax.f32 %v4666, 0.0
      %v4995 = vmax.f32 %v4667, 0.0
      %v4996 = vmax.f32 %v4668, 0.0
      %v4997 = vmax.f32 %v4669, 0.0
      %v4998 = vmax.f32 %v4670, 0.0
      %v4999 = vmax.f32 %v4671, 0.0
      %v5000 = vmax.f32 %v4672, 0.0
      %v5001 = vmax.f32 %v4673, 0.0
      %v5002 = vmax.f32 %v4674, 0.0
      %v5003 = vmax.f32 %v4675, 0.0
      %v5004 = vmax.f32 %v4676, 0.0
      %v5005 = vmax.f32 %v4677, 0.0
      %v5006 = vmax.f32 %v4678, 0.0
      %v5007 = vmax.f32 %v4679, 0.0
      %v5008 = vmax.f32 %v4680, 0.0
      %v5009 = vmax.f32 %v4681, 0.0
      %v5010 = vmax.f32 %v4682, 0.0
      %v5011 = vmax.f32 %v4683, 0.0
      %v5012 = vmax.f32 %v4684, 0.0
      %v5013 = vmax.f32 %v4685, 0.0
      %v5014 = vmax.f32 %v4686, 0.0
      %v5015 = vmax.f32 %v4687, 0.0
      %v5016 = vmax.f32 %v4688, 0.0
      %v5017 = vmax.f32 %v4689, 0.0
      %v5018 = vmax.f32 %v4690, 0.0
      %v5019 = vmax.f32 %v4691, 0.0
      %v5020 = vmax.f32 %v4692, 0.0
      %v5021 = vmax.f32 %v4693, 0.0
      %v5022 = vmax.f32 %v4694, 0.0
      %v5023 = vmax.f32 %v4695, 0.0
      %v5024 = vmax.f32 %v4696, 0.0
      %v5025 = vmax.f32 %v4697, 0.0
      %v5026 = vmax.f32 %v4698, 0.0
      %v5027 = vmax.f32 %v4699, 0.0
      %v5028 = vmax.f32 %v4700, 0.0
      %v5029 = vmax.f32 %v4701, 0.0
      %v5030 = vmax.f32 %v4702, 0.0
      %v5031 = vmax.f32 %v4703, 0.0
      %v5032 = vmax.f32 %v4704, 0.0
      %v5033 = vmax.f32 %v4705, 0.0
      %v5034 = vmax.f32 %v4706, 0.0
      %v5035 = vmax.f32 %v4707, 0.0
      %v5036 = vmax.f32 %v4708, 0.0
      %v5037 = vmax.f32 %v4709, 0.0
      %v5038 = vmax.f32 %v4710, 0.0
      %v5039 = vmax.f32 %v4711, 0.0
      %v5040 = vmax.f32 %v4712, 0.0
      %v5041 = vmax.f32 %v4713, 0.0
      %v5042 = vmax.f32 %v4714, 0.0
      %v5043 = vmax.f32 %v4715, 0.0
      %v5044 = vmax.f32 %v4716, 0.0
      %v5045 = vmax.f32 %v4717, 0.0
      %v5046 = vmax.f32 %v4718, 0.0
      %v5047 = vmax.f32 %v4719, 0.0
      %v5048 = vmax.f32 %v4720, 0.0
      %v5049 = vmax.f32 %v4721, 0.0
      %v5050 = vmax.f32 %v4722, 0.0
      %v5051 = vmax.f32 %v4723, 0.0
      %v5052 = vmax.f32 %v4724, 0.0
      %v5053 = vmax.f32 %v4725, 0.0
      %v5054 = vmax.f32 %v4726, 0.0
      %v5055 = vmax.f32 %v4727, 0.0
      %v5056 = vmax.f32 %v4728, 0.0
      %v5057 = vmax.f32 %v4729, 0.0
      %v5058 = vmax.f32 %v4730, 0.0
      %v5059 = vmax.f32 %v4731, 0.0
      %v5060 = vmax.f32 %v4732, 0.0
      %v5061 = vmax.f32 %v4733, 0.0
      %v5062 = vmax.f32 %v4734, 0.0
      %v5063 = vmax.f32 %v4735, 0.0
      %v5064 = vmax.f32 %v4736, 0.0
      %v5065 = vmax.f32 %v4737, 0.0
      %v5066 = vmax.f32 %v4738, 0.0
      %v5067 = vmax.f32 %v4739, 0.0
      %v5068 = vmax.f32 %v4740, 0.0
      %v5069 = vmax.f32 %v4741, 0.0
      %v5070 = vmax.f32 %v4742, 0.0
      %v5071 = vmax.f32 %v4743, 0.0
      %v5072 = vmax.f32 %v4744, 0.0
      %v5073 = vmax.f32 %v4745, 0.0
      %v5074 = vmax.f32 %v4746, 0.0
      %v5075 = vmax.f32 %v4747, 0.0
      %v5076 = vmax.f32 %v4748, 0.0
      %v5077 = vmax.f32 %v4749, 0.0
      %v5078 = vmax.f32 %v4750, 0.0
      %v5079 = vmax.f32 %v4751, 0.0
      %v5080 = vmax.f32 %v4752, 0.0
      %v5081 = vmax.f32 %v4753, 0.0
      %v5082 = vmax.f32 %v4754, 0.0
      %v5083 = vmax.f32 %v4755, 0.0
      %v5084 = vmax.f32 %v4756, 0.0
      %v5085 = vmax.f32 %v4757, 0.0
      %v5086 = vmax.f32 %v4758, 0.0
      %v5087 = vmax.f32 %v4759, 0.0
      %v5088 = vmax.f32 %v4760, 0.0
      %v5089 = vmax.f32 %v4761, 0.0
      %v5090 = vmax.f32 %v4762, 0.0
      %v5091 = vmax.f32 %v4763, 0.0
      %v5092 = vmax.f32 %v4764, 0.0
      %v5093 = vmax.f32 %v4765, 0.0
      %v5094 = vmax.f32 %v4766, 0.0
      %v5095 = vmax.f32 %v4767, 0.0
      %v5096 = vmax.f32 %v4768, 0.0
      %v5097 = vmax.f32 %v4769, 0.0
      %v5098 = vmax.f32 %v4770, 0.0
      %v5099 = vmax.f32 %v4771, 0.0
      %v5100 = vmax.f32 %v4772, 0.0
      %v5101 = vmax.f32 %v4773, 0.0
      %v5102 = vmax.f32 %v4774, 0.0
      %v5103 = vmax.f32 %v4775, 0.0
      %v5104 = vmax.f32 %v4776, 0.0
      %v5105 = vmax.f32 %v4777, 0.0
      %v5106 = vmax.f32 %v4778, 0.0
      %v5107 = vpack.c.bf16 %v4779, %v4779
      %v5108 = vpack.c.bf16 %v4780, %v4780
      %v5109 = vpack.c.bf16 %v4781, %v4781
      %v5110 = vpack.c.bf16 %v4782, %v4782
      %v5111 = vpack.c.bf16 %v4783, %v4783
      %v5112 = vpack.c.bf16 %v4784, %v4784
      %v5113 = vpack.c.bf16 %v4785, %v4785
      %v5114 = vpack.c.bf16 %v4786, %v4786
      %v5115 = vpack.c.bf16 %v4787, %v4787
      %v5116 = vpack.c.bf16 %v4788, %v4788
      %v5117 = vpack.c.bf16 %v4789, %v4789
      %v5118 = vpack.c.bf16 %v4790, %v4790
      %v5119 = vpack.c.bf16 %v4791, %v4791
      %v5120 = vpack.c.bf16 %v4792, %v4792
      %v5121 = vpack.c.bf16 %v4793, %v4793
      %v5122 = vpack.c.bf16 %v4794, %v4794
      %v5123 = vpack.c.bf16 %v4795, %v4795
      %v5124 = vpack.c.bf16 %v4796, %v4796
      %v5125 = vpack.c.bf16 %v4797, %v4797
      %v5126 = vpack.c.bf16 %v4798, %v4798
      %v5127 = vpack.c.bf16 %v4799, %v4799
      %v5128 = vpack.c.bf16 %v4800, %v4800
      %v5129 = vpack.c.bf16 %v4801, %v4801
      %v5130 = vpack.c.bf16 %v4802, %v4802
      %v5131 = vpack.c.bf16 %v4803, %v4803
      %v5132 = vpack.c.bf16 %v4804, %v4804
      %v5133 = vpack.c.bf16 %v4805, %v4805
      %v5134 = vpack.c.bf16 %v4806, %v4806
      %v5135 = vpack.c.bf16 %v4807, %v4807
      %v5136 = vpack.c.bf16 %v4808, %v4808
      %v5137 = vpack.c.bf16 %v4809, %v4809
      %v5138 = vpack.c.bf16 %v4810, %v4810
      %v5139 = vpack.c.bf16 %v4811, %v4811
      %v5140 = vpack.c.bf16 %v4812, %v4812
      %v5141 = vpack.c.bf16 %v4813, %v4813
      %v5142 = vpack.c.bf16 %v4814, %v4814
      %v5143 = vpack.c.bf16 %v4815, %v4815
      %v5144 = vpack.c.bf16 %v4816, %v4816
      %v5145 = vpack.c.bf16 %v4817, %v4817
      %v5146 = vpack.c.bf16 %v4818, %v4818
      %v5147 = vpack.c.bf16 %v4819, %v4819
      %v5148 = vpack.c.bf16 %v4820, %v4820
      %v5149 = vpack.c.bf16 %v4821, %v4821
      %v5150 = vpack.c.bf16 %v4822, %v4822
      %v5151 = vpack.c.bf16 %v4823, %v4823
      %v5152 = vpack.c.bf16 %v4824, %v4824
      %v5153 = vpack.c.bf16 %v4825, %v4825
      %v5154 = vpack.c.bf16 %v4826, %v4826
      %v5155 = vpack.c.bf16 %v4827, %v4827
      %v5156 = vpack.c.bf16 %v4828, %v4828
      %v5157 = vpack.c.bf16 %v4829, %v4829
      %v5158 = vpack.c.bf16 %v4830, %v4830
      %v5159 = vpack.c.bf16 %v4831, %v4831
      %v5160 = vpack.c.bf16 %v4832, %v4832
      %v5161 = vpack.c.bf16 %v4833, %v4833
      %v5162 = vpack.c.bf16 %v4834, %v4834
      %v5163 = vpack.c.bf16 %v4835, %v4835
      %v5164 = vpack.c.bf16 %v4836, %v4836
      %v5165 = vpack.c.bf16 %v4837, %v4837
      %v5166 = vpack.c.bf16 %v4838, %v4838
      %v5167 = vpack.c.bf16 %v4839, %v4839
      %v5168 = vpack.c.bf16 %v4840, %v4840
      %v5169 = vpack.c.bf16 %v4841, %v4841
      %v5170 = vpack.c.bf16 %v4842, %v4842
      %v5171 = vpack.c.bf16 %v4843, %v4843
      %v5172 = vpack.c.bf16 %v4844, %v4844
      %v5173 = vpack.c.bf16 %v4845, %v4845
      %v5174 = vpack.c.bf16 %v4846, %v4846
      %v5175 = vpack.c.bf16 %v4847, %v4847
      %v5176 = vpack.c.bf16 %v4848, %v4848
      %v5177 = vpack.c.bf16 %v4849, %v4849
      %v5178 = vpack.c.bf16 %v4850, %v4850
      %v5179 = vpack.c.bf16 %v4851, %v4851
      %v5180 = vpack.c.bf16 %v4852, %v4852
      %v5181 = vpack.c.bf16 %v4853, %v4853
      %v5182 = vpack.c.bf16 %v4854, %v4854
      %v5183 = vpack.c.bf16 %v4855, %v4855
      %v5184 = vpack.c.bf16 %v4856, %v4856
      %v5185 = vpack.c.bf16 %v4857, %v4857
      %v5186 = vpack.c.bf16 %v4858, %v4858
      %v5187 = vpack.c.bf16 %v4859, %v4859
      %v5188 = vpack.c.bf16 %v4860, %v4860
      %v5189 = vpack.c.bf16 %v4861, %v4861
      %v5190 = vpack.c.bf16 %v4862, %v4862
      %v5191 = vpack.c.bf16 %v4863, %v4863
      %v5192 = vpack.c.bf16 %v4864, %v4864
      %v5193 = vpack.c.bf16 %v4865, %v4865
      %v5194 = vpack.c.bf16 %v4866, %v4866
      %v5195 = vpack.c.bf16 %v4867, %v4867
      %v5196 = vpack.c.bf16 %v4868, %v4868
      %v5197 = vpack.c.bf16 %v4869, %v4869
      %v5198 = vpack.c.bf16 %v4870, %v4870
      %v5199 = vpack.c.bf16 %v4871, %v4871
      %v5200 = vpack.c.bf16 %v4872, %v4872
      %v5201 = vpack.c.bf16 %v4873, %v4873
      %v5202 = vpack.c.bf16 %v4874, %v4874
      %v5203 = vpack.c.bf16 %v4875, %v4875
      %v5204 = vpack.c.bf16 %v4876, %v4876
      %v5205 = vpack.c.bf16 %v4877, %v4877
      %v5206 = vpack.c.bf16 %v4878, %v4878
      %v5207 = vpack.c.bf16 %v4879, %v4879
      %v5208 = vpack.c.bf16 %v4880, %v4880
      %v5209 = vpack.c.bf16 %v4881, %v4881
      %v5210 = vpack.c.bf16 %v4882, %v4882
      %v5211 = vpack.c.bf16 %v4883, %v4883
      %v5212 = vpack.c.bf16 %v4884, %v4884
      %v5213 = vpack.c.bf16 %v4885, %v4885
      %v5214 = vpack.c.bf16 %v4886, %v4886
      %v5215 = vpack.c.bf16 %v4887, %v4887
      %v5216 = vpack.c.bf16 %v4888, %v4888
      %v5217 = vpack.c.bf16 %v4889, %v4889
      %v5218 = vpack.c.bf16 %v4890, %v4890
      %v5219 = vpack.c.bf16 %v4891, %v4891
      %v5220 = vpack.c.bf16 %v4892, %v4892
      %v5221 = vpack.c.bf16 %v4893, %v4893
      %v5222 = vpack.c.bf16 %v4894, %v4894
      %v5223 = vpack.c.bf16 %v4895, %v4895
      %v5224 = vpack.c.bf16 %v4896, %v4896
      %v5225 = vpack.c.bf16 %v4897, %v4897
      %v5226 = vpack.c.bf16 %v4898, %v4898
      %v5227 = vpack.c.bf16 %v4899, %v4899
      %v5228 = vpack.c.bf16 %v4900, %v4900
      %v5229 = vpack.c.bf16 %v4901, %v4901
      %v5230 = vpack.c.bf16 %v4902, %v4902
      %v5231 = vpack.c.bf16 %v4903, %v4903
      %v5232 = vpack.c.bf16 %v4904, %v4904
      %v5233 = vpack.c.bf16 %v4905, %v4905
      %v5234 = vpack.c.bf16 %v4906, %v4906
      %v5235 = vpack.c.bf16 %v4907, %v4907
      %v5236 = vpack.c.bf16 %v4908, %v4908
      %v5237 = vpack.c.bf16 %v4909, %v4909
      %v5238 = vpack.c.bf16 %v4910, %v4910
      %v5239 = vpack.c.bf16 %v4911, %v4911
      %v5240 = vpack.c.bf16 %v4912, %v4912
      %v5241 = vpack.c.bf16 %v4913, %v4913
      %v5242 = vpack.c.bf16 %v4914, %v4914
      %v5243 = vpack.c.bf16 %v4915, %v4915
      %v5244 = vpack.c.bf16 %v4916, %v4916
      %v5245 = vpack.c.bf16 %v4917, %v4917
      %v5246 = vpack.c.bf16 %v4918, %v4918
      %v5247 = vpack.c.bf16 %v4919, %v4919
      %v5248 = vpack.c.bf16 %v4920, %v4920
      %v5249 = vpack.c.bf16 %v4921, %v4921
      %v5250 = vpack.c.bf16 %v4922, %v4922
      %v5251 = vpack.c.bf16 %v4923, %v4923
      %v5252 = vpack.c.bf16 %v4924, %v4924
      %v5253 = vpack.c.bf16 %v4925, %v4925
      %v5254 = vpack.c.bf16 %v4926, %v4926
      %v5255 = vpack.c.bf16 %v4927, %v4927
      %v5256 = vpack.c.bf16 %v4928, %v4928
      %v5257 = vpack.c.bf16 %v4929, %v4929
      %v5258 = vpack.c.bf16 %v4930, %v4930
      %v5259 = vpack.c.bf16 %v4931, %v4931
      %v5260 = vpack.c.bf16 %v4932, %v4932
      %v5261 = vpack.c.bf16 %v4933, %v4933
      %v5262 = vpack.c.bf16 %v4934, %v4934
      %v5263 = vpack.c.bf16 %v4935, %v4935
      %v5264 = vpack.c.bf16 %v4936, %v4936
      %v5265 = vpack.c.bf16 %v4937, %v4937
      %v5266 = vpack.c.bf16 %v4938, %v4938
      %v5267 = vpack.c.bf16 %v4939, %v4939
      %v5268 = vpack.c.bf16 %v4940, %v4940
      %v5269 = vpack.c.bf16 %v4941, %v4941
      %v5270 = vpack.c.bf16 %v4942, %v4942
      %v5271 = vpack.c.bf16 %v4943, %v4943
      %v5272 = vpack.c.bf16 %v4944, %v4944
      %v5273 = vpack.c.bf16 %v4945, %v4945
      %v5274 = vpack.c.bf16 %v4946, %v4946
      %v5275 = vpack.c.bf16 %v4947, %v4947
      %v5276 = vpack.c.bf16 %v4948, %v4948
      %v5277 = vpack.c.bf16 %v4949, %v4949
      %v5278 = vpack.c.bf16 %v4950, %v4950
      %v5279 = vpack.c.bf16 %v4951, %v4951
      %v5280 = vpack.c.bf16 %v4952, %v4952
      %v5281 = vpack.c.bf16 %v4953, %v4953
      %v5282 = vpack.c.bf16 %v4954, %v4954
      %v5283 = vpack.c.bf16 %v4955, %v4955
      %v5284 = vpack.c.bf16 %v4956, %v4956
      %v5285 = vpack.c.bf16 %v4957, %v4957
      %v5286 = vpack.c.bf16 %v4958, %v4958
      %v5287 = vpack.c.bf16 %v4959, %v4959
      %v5288 = vpack.c.bf16 %v4960, %v4960
      %v5289 = vpack.c.bf16 %v4961, %v4961
      %v5290 = vpack.c.bf16 %v4962, %v4962
      %v5291 = vpack.c.bf16 %v4963, %v4963
      %v5292 = vpack.c.bf16 %v4964, %v4964
      %v5293 = vpack.c.bf16 %v4965, %v4965
      %v5294 = vpack.c.bf16 %v4966, %v4966
      %v5295 = vpack.c.bf16 %v4967, %v4967
      %v5296 = vpack.c.bf16 %v4968, %v4968
      %v5297 = vpack.c.bf16 %v4969, %v4969
      %v5298 = vpack.c.bf16 %v4970, %v4970
      %v5299 = vpack.c.bf16 %v4971, %v4971
      %v5300 = vpack.c.bf16 %v4972, %v4972
      %v5301 = vpack.c.bf16 %v4973, %v4973
      %v5302 = vpack.c.bf16 %v4974, %v4974
      %v5303 = vpack.c.bf16 %v4975, %v4975
      %v5304 = vpack.c.bf16 %v4976, %v4976
      %v5305 = vpack.c.bf16 %v4977, %v4977
      %v5306 = vpack.c.bf16 %v4978, %v4978
      %v5307 = vpack.c.bf16 %v4979, %v4979
      %v5308 = vpack.c.bf16 %v4980, %v4980
      %v5309 = vpack.c.bf16 %v4981, %v4981
      %v5310 = vpack.c.bf16 %v4982, %v4982
      %v5311 = vpack.c.bf16 %v4983, %v4983
      %v5312 = vpack.c.bf16 %v4984, %v4984
      %v5313 = vpack.c.bf16 %v4985, %v4985
      %v5314 = vpack.c.bf16 %v4986, %v4986
      %v5315 = vpack.c.bf16 %v4987, %v4987
      %v5316 = vpack.c.bf16 %v4988, %v4988
      %v5317 = vpack.c.bf16 %v4989, %v4989
      %v5318 = vpack.c.bf16 %v4990, %v4990
      %v5319 = vpack.c.bf16 %v4991, %v4991
      %v5320 = vpack.c.bf16 %v4992, %v4992
      %v5321 = vpack.c.bf16 %v4993, %v4993
      %v5322 = vpack.c.bf16 %v4994, %v4994
      %v5323 = vpack.c.bf16 %v4995, %v4995
      %v5324 = vpack.c.bf16 %v4996, %v4996
      %v5325 = vpack.c.bf16 %v4997, %v4997
      %v5326 = vpack.c.bf16 %v4998, %v4998
      %v5327 = vpack.c.bf16 %v4999, %v4999
      %v5328 = vpack.c.bf16 %v5000, %v5000
      %v5329 = vpack.c.bf16 %v5001, %v5001
      %v5330 = vpack.c.bf16 %v5002, %v5002
      %v5331 = vpack.c.bf16 %v5003, %v5003
      %v5332 = vpack.c.bf16 %v5004, %v5004
      %v5333 = vpack.c.bf16 %v5005, %v5005
      %v5334 = vpack.c.bf16 %v5006, %v5006
      %v5335 = vpack.c.bf16 %v5007, %v5007
      %v5336 = vpack.c.bf16 %v5008, %v5008
      %v5337 = vpack.c.bf16 %v5009, %v5009
      %v5338 = vpack.c.bf16 %v5010, %v5010
      %v5339 = vpack.c.bf16 %v5011, %v5011
      %v5340 = vpack.c.bf16 %v5012, %v5012
      %v5341 = vpack.c.bf16 %v5013, %v5013
      %v5342 = vpack.c.bf16 %v5014, %v5014
      %v5343 = vpack.c.bf16 %v5015, %v5015
      %v5344 = vpack.c.bf16 %v5016, %v5016
      %v5345 = vpack.c.bf16 %v5017, %v5017
      %v5346 = vpack.c.bf16 %v5018, %v5018
      %v5347 = vpack.c.bf16 %v5019, %v5019
      %v5348 = vpack.c.bf16 %v5020, %v5020
      %v5349 = vpack.c.bf16 %v5021, %v5021
      %v5350 = vpack.c.bf16 %v5022, %v5022
      %v5351 = vpack.c.bf16 %v5023, %v5023
      %v5352 = vpack.c.bf16 %v5024, %v5024
      %v5353 = vpack.c.bf16 %v5025, %v5025
      %v5354 = vpack.c.bf16 %v5026, %v5026
      %v5355 = vpack.c.bf16 %v5027, %v5027
      %v5356 = vpack.c.bf16 %v5028, %v5028
      %v5357 = vpack.c.bf16 %v5029, %v5029
      %v5358 = vpack.c.bf16 %v5030, %v5030
      %v5359 = vpack.c.bf16 %v5031, %v5031
      %v5360 = vpack.c.bf16 %v5032, %v5032
      %v5361 = vpack.c.bf16 %v5033, %v5033
      %v5362 = vpack.c.bf16 %v5034, %v5034
      %v5363 = vpack.c.bf16 %v5035, %v5035
      %v5364 = vpack.c.bf16 %v5036, %v5036
      %v5365 = vpack.c.bf16 %v5037, %v5037
      %v5366 = vpack.c.bf16 %v5038, %v5038
      %v5367 = vpack.c.bf16 %v5039, %v5039
      %v5368 = vpack.c.bf16 %v5040, %v5040
      %v5369 = vpack.c.bf16 %v5041, %v5041
      %v5370 = vpack.c.bf16 %v5042, %v5042
      %v5371 = vpack.c.bf16 %v5043, %v5043
      %v5372 = vpack.c.bf16 %v5044, %v5044
      %v5373 = vpack.c.bf16 %v5045, %v5045
      %v5374 = vpack.c.bf16 %v5046, %v5046
      %v5375 = vpack.c.bf16 %v5047, %v5047
      %v5376 = vpack.c.bf16 %v5048, %v5048
      %v5377 = vpack.c.bf16 %v5049, %v5049
      %v5378 = vpack.c.bf16 %v5050, %v5050
      %v5379 = vpack.c.bf16 %v5051, %v5051
      %v5380 = vpack.c.bf16 %v5052, %v5052
      %v5381 = vpack.c.bf16 %v5053, %v5053
      %v5382 = vpack.c.bf16 %v5054, %v5054
      %v5383 = vpack.c.bf16 %v5055, %v5055
      %v5384 = vpack.c.bf16 %v5056, %v5056
      %v5385 = vpack.c.bf16 %v5057, %v5057
      %v5386 = vpack.c.bf16 %v5058, %v5058
      %v5387 = vpack.c.bf16 %v5059, %v5059
      %v5388 = vpack.c.bf16 %v5060, %v5060
      %v5389 = vpack.c.bf16 %v5061, %v5061
      %v5390 = vpack.c.bf16 %v5062, %v5062
      %v5391 = vpack.c.bf16 %v5063, %v5063
      %v5392 = vpack.c.bf16 %v5064, %v5064
      %v5393 = vpack.c.bf16 %v5065, %v5065
      %v5394 = vpack.c.bf16 %v5066, %v5066
      %v5395 = vpack.c.bf16 %v5067, %v5067
      %v5396 = vpack.c.bf16 %v5068, %v5068
      %v5397 = vpack.c.bf16 %v5069, %v5069
      %v5398 = vpack.c.bf16 %v5070, %v5070
      %v5399 = vpack.c.bf16 %v5071, %v5071
      %v5400 = vpack.c.bf16 %v5072, %v5072
      %v5401 = vpack.c.bf16 %v5073, %v5073
      %v5402 = vpack.c.bf16 %v5074, %v5074
      %v5403 = vpack.c.bf16 %v5075, %v5075
      %v5404 = vpack.c.bf16 %v5076, %v5076
      %v5405 = vpack.c.bf16 %v5077, %v5077
      %v5406 = vpack.c.bf16 %v5078, %v5078
      %v5407 = vpack.c.bf16 %v5079, %v5079
      %v5408 = vpack.c.bf16 %v5080, %v5080
      %v5409 = vpack.c.bf16 %v5081, %v5081
      %v5410 = vpack.c.bf16 %v5082, %v5082
      %v5411 = vpack.c.bf16 %v5083, %v5083
      %v5412 = vpack.c.bf16 %v5084, %v5084
      %v5413 = vpack.c.bf16 %v5085, %v5085
      %v5414 = vpack.c.bf16 %v5086, %v5086
      %v5415 = vpack.c.bf16 %v5087, %v5087
      %v5416 = vpack.c.bf16 %v5088, %v5088
      %v5417 = vpack.c.bf16 %v5089, %v5089
      %v5418 = vpack.c.bf16 %v5090, %v5090
      %v5419 = vpack.c.bf16 %v5091, %v5091
      %v5420 = vpack.c.bf16 %v5092, %v5092
      %v5421 = vpack.c.bf16 %v5093, %v5093
      %v5422 = vpack.c.bf16 %v5094, %v5094
      %v5423 = vpack.c.bf16 %v5095, %v5095
      %v5424 = vpack.c.bf16 %v5096, %v5096
      %v5425 = vpack.c.bf16 %v5097, %v5097
      %v5426 = vpack.c.bf16 %v5098, %v5098
      %v5427 = vpack.c.bf16 %v5099, %v5099
      %v5428 = vpack.c.bf16 %v5100, %v5100
      %v5429 = vpack.c.bf16 %v5101, %v5101
      %v5430 = vpack.c.bf16 %v5102, %v5102
      %v5431 = vpack.c.bf16 %v5103, %v5103
      %v5432 = vpack.c.bf16 %v5104, %v5104
      %v5433 = vpack.c.bf16 %v5105, %v5105
      %v5434 = vpack.c.bf16 %v5106, %v5106
      %vm5435 = vcmask 125952
      %5436 = vst.msk [vmem:[%s272] sm:$0xf] %vm5435, %v5107
      %5437 = vst.msk [vmem:[%s272 + $0x4] sm:$0xf] %vm5435, %v5108
      %5438 = vst.msk [vmem:[%s272 + $0x8] sm:$0xf] %vm5435, %v5109
      %5439 = vst.msk [vmem:[%s272 + $0xc] sm:$0xf] %vm5435, %v5110
      %5440 = vst.msk [vmem:[%s272 + $0x10] sm:$0xf] %vm5435, %v5111
      %5441 = vst.msk [vmem:[%s272 + $0x14] sm:$0xf] %vm5435, %v5112
      %5442 = vst.msk [vmem:[%s272 + $0x18] sm:$0xf] %vm5435, %v5113
      %5443 = vst.msk [vmem:[%s272 + $0x1c] sm:$0xf] %vm5435, %v5114
      %5444 = vst.msk [vmem:[%s272 + $0x20] sm:$0xf] %vm5435, %v5115
      %5445 = vst.msk [vmem:[%s272 + $0x24] sm:$0xf] %vm5435, %v5116
      %5446 = vst.msk [vmem:[%s272 + $0x28] sm:$0xf] %vm5435, %v5117
      %5447 = vst.msk [vmem:[%s272 + $0x2c] sm:$0xf] %vm5435, %v5118
      %5448 = vst.msk [vmem:[%s272 + $0x30] sm:$0xf] %vm5435, %v5119
      %5449 = vst.msk [vmem:[%s272 + $0x34] sm:$0xf] %vm5435, %v5120
      %5450 = vst.msk [vmem:[%s272 + $0x38] sm:$0xf] %vm5435, %v5121
      %5451 = vst.msk [vmem:[%s272 + $0x3c] sm:$0xf] %vm5435, %v5122
      %5452 = vst.msk [vmem:[%s272 + $0x40] sm:$0xf] %vm5435, %v5123
      %5453 = vst.msk [vmem:[%s272 + $0x44] sm:$0xf] %vm5435, %v5124
      %5454 = vst.msk [vmem:[%s272 + $0x48] sm:$0xf] %vm5435, %v5125
      %5455 = vst.msk [vmem:[%s272 + $0x4c] sm:$0xf] %vm5435, %v5126
      %5456 = vst.msk [vmem:[%s272 + $0x50] sm:$0xf] %vm5435, %v5127
      %5457 = vst.msk [vmem:[%s272 + $0x54] sm:$0xf] %vm5435, %v5128
      %5458 = vst.msk [vmem:[%s272 + $0x58] sm:$0xf] %vm5435, %v5129
      %5459 = vst.msk [vmem:[%s272 + $0x5c] sm:$0xf] %vm5435, %v5130
      %5460 = vst.msk [vmem:[%s272 + $0x60] sm:$0xf] %vm5435, %v5131
      %5461 = vst.msk [vmem:[%s272 + $0x64] sm:$0xf] %vm5435, %v5132
      %5462 = vst.msk [vmem:[%s272 + $0x68] sm:$0xf] %vm5435, %v5133
      %5463 = vst.msk [vmem:[%s272 + $0x6c] sm:$0xf] %vm5435, %v5134
      %5464 = vst.msk [vmem:[%s272 + $0x70] sm:$0xf] %vm5435, %v5135
      %5465 = vst.msk [vmem:[%s272 + $0x74] sm:$0xf] %vm5435, %v5136
      %5466 = vst.msk [vmem:[%s272 + $0x78] sm:$0xf] %vm5435, %v5137
      %5467 = vst.msk [vmem:[%s272 + $0x7c] sm:$0xf] %vm5435, %v5138
      %5468 = vst.msk [vmem:[%s272 + $0x80] sm:$0xf] %vm5435, %v5139
      %5469 = vst.msk [vmem:[%s272 + $0x84] sm:$0xf] %vm5435, %v5140
      %5470 = vst.msk [vmem:[%s272 + $0x88] sm:$0xf] %vm5435, %v5141
      %5471 = vst.msk [vmem:[%s272 + $0x8c] sm:$0xf] %vm5435, %v5142
      %5472 = vst.msk [vmem:[%s272 + $0x90] sm:$0xf] %vm5435, %v5143
      %5473 = vst.msk [vmem:[%s272 + $0x94] sm:$0xf] %vm5435, %v5144
      %5474 = vst.msk [vmem:[%s272 + $0x98] sm:$0xf] %vm5435, %v5145
      %5475 = vst.msk [vmem:[%s272 + $0x9c] sm:$0xf] %vm5435, %v5146
      %5476 = vst.msk [vmem:[%s272 + $0xa0] sm:$0xf] %vm5435, %v5147
      %5477 = vst.msk [vmem:[%s272 + $0xa4] sm:$0xf] %vm5435, %v5148
      %5478 = vst.msk [vmem:[%s272 + $0xa8] sm:$0xf] %vm5435, %v5149
      %5479 = vst.msk [vmem:[%s272 + $0xac] sm:$0xf] %vm5435, %v5150
      %5480 = vst.msk [vmem:[%s272 + $0xb0] sm:$0xf] %vm5435, %v5151
      %5481 = vst.msk [vmem:[%s272 + $0xb4] sm:$0xf] %vm5435, %v5152
      %5482 = vst.msk [vmem:[%s272 + $0xb8] sm:$0xf] %vm5435, %v5153
      %5483 = vst.msk [vmem:[%s272 + $0xbc] sm:$0xf] %vm5435, %v5154
      %5484 = vst.msk [vmem:[%s272 + $0xc0] sm:$0xf] %vm5435, %v5155
      %5485 = vst.msk [vmem:[%s272 + $0xc4] sm:$0xf] %vm5435, %v5156
      %5486 = vst.msk [vmem:[%s272 + $0xc8] sm:$0xf] %vm5435, %v5157
      %5487 = vst.msk [vmem:[%s272 + $0xcc] sm:$0xf] %vm5435, %v5158
      %5488 = vst.msk [vmem:[%s272 + $0xd0] sm:$0xf] %vm5435, %v5159
      %5489 = vst.msk [vmem:[%s272 + $0xd4] sm:$0xf] %vm5435, %v5160
      %5490 = vst.msk [vmem:[%s272 + $0xd8] sm:$0xf] %vm5435, %v5161
      %5491 = vst.msk [vmem:[%s272 + $0xdc] sm:$0xf] %vm5435, %v5162
      %5492 = vst.msk [vmem:[%s272 + $0xe0] sm:$0xf] %vm5435, %v5163
      %5493 = vst.msk [vmem:[%s272 + $0xe4] sm:$0xf] %vm5435, %v5164
      %5494 = vst.msk [vmem:[%s272 + $0xe8] sm:$0xf] %vm5435, %v5165
      %5495 = vst.msk [vmem:[%s272 + $0xec] sm:$0xf] %vm5435, %v5166
      %5496 = vst.msk [vmem:[%s272 + $0xf0] sm:$0xf] %vm5435, %v5167
      %5497 = vst.msk [vmem:[%s272 + $0xf4] sm:$0xf] %vm5435, %v5168
      %5498 = vst.msk [vmem:[%s272 + $0xf8] sm:$0xf] %vm5435, %v5169
      %5499 = vst.msk [vmem:[%s272 + $0xfc] sm:$0xf] %vm5435, %v5170
      %5500 = vst.msk [vmem:[%s272 + $0x100] sm:$0xf] %vm5435, %v5171
      %5501 = vst.msk [vmem:[%s272 + $0x104] sm:$0xf] %vm5435, %v5172
      %5502 = vst.msk [vmem:[%s272 + $0x108] sm:$0xf] %vm5435, %v5173
      %5503 = vst.msk [vmem:[%s272 + $0x10c] sm:$0xf] %vm5435, %v5174
      %5504 = vst.msk [vmem:[%s272 + $0x110] sm:$0xf] %vm5435, %v5175
      %5505 = vst.msk [vmem:[%s272 + $0x114] sm:$0xf] %vm5435, %v5176
      %5506 = vst.msk [vmem:[%s272 + $0x118] sm:$0xf] %vm5435, %v5177
      %5507 = vst.msk [vmem:[%s272 + $0x11c] sm:$0xf] %vm5435, %v5178
      %5508 = vst.msk [vmem:[%s272 + $0x120] sm:$0xf] %vm5435, %v5179
      %5509 = vst.msk [vmem:[%s272 + $0x124] sm:$0xf] %vm5435, %v5180
      %5510 = vst.msk [vmem:[%s272 + $0x128] sm:$0xf] %vm5435, %v5181
      %5511 = vst.msk [vmem:[%s272 + $0x12c] sm:$0xf] %vm5435, %v5182
      %5512 = vst.msk [vmem:[%s272 + $0x130] sm:$0xf] %vm5435, %v5183
      %5513 = vst.msk [vmem:[%s272 + $0x134] sm:$0xf] %vm5435, %v5184
      %5514 = vst.msk [vmem:[%s272 + $0x138] sm:$0xf] %vm5435, %v5185
      %5515 = vst.msk [vmem:[%s272 + $0x13c] sm:$0xf] %vm5435, %v5186
      %5516 = vst.msk [vmem:[%s272 + $0x140] sm:$0xf] %vm5435, %v5187
      %5517 = vst.msk [vmem:[%s272 + $0x144] sm:$0xf] %vm5435, %v5188
      %5518 = vst.msk [vmem:[%s272 + $0x148] sm:$0xf] %vm5435, %v5189
      %5519 = vst.msk [vmem:[%s272 + $0x14c] sm:$0xf] %vm5435, %v5190
      %5520 = vst.msk [vmem:[%s272 + $0x150] sm:$0xf] %vm5435, %v5191
      %5521 = vst.msk [vmem:[%s272 + $0x154] sm:$0xf] %vm5435, %v5192
      %5522 = vst.msk [vmem:[%s272 + $0x158] sm:$0xf] %vm5435, %v5193
      %5523 = vst.msk [vmem:[%s272 + $0x15c] sm:$0xf] %vm5435, %v5194
      %5524 = vst.msk [vmem:[%s272 + $0x160] sm:$0xf] %vm5435, %v5195
      %5525 = vst.msk [vmem:[%s272 + $0x164] sm:$0xf] %vm5435, %v5196
      %5526 = vst.msk [vmem:[%s272 + $0x168] sm:$0xf] %vm5435, %v5197
      %5527 = vst.msk [vmem:[%s272 + $0x16c] sm:$0xf] %vm5435, %v5198
      %5528 = vst.msk [vmem:[%s272 + $0x170] sm:$0xf] %vm5435, %v5199
      %5529 = vst.msk [vmem:[%s272 + $0x174] sm:$0xf] %vm5435, %v5200
      %5530 = vst.msk [vmem:[%s272 + $0x178] sm:$0xf] %vm5435, %v5201
      %5531 = vst.msk [vmem:[%s272 + $0x17c] sm:$0xf] %vm5435, %v5202
      %5532 = vst.msk [vmem:[%s272 + $0x180] sm:$0xf] %vm5435, %v5203
      %5533 = vst.msk [vmem:[%s272 + $0x184] sm:$0xf] %vm5435, %v5204
      %5534 = vst.msk [vmem:[%s272 + $0x188] sm:$0xf] %vm5435, %v5205
      %5535 = vst.msk [vmem:[%s272 + $0x18c] sm:$0xf] %vm5435, %v5206
      %5536 = vst.msk [vmem:[%s272 + $0x190] sm:$0xf] %vm5435, %v5207
      %5537 = vst.msk [vmem:[%s272 + $0x194] sm:$0xf] %vm5435, %v5208
      %5538 = vst.msk [vmem:[%s272 + $0x198] sm:$0xf] %vm5435, %v5209
      %5539 = vst.msk [vmem:[%s272 + $0x19c] sm:$0xf] %vm5435, %v5210
      %5540 = vst.msk [vmem:[%s272 + $0x1a0] sm:$0xf] %vm5435, %v5211
      %5541 = vst.msk [vmem:[%s272 + $0x1a4] sm:$0xf] %vm5435, %v5212
      %5542 = vst.msk [vmem:[%s272 + $0x1a8] sm:$0xf] %vm5435, %v5213
      %5543 = vst.msk [vmem:[%s272 + $0x1ac] sm:$0xf] %vm5435, %v5214
      %5544 = vst.msk [vmem:[%s272 + $0x1b0] sm:$0xf] %vm5435, %v5215
      %5545 = vst.msk [vmem:[%s272 + $0x1b4] sm:$0xf] %vm5435, %v5216
      %5546 = vst.msk [vmem:[%s272 + $0x1b8] sm:$0xf] %vm5435, %v5217
      %5547 = vst.msk [vmem:[%s272 + $0x1bc] sm:$0xf] %vm5435, %v5218
      %5548 = vst.msk [vmem:[%s272 + $0x1c0] sm:$0xf] %vm5435, %v5219
      %5549 = vst.msk [vmem:[%s272 + $0x1c4] sm:$0xf] %vm5435, %v5220
      %5550 = vst.msk [vmem:[%s272 + $0x1c8] sm:$0xf] %vm5435, %v5221
      %5551 = vst.msk [vmem:[%s272 + $0x1cc] sm:$0xf] %vm5435, %v5222
      %5552 = vst.msk [vmem:[%s272 + $0x1d0] sm:$0xf] %vm5435, %v5223
      %5553 = vst.msk [vmem:[%s272 + $0x1d4] sm:$0xf] %vm5435, %v5224
      %5554 = vst.msk [vmem:[%s272 + $0x1d8] sm:$0xf] %vm5435, %v5225
      %5555 = vst.msk [vmem:[%s272 + $0x1dc] sm:$0xf] %vm5435, %v5226
      %5556 = vst.msk [vmem:[%s272 + $0x1e0] sm:$0xf] %vm5435, %v5227
      %5557 = vst.msk [vmem:[%s272 + $0x1e4] sm:$0xf] %vm5435, %v5228
      %5558 = vst.msk [vmem:[%s272 + $0x1e8] sm:$0xf] %vm5435, %v5229
      %5559 = vst.msk [vmem:[%s272 + $0x1ec] sm:$0xf] %vm5435, %v5230
      %5560 = vst.msk [vmem:[%s272 + $0x1f0] sm:$0xf] %vm5435, %v5231
      %5561 = vst.msk [vmem:[%s272 + $0x1f4] sm:$0xf] %vm5435, %v5232
      %5562 = vst.msk [vmem:[%s272 + $0x1f8] sm:$0xf] %vm5435, %v5233
      %5563 = vst.msk [vmem:[%s272 + $0x1fc] sm:$0xf] %vm5435, %v5234
      %5564 = vst.msk [vmem:[%s272 + $0x200] sm:$0xf] %vm5435, %v5235
      %5565 = vst.msk [vmem:[%s272 + $0x204] sm:$0xf] %vm5435, %v5236
      %5566 = vst.msk [vmem:[%s272 + $0x208] sm:$0xf] %vm5435, %v5237
      %5567 = vst.msk [vmem:[%s272 + $0x20c] sm:$0xf] %vm5435, %v5238
      %5568 = vst.msk [vmem:[%s272 + $0x210] sm:$0xf] %vm5435, %v5239
      %5569 = vst.msk [vmem:[%s272 + $0x214] sm:$0xf] %vm5435, %v5240
      %5570 = vst.msk [vmem:[%s272 + $0x218] sm:$0xf] %vm5435, %v5241
      %5571 = vst.msk [vmem:[%s272 + $0x21c] sm:$0xf] %vm5435, %v5242
      %5572 = vst.msk [vmem:[%s272 + $0x220] sm:$0xf] %vm5435, %v5243
      %5573 = vst.msk [vmem:[%s272 + $0x224] sm:$0xf] %vm5435, %v5244
      %5574 = vst.msk [vmem:[%s272 + $0x228] sm:$0xf] %vm5435, %v5245
      %5575 = vst.msk [vmem:[%s272 + $0x22c] sm:$0xf] %vm5435, %v5246
      %5576 = vst.msk [vmem:[%s272 + $0x230] sm:$0xf] %vm5435, %v5247
      %5577 = vst.msk [vmem:[%s272 + $0x234] sm:$0xf] %vm5435, %v5248
      %5578 = vst.msk [vmem:[%s272 + $0x238] sm:$0xf] %vm5435, %v5249
      %5579 = vst.msk [vmem:[%s272 + $0x23c] sm:$0xf] %vm5435, %v5250
      %5580 = vst.msk [vmem:[%s272 + $0x240] sm:$0xf] %vm5435, %v5251
      %5581 = vst.msk [vmem:[%s272 + $0x244] sm:$0xf] %vm5435, %v5252
      %5582 = vst.msk [vmem:[%s272 + $0x248] sm:$0xf] %vm5435, %v5253
      %5583 = vst.msk [vmem:[%s272 + $0x24c] sm:$0xf] %vm5435, %v5254
      %5584 = vst.msk [vmem:[%s272 + $0x250] sm:$0xf] %vm5435, %v5255
      %5585 = vst.msk [vmem:[%s272 + $0x254] sm:$0xf] %vm5435, %v5256
      %5586 = vst.msk [vmem:[%s272 + $0x258] sm:$0xf] %vm5435, %v5257
      %5587 = vst.msk [vmem:[%s272 + $0x25c] sm:$0xf] %vm5435, %v5258
      %5588 = vst.msk [vmem:[%s272 + $0x260] sm:$0xf] %vm5435, %v5259
      %5589 = vst.msk [vmem:[%s272 + $0x264] sm:$0xf] %vm5435, %v5260
      %5590 = vst.msk [vmem:[%s272 + $0x268] sm:$0xf] %vm5435, %v5261
      %5591 = vst.msk [vmem:[%s272 + $0x26c] sm:$0xf] %vm5435, %v5262
      %5592 = vst.msk [vmem:[%s272 + $0x270] sm:$0xf] %vm5435, %v5263
      %5593 = vst.msk [vmem:[%s272 + $0x274] sm:$0xf] %vm5435, %v5264
      %5594 = vst.msk [vmem:[%s272 + $0x278] sm:$0xf] %vm5435, %v5265
      %5595 = vst.msk [vmem:[%s272 + $0x27c] sm:$0xf] %vm5435, %v5266
      %5596 = vst.msk [vmem:[%s272 + $0x280] sm:$0xf] %vm5435, %v5267
      %5597 = vst.msk [vmem:[%s272 + $0x284] sm:$0xf] %vm5435, %v5268
      %5598 = vst.msk [vmem:[%s272 + $0x288] sm:$0xf] %vm5435, %v5269
      %5599 = vst.msk [vmem:[%s272 + $0x28c] sm:$0xf] %vm5435, %v5270
      %5600 = vst.msk [vmem:[%s272 + $0x290] sm:$0xf] %vm5435, %v5271
      %5601 = vst.msk [vmem:[%s272 + $0x294] sm:$0xf] %vm5435, %v5272
      %5602 = vst.msk [vmem:[%s272 + $0x298] sm:$0xf] %vm5435, %v5273
      %5603 = vst.msk [vmem:[%s272 + $0x29c] sm:$0xf] %vm5435, %v5274
      %5604 = vst.msk [vmem:[%s272 + $0x2a0] sm:$0xf] %vm5435, %v5275
      %5605 = vst.msk [vmem:[%s272 + $0x2a4] sm:$0xf] %vm5435, %v5276
      %5606 = vst.msk [vmem:[%s272 + $0x2a8] sm:$0xf] %vm5435, %v5277
      %5607 = vst.msk [vmem:[%s272 + $0x2ac] sm:$0xf] %vm5435, %v5278
      %5608 = vst.msk [vmem:[%s272 + $0x2b0] sm:$0xf] %vm5435, %v5279
      %5609 = vst.msk [vmem:[%s272 + $0x2b4] sm:$0xf] %vm5435, %v5280
      %5610 = vst.msk [vmem:[%s272 + $0x2b8] sm:$0xf] %vm5435, %v5281
      %5611 = vst.msk [vmem:[%s272 + $0x2bc] sm:$0xf] %vm5435, %v5282
      %5612 = vst.msk [vmem:[%s272 + $0x2c0] sm:$0xf] %vm5435, %v5283
      %5613 = vst.msk [vmem:[%s272 + $0x2c4] sm:$0xf] %vm5435, %v5284
      %5614 = vst.msk [vmem:[%s272 + $0x2c8] sm:$0xf] %vm5435, %v5285
      %5615 = vst.msk [vmem:[%s272 + $0x2cc] sm:$0xf] %vm5435, %v5286
      %5616 = vst.msk [vmem:[%s272 + $0x2d0] sm:$0xf] %vm5435, %v5287
      %5617 = vst.msk [vmem:[%s272 + $0x2d4] sm:$0xf] %vm5435, %v5288
      %5618 = vst.msk [vmem:[%s272 + $0x2d8] sm:$0xf] %vm5435, %v5289
      %5619 = vst.msk [vmem:[%s272 + $0x2dc] sm:$0xf] %vm5435, %v5290
      %5620 = vst.msk [vmem:[%s272 + $0x2e0] sm:$0xf] %vm5435, %v5291
      %5621 = vst.msk [vmem:[%s272 + $0x2e4] sm:$0xf] %vm5435, %v5292
      %5622 = vst.msk [vmem:[%s272 + $0x2e8] sm:$0xf] %vm5435, %v5293
      %5623 = vst.msk [vmem:[%s272 + $0x2ec] sm:$0xf] %vm5435, %v5294
      %5624 = vst.msk [vmem:[%s272 + $0x2f0] sm:$0xf] %vm5435, %v5295
      %5625 = vst.msk [vmem:[%s272 + $0x2f4] sm:$0xf] %vm5435, %v5296
      %5626 = vst.msk [vmem:[%s272 + $0x2f8] sm:$0xf] %vm5435, %v5297
      %5627 = vst.msk [vmem:[%s272 + $0x2fc] sm:$0xf] %vm5435, %v5298
      %5628 = vst.msk [vmem:[%s272 + $0x300] sm:$0xf] %vm5435, %v5299
      %5629 = vst.msk [vmem:[%s272 + $0x304] sm:$0xf] %vm5435, %v5300
      %5630 = vst.msk [vmem:[%s272 + $0x308] sm:$0xf] %vm5435, %v5301
      %5631 = vst.msk [vmem:[%s272 + $0x30c] sm:$0xf] %vm5435, %v5302
      %5632 = vst.msk [vmem:[%s272 + $0x310] sm:$0xf] %vm5435, %v5303
      %5633 = vst.msk [vmem:[%s272 + $0x314] sm:$0xf] %vm5435, %v5304
      %5634 = vst.msk [vmem:[%s272 + $0x318] sm:$0xf] %vm5435, %v5305
      %5635 = vst.msk [vmem:[%s272 + $0x31c] sm:$0xf] %vm5435, %v5306
      %5636 = vst.msk [vmem:[%s272 + $0x320] sm:$0xf] %vm5435, %v5307
      %5637 = vst.msk [vmem:[%s272 + $0x324] sm:$0xf] %vm5435, %v5308
      %5638 = vst.msk [vmem:[%s272 + $0x328] sm:$0xf] %vm5435, %v5309
      %5639 = vst.msk [vmem:[%s272 + $0x32c] sm:$0xf] %vm5435, %v5310
      %5640 = vst.msk [vmem:[%s272 + $0x330] sm:$0xf] %vm5435, %v5311
      %5641 = vst.msk [vmem:[%s272 + $0x334] sm:$0xf] %vm5435, %v5312
      %5642 = vst.msk [vmem:[%s272 + $0x338] sm:$0xf] %vm5435, %v5313
      %5643 = vst.msk [vmem:[%s272 + $0x33c] sm:$0xf] %vm5435, %v5314
      %5644 = vst.msk [vmem:[%s272 + $0x340] sm:$0xf] %vm5435, %v5315
      %5645 = vst.msk [vmem:[%s272 + $0x344] sm:$0xf] %vm5435, %v5316
      %5646 = vst.msk [vmem:[%s272 + $0x348] sm:$0xf] %vm5435, %v5317
      %5647 = vst.msk [vmem:[%s272 + $0x34c] sm:$0xf] %vm5435, %v5318
      %5648 = vst.msk [vmem:[%s272 + $0x350] sm:$0xf] %vm5435, %v5319
      %5649 = vst.msk [vmem:[%s272 + $0x354] sm:$0xf] %vm5435, %v5320
      %5650 = vst.msk [vmem:[%s272 + $0x358] sm:$0xf] %vm5435, %v5321
      %5651 = vst.msk [vmem:[%s272 + $0x35c] sm:$0xf] %vm5435, %v5322
      %5652 = vst.msk [vmem:[%s272 + $0x360] sm:$0xf] %vm5435, %v5323
      %5653 = vst.msk [vmem:[%s272 + $0x364] sm:$0xf] %vm5435, %v5324
      %5654 = vst.msk [vmem:[%s272 + $0x368] sm:$0xf] %vm5435, %v5325
      %5655 = vst.msk [vmem:[%s272 + $0x36c] sm:$0xf] %vm5435, %v5326
      %5656 = vst.msk [vmem:[%s272 + $0x370] sm:$0xf] %vm5435, %v5327
      %5657 = vst.msk [vmem:[%s272 + $0x374] sm:$0xf] %vm5435, %v5328
      %5658 = vst.msk [vmem:[%s272 + $0x378] sm:$0xf] %vm5435, %v5329
      %5659 = vst.msk [vmem:[%s272 + $0x37c] sm:$0xf] %vm5435, %v5330
      %5660 = vst.msk [vmem:[%s272 + $0x380] sm:$0xf] %vm5435, %v5331
      %5661 = vst.msk [vmem:[%s272 + $0x384] sm:$0xf] %vm5435, %v5332
      %5662 = vst.msk [vmem:[%s272 + $0x388] sm:$0xf] %vm5435, %v5333
      %5663 = vst.msk [vmem:[%s272 + $0x38c] sm:$0xf] %vm5435, %v5334
      %5664 = vst.msk [vmem:[%s272 + $0x390] sm:$0xf] %vm5435, %v5335
      %5665 = vst.msk [vmem:[%s272 + $0x394] sm:$0xf] %vm5435, %v5336
      %5666 = vst.msk [vmem:[%s272 + $0x398] sm:$0xf] %vm5435, %v5337
      %5667 = vst.msk [vmem:[%s272 + $0x39c] sm:$0xf] %vm5435, %v5338
      %5668 = vst.msk [vmem:[%s272 + $0x3a0] sm:$0xf] %vm5435, %v5339
      %5669 = vst.msk [vmem:[%s272 + $0x3a4] sm:$0xf] %vm5435, %v5340
      %5670 = vst.msk [vmem:[%s272 + $0x3a8] sm:$0xf] %vm5435, %v5341
      %5671 = vst.msk [vmem:[%s272 + $0x3ac] sm:$0xf] %vm5435, %v5342
      %5672 = vst.msk [vmem:[%s272 + $0x3b0] sm:$0xf] %vm5435, %v5343
      %5673 = vst.msk [vmem:[%s272 + $0x3b4] sm:$0xf] %vm5435, %v5344
      %5674 = vst.msk [vmem:[%s272 + $0x3b8] sm:$0xf] %vm5435, %v5345
      %5675 = vst.msk [vmem:[%s272 + $0x3bc] sm:$0xf] %vm5435, %v5346
      %5676 = vst.msk [vmem:[%s272 + $0x3c0] sm:$0xf] %vm5435, %v5347
      %5677 = vst.msk [vmem:[%s272 + $0x3c4] sm:$0xf] %vm5435, %v5348
      %5678 = vst.msk [vmem:[%s272 + $0x3c8] sm:$0xf] %vm5435, %v5349
      %5679 = vst.msk [vmem:[%s272 + $0x3cc] sm:$0xf] %vm5435, %v5350
      %5680 = vst.msk [vmem:[%s272 + $0x3d0] sm:$0xf] %vm5435, %v5351
      %5681 = vst.msk [vmem:[%s272 + $0x3d4] sm:$0xf] %vm5435, %v5352
      %5682 = vst.msk [vmem:[%s272 + $0x3d8] sm:$0xf] %vm5435, %v5353
      %5683 = vst.msk [vmem:[%s272 + $0x3dc] sm:$0xf] %vm5435, %v5354
      %5684 = vst.msk [vmem:[%s272 + $0x3e0] sm:$0xf] %vm5435, %v5355
      %5685 = vst.msk [vmem:[%s272 + $0x3e4] sm:$0xf] %vm5435, %v5356
      %5686 = vst.msk [vmem:[%s272 + $0x3e8] sm:$0xf] %vm5435, %v5357
      %5687 = vst.msk [vmem:[%s272 + $0x3ec] sm:$0xf] %vm5435, %v5358
      %5688 = vst.msk [vmem:[%s272 + $0x3f0] sm:$0xf] %vm5435, %v5359
      %5689 = vst.msk [vmem:[%s272 + $0x3f4] sm:$0xf] %vm5435, %v5360
      %5690 = vst.msk [vmem:[%s272 + $0x3f8] sm:$0xf] %vm5435, %v5361
      %5691 = vst.msk [vmem:[%s272 + $0x3fc] sm:$0xf] %vm5435, %v5362
      %5692 = vst.msk [vmem:[%s272 + $0x400] sm:$0xf] %vm5435, %v5363
      %5693 = vst.msk [vmem:[%s272 + $0x404] sm:$0xf] %vm5435, %v5364
      %5694 = vst.msk [vmem:[%s272 + $0x408] sm:$0xf] %vm5435, %v5365
      %5695 = vst.msk [vmem:[%s272 + $0x40c] sm:$0xf] %vm5435, %v5366
      %5696 = vst.msk [vmem:[%s272 + $0x410] sm:$0xf] %vm5435, %v5367
      %5697 = vst.msk [vmem:[%s272 + $0x414] sm:$0xf] %vm5435, %v5368
      %5698 = vst.msk [vmem:[%s272 + $0x418] sm:$0xf] %vm5435, %v5369
      %5699 = vst.msk [vmem:[%s272 + $0x41c] sm:$0xf] %vm5435, %v5370
      %5700 = vst.msk [vmem:[%s272 + $0x420] sm:$0xf] %vm5435, %v5371
      %5701 = vst.msk [vmem:[%s272 + $0x424] sm:$0xf] %vm5435, %v5372
      %5702 = vst.msk [vmem:[%s272 + $0x428] sm:$0xf] %vm5435, %v5373
      %5703 = vst.msk [vmem:[%s272 + $0x42c] sm:$0xf] %vm5435, %v5374
      %5704 = vst.msk [vmem:[%s272 + $0x430] sm:$0xf] %vm5435, %v5375
      %5705 = vst.msk [vmem:[%s272 + $0x434] sm:$0xf] %vm5435, %v5376
      %5706 = vst.msk [vmem:[%s272 + $0x438] sm:$0xf] %vm5435, %v5377
      %5707 = vst.msk [vmem:[%s272 + $0x43c] sm:$0xf] %vm5435, %v5378
      %5708 = vst.msk [vmem:[%s272 + $0x440] sm:$0xf] %vm5435, %v5379
      %5709 = vst.msk [vmem:[%s272 + $0x444] sm:$0xf] %vm5435, %v5380
      %5710 = vst.msk [vmem:[%s272 + $0x448] sm:$0xf] %vm5435, %v5381
      %5711 = vst.msk [vmem:[%s272 + $0x44c] sm:$0xf] %vm5435, %v5382
      %5712 = vst.msk [vmem:[%s272 + $0x450] sm:$0xf] %vm5435, %v5383
      %5713 = vst.msk [vmem:[%s272 + $0x454] sm:$0xf] %vm5435, %v5384
      %5714 = vst.msk [vmem:[%s272 + $0x458] sm:$0xf] %vm5435, %v5385
      %5715 = vst.msk [vmem:[%s272 + $0x45c] sm:$0xf] %vm5435, %v5386
      %5716 = vst.msk [vmem:[%s272 + $0x460] sm:$0xf] %vm5435, %v5387
      %5717 = vst.msk [vmem:[%s272 + $0x464] sm:$0xf] %vm5435, %v5388
      %5718 = vst.msk [vmem:[%s272 + $0x468] sm:$0xf] %vm5435, %v5389
      %5719 = vst.msk [vmem:[%s272 + $0x46c] sm:$0xf] %vm5435, %v5390
      %5720 = vst.msk [vmem:[%s272 + $0x470] sm:$0xf] %vm5435, %v5391
      %5721 = vst.msk [vmem:[%s272 + $0x474] sm:$0xf] %vm5435, %v5392
      %5722 = vst.msk [vmem:[%s272 + $0x478] sm:$0xf] %vm5435, %v5393
      %5723 = vst.msk [vmem:[%s272 + $0x47c] sm:$0xf] %vm5435, %v5394
      %5724 = vst.msk [vmem:[%s272 + $0x480] sm:$0xf] %vm5435, %v5395
      %5725 = vst.msk [vmem:[%s272 + $0x484] sm:$0xf] %vm5435, %v5396
      %5726 = vst.msk [vmem:[%s272 + $0x488] sm:$0xf] %vm5435, %v5397
      %5727 = vst.msk [vmem:[%s272 + $0x48c] sm:$0xf] %vm5435, %v5398
      %5728 = vst.msk [vmem:[%s272 + $0x490] sm:$0xf] %vm5435, %v5399
      %5729 = vst.msk [vmem:[%s272 + $0x494] sm:$0xf] %vm5435, %v5400
      %5730 = vst.msk [vmem:[%s272 + $0x498] sm:$0xf] %vm5435, %v5401
      %5731 = vst.msk [vmem:[%s272 + $0x49c] sm:$0xf] %vm5435, %v5402
      %5732 = vst.msk [vmem:[%s272 + $0x4a0] sm:$0xf] %vm5435, %v5403
      %5733 = vst.msk [vmem:[%s272 + $0x4a4] sm:$0xf] %vm5435, %v5404
      %5734 = vst.msk [vmem:[%s272 + $0x4a8] sm:$0xf] %vm5435, %v5405
      %5735 = vst.msk [vmem:[%s272 + $0x4ac] sm:$0xf] %vm5435, %v5406
      %5736 = vst.msk [vmem:[%s272 + $0x4b0] sm:$0xf] %vm5435, %v5407
      %5737 = vst.msk [vmem:[%s272 + $0x4b4] sm:$0xf] %vm5435, %v5408
      %5738 = vst.msk [vmem:[%s272 + $0x4b8] sm:$0xf] %vm5435, %v5409
      %5739 = vst.msk [vmem:[%s272 + $0x4bc] sm:$0xf] %vm5435, %v5410
      %5740 = vst.msk [vmem:[%s272 + $0x4c0] sm:$0xf] %vm5435, %v5411
      %5741 = vst.msk [vmem:[%s272 + $0x4c4] sm:$0xf] %vm5435, %v5412
      %5742 = vst.msk [vmem:[%s272 + $0x4c8] sm:$0xf] %vm5435, %v5413
      %5743 = vst.msk [vmem:[%s272 + $0x4cc] sm:$0xf] %vm5435, %v5414
      %5744 = vst.msk [vmem:[%s272 + $0x4d0] sm:$0xf] %vm5435, %v5415
      %5745 = vst.msk [vmem:[%s272 + $0x4d4] sm:$0xf] %vm5435, %v5416
      %5746 = vst.msk [vmem:[%s272 + $0x4d8] sm:$0xf] %vm5435, %v5417
      %5747 = vst.msk [vmem:[%s272 + $0x4dc] sm:$0xf] %vm5435, %v5418
      %5748 = vst.msk [vmem:[%s272 + $0x4e0] sm:$0xf] %vm5435, %v5419
      %5749 = vst.msk [vmem:[%s272 + $0x4e4] sm:$0xf] %vm5435, %v5420
      %5750 = vst.msk [vmem:[%s272 + $0x4e8] sm:$0xf] %vm5435, %v5421
      %5751 = vst.msk [vmem:[%s272 + $0x4ec] sm:$0xf] %vm5435, %v5422
      %5752 = vst.msk [vmem:[%s272 + $0x4f0] sm:$0xf] %vm5435, %v5423
      %5753 = vst.msk [vmem:[%s272 + $0x4f4] sm:$0xf] %vm5435, %v5424
      %5754 = vst.msk [vmem:[%s272 + $0x4f8] sm:$0xf] %vm5435, %v5425
      %5755 = vst.msk [vmem:[%s272 + $0x4fc] sm:$0xf] %vm5435, %v5426
      %5756 = vst.msk [vmem:[%s272 + $0x500] sm:$0xf] %vm5435, %v5427
      %5757 = vst.msk [vmem:[%s272 + $0x504] sm:$0xf] %vm5435, %v5428
      %5758 = vst.msk [vmem:[%s272 + $0x508] sm:$0xf] %vm5435, %v5429
      %5759 = vst.msk [vmem:[%s272 + $0x50c] sm:$0xf] %vm5435, %v5430
      %5760 = vst.msk [vmem:[%s272 + $0x510] sm:$0xf] %vm5435, %v5431
      %5761 = vst.msk [vmem:[%s272 + $0x514] sm:$0xf] %vm5435, %v5432
      %5762 = vst.msk [vmem:[%s272 + $0x518] sm:$0xf] %vm5435, %v5433
      %5763 = vst.msk [vmem:[%s272 + $0x51c] sm:$0xf] %vm5435, %v5434
      %s5764 = smul.u32 328, %s19
      %p5765 = scmp.lt.s32.totalorder %s5764, 2623
      %s5766 = scalar_select %p5765, %s5764, 2623
      %p5767 = scmp.lt.s32.totalorder %s20, 0
      %s5768 = scalar_select %p5767, %s20, 0
      %s5769 = sadd.s32 %s5768, %s5766
      %s5770 = smul.addr %s5769, 4
      %s5771 = scalar_lea.vmem %s4, %s5770
      // Predicated region
      $region37: #{tpu_custom_call.1} parent=35 // pred_check
        %p5772 = pneg %p151
      $region38: #{tpu_custom_call.1} parent=35 // pred_check_branch
        %5774 = sbr.rel (%p5772) target = $region40
      $region39: #{tpu_custom_call.1} parent=35 // pred_region
        %s5775 = smul.u32 328, %s19
      $region40: #{tpu_custom_call.1} parent=35 // pred_fallthru
        _
    $region36: #{tpu_custom_call.1} parent=5 // pred_fallthru
      _
    %p5776 = scmp.le.s32.totalorder 2, %s10
    // Predicated region
    $region41: #{tpu_custom_call.1} parent=5 // pred_check
      %p5777 = pneg %p5776
    $region42: #{tpu_custom_call.1} parent=5 // pred_check_branch
      %5779 = sbr.rel (%p5777) target = $region44
    $region43: #{tpu_custom_call.1} parent=5 // pred_region
      %s5780 = ssub.s32 %s10, 2
      // Predicated region
      $region45: #{tpu_custom_call.1} parent=43 // pred_check
        %p5781 = pneg %p157
      $region46: #{tpu_custom_call.1} parent=43 // pred_check_branch
        %5783 = sbr.rel (%p5781) target = $region48
      $region47: #{tpu_custom_call.1} parent=43 // pred_region
        %s5784 = smul.u32 328, %s21
        %p5785 = scmp.lt.s32.totalorder %s5784, 2623
        %s5786 = scalar_select %p5785, %s5784, 2623
        %p5787 = scmp.lt.s32.totalorder %s22, 0
        %s5788 = scalar_select %p5787, %s22, 0
        %s5789 = sadd.s32 %s5788, %s5786
        %s5790 = smul.addr %s5789, 4
        %s5791 = scalar_lea.vmem %s4, %s5790
      $region48: #{tpu_custom_call.1} parent=43 // pred_fallthru
        _
    $region44: #{tpu_custom_call.1} parent=5 // pred_fallthru
      _
  $region6: #{tpu_custom_call.1} parent=0 // loop_footer
    %s14 = sadd.s32 1, %s10
  $region7: #{tpu_custom_call.1} parent=0 // loop_footer_branch
    %9 = sbr.rel target = $region3
  $region8: #{tpu_custom_call.1} parent=0 // loop_exit
    _

</llo_original>
